<compile_context>
chip_gen: v7x
topology: tpu7x:2x2x1
jax: 0.10.0
libtpu: 0.0.40
codegen_flags: <defaults>
</compile_context>

<pallas_src>
import functools

import jax
import jax.numpy as jnp
from jax.experimental import pallas as pl
from jax.experimental.pallas import tpu as pltpu

KERNELS = (8, 4, 2)   # nature-CNN conv kernel sizes
STRIDES = (4, 2, 1)   # nature-CNN conv strides


def _conv_out(size, k, s):
    return (size - k) // s + 1


# ----------------------------------------------------------------------------
# Fused forward kernel: conv1..conv3 (+ReLU), fc1 (+ReLU), fc2.
# ----------------------------------------------------------------------------
def _fused_forward_kernel(x_ref, w1_ref, b1_ref, w2_ref, b2_ref, w3_ref, b3_ref,
                          fc1w_ref, fc1b_ref, fc2w_ref, fc2b_ref, out_ref):
    f32, bf16 = jnp.float32, jnp.bfloat16
    k1, k2, k3 = KERNELS
    s1, s2, s3 = STRIDES
    r1 = k1 // s1                       # conv1 extent after input space-to-depth
    r2 = k2 // s2                       # conv2 extent after parity split

    TB, H1, W1, Cp = x_ref.shape        # space-to-depth packed input tile
    C1 = b1_ref.shape[-1]
    C2 = b2_ref.shape[-1]
    C3 = b3_ref.shape[-1]
    OH1, OW1 = H1 - (r1 - 1), W1 - (r1 - 1)
    OH2, OW2 = _conv_out(OH1, k2, s2), _conv_out(OW1, k2, s2)
    OH3, OW3 = _conv_out(OH2, k3, s3), _conv_out(OW2, k3, s3)
    R = OH3 * OW3
    assert fc1w_ref.shape[0] == R

    # ---- conv1 + ReLU: 4-tap sum, M = TB*OH1*OW1 -----------------------------
    x = x_ref[...].astype(bf16)
    w1 = w1_ref[...]                                     # (r1, r1, Cp, C1) bf16
    M1 = TB * OH1 * OW1
    acc1 = jnp.zeros((M1, C1), f32)
    for p in range(r1):
        for q in range(r1):
            lhs = x[:, p:p + OH1, q:q + OW1, :].reshape(M1, Cp)
            acc1 = acc1 + jnp.dot(lhs, w1[p, q], preferred_element_type=f32)
    h1 = jnp.maximum(acc1 + b1_ref[...], 0.0).astype(bf16)      # (M1, C1)

    # ---- conv2 + ReLU: parity-split h1 (reshapes + static slices only) then a
    #      16-tap sum with M = TB*OH2*OW2 --------------------------------------
    OH1h, OW1h = OH2 + (r2 - 1), OW2 + (r2 - 1)
    h1_4d = h1.reshape(TB, OH1, OW1, C1)
    h1_sl = h1_4d[:, :s2 * OH1h, :s2 * OW1h, :]
    h1_r5 = h1_sl.reshape(TB, OH1h, s2, s2 * OW1h, C1)
    par = []
    for a in range(s2):
        rows = h1_r5[:, :, a, :, :].reshape(TB, OH1h, OW1h, s2, C1)
        par.append([rows[:, :, :, b, :] for b in range(s2)])
    # par[a][b][t, hq, wq, c] == h1[t, s2*hq + a, s2*wq + b, c]

    w2 = w2_ref[...]                                     # (k2, k2, C1, C2) bf16
    M2 = TB * OH2 * OW2
    acc2 = jnp.zeros((M2, C2), f32)
    for i in range(k2):
        for j in range(k2):
            src = par[i % s2][j % s2]
            tap = src[:, i // s2:i // s2 + OH2, j // s2:j // s2 + OW2, :]
            acc2 = acc2 + jnp.dot(tap.reshape(M2, C1), w2[i, j],
                                  preferred_element_type=f32)
    h2 = jnp.maximum(acc2 + b2_ref[...], 0.0).astype(bf16)      # (M2, C2)

    # ---- conv3 + ReLU: 4-tap sum, M = TB*OH3*OW3 -----------------------------
    w3 = w3_ref[...]                                     # (k3, k3, C2, C3) bf16
    h2_4d = h2.reshape(TB, OH2, OW2, C2)
    M3 = TB * OH3 * OW3
    acc3 = jnp.zeros((M3, C3), f32)
    for p in range(k3):
        for q in range(k3):
            lhs = h2_4d[:, p:p + OH3, q:q + OW3, :].reshape(M3, C2)
            acc3 = acc3 + jnp.dot(lhs, w3[p, q], preferred_element_type=f32)
    h3 = jnp.maximum(acc3 + b3_ref[...], 0.0).astype(bf16)      # (M3, C3)

    # ---- fc1 + ReLU: tap-sum over spatial positions (no in-kernel flatten) ---
    fc1w = fc1w_ref[...]                                 # (R, C3, F) bf16
    F = fc1b_ref.shape[-1]
    h3_3d = h3.reshape(TB, R, C3)
    acc4 = jnp.zeros((TB, F), f32)
    for r in range(R):
        acc4 = acc4 + jnp.dot(h3_3d[:, r, :], fc1w[r], preferred_element_type=f32)
    h4 = jnp.maximum(acc4 + fc1b_ref[...], 0.0)          # (TB, F) f32

    # ---- fc2: lane-dense (128-padded) output ---------------------------------
    logits = jnp.dot(h4.astype(bf16), fc2w_ref[...],
                     preferred_element_type=f32) + fc2b_ref[...]
    out_ref[...] = logits.astype(out_ref.dtype)


# ----------------------------------------------------------------------------
# Parameter construction (PyTorch layout) + one-time kernel re-layout.
# ----------------------------------------------------------------------------
def make_params(key, in_channels, n_flatten, n_actions,
                depths=(32, 64, 64), final_layer=512):
    keys = jax.random.split(key, 10)
    scale = 0.05

    def w(k, shape):
        return scale * jax.random.normal(k, shape, dtype=jnp.float32)

    return {
        "conv1_w": w(keys[0], (depths[0], in_channels, KERNELS[0], KERNELS[0])),
        "conv1_b": w(keys[1], (depths[0],)),
        "conv2_w": w(keys[2], (depths[1], depths[0], KERNELS[1], KERNELS[1])),
        "conv2_b": w(keys[3], (depths[1],)),
        "conv3_w": w(keys[4], (depths[2], depths[1], KERNELS[2], KERNELS[2])),
        "conv3_b": w(keys[5], (depths[2],)),
        "fc1_w": w(keys[6], (n_flatten, final_layer)),
        "fc1_b": w(keys[7], (final_layer,)),
        "fc2_w": w(keys[8], (final_layer, n_actions)),
        "fc2_b": w(keys[9], (n_actions,)),
    }


def prepare_params(params, in_hw):
    """One-time re-layout of PyTorch-style params into kernel operands
    (bf16 matmul weights, f32 biases)."""
    H, W = in_hw
    k1, k2, k3 = KERNELS
    s1, s2, s3 = STRIDES
    r1 = k1 // s1
    C1, C = params["conv1_w"].shape[:2]
    C2 = params["conv2_w"].shape[0]
    C3 = params["conv3_w"].shape[0]
    OH1, OW1 = _conv_out(H, k1, s1), _conv_out(W, k1, s1)
    OH2, OW2 = _conv_out(OH1, k2, s2), _conv_out(OW1, k2, s2)
    OH3, OW3 = _conv_out(OH2, k3, s3), _conv_out(OW2, k3, s3)
    R = OH3 * OW3
    bf16 = jnp.bfloat16

    # conv1: stride folded by the host space-to-depth; tap (p, q), rows (a, b, c).
    w1k = (params["conv1_w"].reshape(C1, C, r1, s1, r1, s1)
           .transpose(2, 4, 3, 5, 1, 0)
           .reshape(r1, r1, s1 * s1 * C, C1)).astype(bf16)
    # conv2 / conv3 taps: (kh, kw, cin, cout).
    w2k = params["conv2_w"].transpose(2, 3, 1, 0).astype(bf16)
    w3k = params["conv3_w"].transpose(2, 3, 1, 0).astype(bf16)

    # fc1: PyTorch flatten order is (c, h, w); the kernel sums taps over
    # r = (h, w), so re-layout to (R, C3, F).
    F = params["fc1_w"].shape[1]
    assert params["fc1_w"].shape[0] == C3 * R, "fc1 size inconsistent with input"
    fc1k = (params["fc1_w"].reshape(C3, R, F).transpose(1, 0, 2)).astype(bf16)

    # fc2: zero-pad N to a lane-dense multiple of 128.
    A = params["fc2_w"].shape[1]
    Apad = max(128, ((A + 127) // 128) * 128)
    fc2k = jnp.zeros((F, Apad), jnp.float32).at[:, :A].set(
        params["fc2_w"]).astype(bf16)
    fc2b = jnp.zeros((1, Apad), jnp.float32).at[0, :A].set(params["fc2_b"])

    return {
        "w1": w1k, "b1": params["conv1_b"].reshape(1, C1),
        "w2": w2k, "b2": params["conv2_b"].reshape(1, C2),
        "w3": w3k, "b3": params["conv3_b"].reshape(1, C3),
        "fc1_w": fc1k, "fc1_b": params["fc1_b"].reshape(1, F),
        "fc2_w": fc2k, "fc2_b": fc2b,
    }


# ----------------------------------------------------------------------------
# Forward wrapper: one cheap input packing + a single batch-tiled pallas_call.
# ----------------------------------------------------------------------------
def _space_to_depth(x, s):
    B, C, H, W = x.shape
    Hq, Wq = H // s, W // s
    x = x[:, :, :Hq * s, :Wq * s]
    x = x.transpose(0, 2, 3, 1)                   # NHWC
    x = x.reshape(B, Hq, s, Wq, s, C)
    x = x.transpose(0, 1, 3, 2, 4, 5)             # (B, Hq, Wq, a, b, C)
    return x.reshape(B, Hq, Wq, s * s * C)


@functools.partial(jax.jit, static_argnums=(2,))
def network_forward(kparams, x, n_actions):
    B = x.shape[0]
    xh = _space_to_depth(x, STRIDES[0])           # (B, H1, W1, 16*C)
    _, H1, W1, Cp = xh.shape

    TB = min(8, B)                                # batch tile (grid axis)
    Bp = ((B + TB - 1) // TB) * TB
    if Bp != B:
        xh = jnp.pad(xh, ((0, Bp - B), (0, 0), (0, 0), (0, 0)))

    weights = (kparams["w1"], kparams["b1"], kparams["w2"], kparams["b2"],
               kparams["w3"], kparams["b3"], kparams["fc1_w"], kparams["fc1_b"],
               kparams["fc2_w"], kparams["fc2_b"])
    Apad = kparams["fc2_w"].shape[1]
    Fdim = kparams["fc1_b"].shape[1]
    C1 = kparams["b1"].shape[1]
    C2 = kparams["b2"].shape[1]
    C3 = kparams["b3"].shape[1]
    OH1, OW1 = H1 - 1, W1 - 1
    OH2 = _conv_out(OH1, KERNELS[1], STRIDES[1])
    OW2 = _conv_out(OW1, KERNELS[1], STRIDES[1])
    OH3 = _conv_out(OH2, KERNELS[2], STRIDES[2])
    OW3 = _conv_out(OW2, KERNELS[2], STRIDES[2])

    def full_spec(arr):
        nd = arr.ndim
        return pl.BlockSpec(arr.shape, lambda i, _nd=nd: (0,) * _nd)

    # TODO(synk): single-buffer the constant-index weight blocks
    # (pipeline_mode=pl.Buffered(1)) to halve weight VMEM once batch tiling is
    # used at Atari scale on v7x's 64 MiB VMEM.
    in_specs = [pl.BlockSpec((TB, H1, W1, Cp), lambda i: (i, 0, 0, 0))]
    in_specs += [full_spec(wgt) for wgt in weights]
    out_spec = pl.BlockSpec((TB, Apad), lambda i: (i, 0))

    flops = 2 * Bp * (OH1 * OW1 * 4 * Cp * C1
                      + OH2 * OW2 * KERNELS[1] * KERNELS[1] * C1 * C2
                      + OH3 * OW3 * KERNELS[2] * KERNELS[2] * C2 * C3
                      + OH3 * OW3 * C3 * Fdim
                      + Fdim * Apad)
    bytes_accessed = int(xh.size * 4
                         + sum(int(w.size) * w.dtype.itemsize for w in weights)
                         + Bp * Apad * 4)
    vmem_limit = int(min(64 * 1024 * 1024,
                         max(16 * 1024 * 1024, 8 * bytes_accessed)))

    out = pl.pallas_call(
        _fused_forward_kernel,
        out_shape=jax.ShapeDtypeStruct((Bp, Apad), jnp.float32),
        grid=(Bp // TB,),
        in_specs=in_specs,
        out_specs=out_spec,
        compiler_params=pltpu.CompilerParams(
            dimension_semantics=("parallel",),
            vmem_limit_bytes=vmem_limit),
        cost_estimate=pl.CostEstimate(flops=int(flops), transcendentals=0,
                                      bytes_accessed=bytes_accessed),
    )(xh, *weights)
    return out[:B, :n_actions]


# ----------------------------------------------------------------------------
# Pure-JAX reference (original PyTorch-layout params) for correctness check.
# ----------------------------------------------------------------------------
def reference_forward(params, x):
    hp = jax.lax.Precision.HIGHEST

    def conv(h, w, b, s):
        y = jax.lax.conv_general_dilated(
            h, w, window_strides=(s, s), padding="VALID",
            dimension_numbers=("NCHW", "OIHW", "NCHW"), precision=hp)
        return jnp.maximum(y + b[None, :, None, None], 0.0)

    h = conv(x, params["conv1_w"], params["conv1_b"], STRIDES[0])
    h = conv(h, params["conv2_w"], params["conv2_b"], STRIDES[1])
    h = conv(h, params["conv3_w"], params["conv3_b"], STRIDES[2])
    h = h.reshape(h.shape[0], -1)
    h = jnp.maximum(jnp.dot(h, params["fc1_w"], precision=hp)
                    + params["fc1_b"], 0.0)
    return jnp.dot(h, params["fc2_w"], precision=hp) + params["fc2_b"]


def _run_case(key, B, C, H, W, n_actions):
    k_obs, k_par = jax.random.split(key)
    x = jax.random.normal(k_obs, (B, C, H, W), dtype=jnp.float32)
    oh3 = _conv_out(_conv_out(_conv_out(H, 8, 4), 4, 2), 2, 1)
    ow3 = _conv_out(_conv_out(_conv_out(W, 8, 4), 4, 2), 2, 1)
    n_flatten = 64 * oh3 * ow3
    params = make_params(k_par, C, n_flatten, n_actions)
    kparams = prepare_params(params, (H, W))

    q = network_forward(kparams, x, n_actions)
    jax.block_until_ready(q)

    q_ref = reference_forward(params, x)
    assert q.shape == (B, n_actions)
    max_err = float(jnp.max(jnp.abs(q - q_ref)))
    assert jnp.allclose(q, q_ref, atol=3e-2, rtol=3e-2), (
        f"mismatch vs reference: max|diff|={max_err}")


if __name__ == "__main__":
    key = jax.random.PRNGKey(0)
    ka, kb = jax.random.split(key)
    # 36x36 input -> 2x2 conv3 output: exercises the fc1 (c,h,w)->(h,w,c)
    # re-layout.  32x32 input -> odd conv1 output + 1x1 conv3 output.
    _run_case(ka, 2, 4, 36, 36, 6)
    _run_case(kb, 3, 4, 32, 32, 5)
    print("KERNEL_OK")
</pallas_src>

<mosaic_0001>
module attributes {stable_mosaic.version = 11 : i64} {
  func.func @_fused_forward_kernel(%arg0: i32, %arg1: memref<2x9x9x64xf32, #tpu.memory_space<vmem>>, %arg2: memref<2x2x64x32xbf16, #tpu.memory_space<vmem>>, %arg3: memref<1x32xf32, #tpu.memory_space<vmem>>, %arg4: memref<4x4x32x64xbf16, #tpu.memory_space<vmem>>, %arg5: memref<1x64xf32, #tpu.memory_space<vmem>>, %arg6: memref<2x2x64x64xbf16, #tpu.memory_space<vmem>>, %arg7: memref<1x64xf32, #tpu.memory_space<vmem>>, %arg8: memref<4x64x512xbf16, #tpu.memory_space<vmem>>, %arg9: memref<1x512xf32, #tpu.memory_space<vmem>>, %arg10: memref<512x128xbf16, #tpu.memory_space<vmem>>, %arg11: memref<1x128xf32, #tpu.memory_space<vmem>>, %arg12: memref<2x128xf32, #tpu.memory_space<vmem>>) attributes {dimension_semantics = [#tpu.dimension_semantics<parallel>], iteration_bounds = array<i64: 1>, scalar_prefetch = 0 : i64, scratch_operands = 0 : i64, tpu.core_type = #tpu.core_type<tc>, window_params = [{transform_indices = @transform_0, window_bounds = array<i64: 2, 9, 9, 64>}, {pipeline_mode = #tpu.pipeline_mode<synchronous>, transform_indices = @transform_1, window_bounds = array<i64: 2, 2, 64, 32>}, {pipeline_mode = #tpu.pipeline_mode<synchronous>, transform_indices = @transform_2, window_bounds = array<i64: 1, 32>}, {pipeline_mode = #tpu.pipeline_mode<synchronous>, transform_indices = @transform_3, window_bounds = array<i64: 4, 4, 32, 64>}, {pipeline_mode = #tpu.pipeline_mode<synchronous>, transform_indices = @transform_4, window_bounds = array<i64: 1, 64>}, {pipeline_mode = #tpu.pipeline_mode<synchronous>, transform_indices = @transform_5, window_bounds = array<i64: 2, 2, 64, 64>}, {pipeline_mode = #tpu.pipeline_mode<synchronous>, transform_indices = @transform_6, window_bounds = array<i64: 1, 64>}, {pipeline_mode = #tpu.pipeline_mode<synchronous>, transform_indices = @transform_7, window_bounds = array<i64: 4, 64, 512>}, {pipeline_mode = #tpu.pipeline_mode<synchronous>, transform_indices = @transform_8, window_bounds = array<i64: 1, 512>}, {pipeline_mode = #tpu.pipeline_mode<synchronous>, transform_indices = @transform_9, window_bounds = array<i64: 512, 128>}, {pipeline_mode = #tpu.pipeline_mode<synchronous>, transform_indices = @transform_10, window_bounds = array<i64: 1, 128>}, {transform_indices = @transform_11, window_bounds = array<i64: 2, 128>}]} {
    %c0 = arith.constant 0 : index
    %c0_0 = arith.constant 0 : index
    %c0_1 = arith.constant 0 : index
    %c0_2 = arith.constant 0 : index
    %0 = vector.load %arg1[%c0, %c0_0, %c0_1, %c0_2] : memref<2x9x9x64xf32, #tpu.memory_space<vmem>>, vector<2x9x9x64xf32>
    %1 = arith.truncf %0 : vector<2x9x9x64xf32> to vector<2x9x9x64xbf16>
    %c0_3 = arith.constant 0 : index
    %c0_4 = arith.constant 0 : index
    %c0_5 = arith.constant 0 : index
    %c0_6 = arith.constant 0 : index
    %2 = vector.load %arg2[%c0_3, %c0_4, %c0_5, %c0_6] : memref<2x2x64x32xbf16, #tpu.memory_space<vmem>>, vector<2x2x64x32xbf16>
    %cst = arith.constant 0.000000e+00 : f32
    %3 = vector.broadcast %cst : f32 to vector<128x32xf32>
    %4 = vector.extract_strided_slice %1 {offsets = [0, 0, 0, 0], sizes = [2, 8, 8, 64], strides = [1, 1, 1, 1]} : vector<2x9x9x64xbf16> to vector<2x8x8x64xbf16>
    %5 = vector.shape_cast %4 : vector<2x8x8x64xbf16> to vector<128x64xbf16>
    %6 = vector.extract_strided_slice %2 {offsets = [0, 0, 0, 0], sizes = [1, 1, 64, 32], strides = [1, 1, 1, 1]} : vector<2x2x64x32xbf16> to vector<1x1x64x32xbf16>
    %7 = vector.shape_cast %6 : vector<1x1x64x32xbf16> to vector<64x32xbf16>
    %cst_7 = arith.constant dense<0.000000e+00> : vector<128x32xf32>
    %8 = tpu.matmul %5, %7, %cst_7 {dimension_numbers = #tpu.dot_dimension_numbers<[1], [0], [0], [1], [0, 0, 1, 1], [], []>} : vector<128x64xbf16>, vector<64x32xbf16>, vector<128x32xf32> -> vector<128x32xf32>
    %9 = arith.addf %3, %8 : vector<128x32xf32>
    %10 = vector.extract_strided_slice %1 {offsets = [0, 0, 1, 0], sizes = [2, 8, 8, 64], strides = [1, 1, 1, 1]} : vector<2x9x9x64xbf16> to vector<2x8x8x64xbf16>
    %11 = vector.shape_cast %10 : vector<2x8x8x64xbf16> to vector<128x64xbf16>
    %12 = vector.extract_strided_slice %2 {offsets = [0, 1, 0, 0], sizes = [1, 1, 64, 32], strides = [1, 1, 1, 1]} : vector<2x2x64x32xbf16> to vector<1x1x64x32xbf16>
    %13 = vector.shape_cast %12 : vector<1x1x64x32xbf16> to vector<64x32xbf16>
    %cst_8 = arith.constant dense<0.000000e+00> : vector<128x32xf32>
    %14 = tpu.matmul %11, %13, %cst_8 {dimension_numbers = #tpu.dot_dimension_numbers<[1], [0], [0], [1], [0, 0, 1, 1], [], []>} : vector<128x64xbf16>, vector<64x32xbf16>, vector<128x32xf32> -> vector<128x32xf32>
    %15 = arith.addf %9, %14 : vector<128x32xf32>
    %16 = vector.extract_strided_slice %1 {offsets = [0, 1, 0, 0], sizes = [2, 8, 8, 64], strides = [1, 1, 1, 1]} : vector<2x9x9x64xbf16> to vector<2x8x8x64xbf16>
    %17 = vector.shape_cast %16 : vector<2x8x8x64xbf16> to vector<128x64xbf16>
    %18 = vector.extract_strided_slice %2 {offsets = [1, 0, 0, 0], sizes = [1, 1, 64, 32], strides = [1, 1, 1, 1]} : vector<2x2x64x32xbf16> to vector<1x1x64x32xbf16>
    %19 = vector.shape_cast %18 : vector<1x1x64x32xbf16> to vector<64x32xbf16>
    %cst_9 = arith.constant dense<0.000000e+00> : vector<128x32xf32>
    %20 = tpu.matmul %17, %19, %cst_9 {dimension_numbers = #tpu.dot_dimension_numbers<[1], [0], [0], [1], [0, 0, 1, 1], [], []>} : vector<128x64xbf16>, vector<64x32xbf16>, vector<128x32xf32> -> vector<128x32xf32>
    %21 = arith.addf %15, %20 : vector<128x32xf32>
    %22 = vector.extract_strided_slice %1 {offsets = [0, 1, 1, 0], sizes = [2, 8, 8, 64], strides = [1, 1, 1, 1]} : vector<2x9x9x64xbf16> to vector<2x8x8x64xbf16>
    %23 = vector.shape_cast %22 : vector<2x8x8x64xbf16> to vector<128x64xbf16>
    %24 = vector.extract_strided_slice %2 {offsets = [1, 1, 0, 0], sizes = [1, 1, 64, 32], strides = [1, 1, 1, 1]} : vector<2x2x64x32xbf16> to vector<1x1x64x32xbf16>
    %25 = vector.shape_cast %24 : vector<1x1x64x32xbf16> to vector<64x32xbf16>
    %cst_10 = arith.constant dense<0.000000e+00> : vector<128x32xf32>
    %26 = tpu.matmul %23, %25, %cst_10 {dimension_numbers = #tpu.dot_dimension_numbers<[1], [0], [0], [1], [0, 0, 1, 1], [], []>} : vector<128x64xbf16>, vector<64x32xbf16>, vector<128x32xf32> -> vector<128x32xf32>
    %27 = arith.addf %21, %26 : vector<128x32xf32>
    %c0_11 = arith.constant 0 : index
    %c0_12 = arith.constant 0 : index
    %28 = vector.load %arg3[%c0_11, %c0_12] : memref<1x32xf32, #tpu.memory_space<vmem>>, vector<1x32xf32>
    %29 = vector.broadcast %28 : vector<1x32xf32> to vector<128x32xf32>
    %30 = arith.addf %27, %29 : vector<128x32xf32>
    %cst_13 = arith.constant 0.000000e+00 : f32
    %31 = vector.broadcast %cst_13 : f32 to vector<128x32xf32>
    %32 = arith.maximumf %30, %31 : vector<128x32xf32>
    %33 = arith.truncf %32 : vector<128x32xf32> to vector<128x32xbf16>
    %34 = vector.shape_cast %33 : vector<128x32xbf16> to vector<2x8x8x32xbf16>
    %35 = vector.shape_cast %34 : vector<2x8x8x32xbf16> to vector<2x4x2x8x32xbf16>
    %36 = vector.extract_strided_slice %35 {offsets = [0, 0, 0, 0, 0], sizes = [2, 4, 1, 8, 32], strides = [1, 1, 1, 1, 1]} : vector<2x4x2x8x32xbf16> to vector<2x4x1x8x32xbf16>
    %37 = vector.shape_cast %36 : vector<2x4x1x8x32xbf16> to vector<2x4x8x32xbf16>
    %38 = vector.shape_cast %37 : vector<2x4x8x32xbf16> to vector<2x4x4x2x32xbf16>
    %39 = vector.extract_strided_slice %38 {offsets = [0, 0, 0, 0, 0], sizes = [2, 4, 4, 1, 32], strides = [1, 1, 1, 1, 1]} : vector<2x4x4x2x32xbf16> to vector<2x4x4x1x32xbf16>
    %40 = vector.shape_cast %39 : vector<2x4x4x1x32xbf16> to vector<2x4x4x32xbf16>
    %41 = vector.extract_strided_slice %38 {offsets = [0, 0, 0, 1, 0], sizes = [2, 4, 4, 1, 32], strides = [1, 1, 1, 1, 1]} : vector<2x4x4x2x32xbf16> to vector<2x4x4x1x32xbf16>
    %42 = vector.shape_cast %41 : vector<2x4x4x1x32xbf16> to vector<2x4x4x32xbf16>
    %43 = vector.extract_strided_slice %35 {offsets = [0, 0, 1, 0, 0], sizes = [2, 4, 1, 8, 32], strides = [1, 1, 1, 1, 1]} : vector<2x4x2x8x32xbf16> to vector<2x4x1x8x32xbf16>
    %44 = vector.shape_cast %43 : vector<2x4x1x8x32xbf16> to vector<2x4x8x32xbf16>
    %45 = vector.shape_cast %44 : vector<2x4x8x32xbf16> to vector<2x4x4x2x32xbf16>
    %46 = vector.extract_strided_slice %45 {offsets = [0, 0, 0, 0, 0], sizes = [2, 4, 4, 1, 32], strides = [1, 1, 1, 1, 1]} : vector<2x4x4x2x32xbf16> to vector<2x4x4x1x32xbf16>
    %47 = vector.shape_cast %46 : vector<2x4x4x1x32xbf16> to vector<2x4x4x32xbf16>
    %48 = vector.extract_strided_slice %45 {offsets = [0, 0, 0, 1, 0], sizes = [2, 4, 4, 1, 32], strides = [1, 1, 1, 1, 1]} : vector<2x4x4x2x32xbf16> to vector<2x4x4x1x32xbf16>
    %49 = vector.shape_cast %48 : vector<2x4x4x1x32xbf16> to vector<2x4x4x32xbf16>
    %c0_14 = arith.constant 0 : index
    %c0_15 = arith.constant 0 : index
    %c0_16 = arith.constant 0 : index
    %c0_17 = arith.constant 0 : index
    %50 = vector.load %arg4[%c0_14, %c0_15, %c0_16, %c0_17] : memref<4x4x32x64xbf16, #tpu.memory_space<vmem>>, vector<4x4x32x64xbf16>
    %cst_18 = arith.constant 0.000000e+00 : f32
    %51 = vector.broadcast %cst_18 : f32 to vector<18x64xf32>
    %52 = vector.extract_strided_slice %40 {offsets = [0, 0, 0, 0], sizes = [2, 3, 3, 32], strides = [1, 1, 1, 1]} : vector<2x4x4x32xbf16> to vector<2x3x3x32xbf16>
    %53 = vector.shape_cast %52 : vector<2x3x3x32xbf16> to vector<18x32xbf16>
    %54 = vector.extract_strided_slice %50 {offsets = [0, 0, 0, 0], sizes = [1, 1, 32, 64], strides = [1, 1, 1, 1]} : vector<4x4x32x64xbf16> to vector<1x1x32x64xbf16>
    %55 = vector.shape_cast %54 : vector<1x1x32x64xbf16> to vector<32x64xbf16>
    %cst_19 = arith.constant dense<0.000000e+00> : vector<18x64xf32>
    %56 = tpu.matmul %53, %55, %cst_19 {dimension_numbers = #tpu.dot_dimension_numbers<[1], [0], [0], [1], [0, 0, 1, 1], [], []>} : vector<18x32xbf16>, vector<32x64xbf16>, vector<18x64xf32> -> vector<18x64xf32>
    %57 = arith.addf %51, %56 : vector<18x64xf32>
    %58 = vector.extract_strided_slice %42 {offsets = [0, 0, 0, 0], sizes = [2, 3, 3, 32], strides = [1, 1, 1, 1]} : vector<2x4x4x32xbf16> to vector<2x3x3x32xbf16>
    %59 = vector.shape_cast %58 : vector<2x3x3x32xbf16> to vector<18x32xbf16>
    %60 = vector.extract_strided_slice %50 {offsets = [0, 1, 0, 0], sizes = [1, 1, 32, 64], strides = [1, 1, 1, 1]} : vector<4x4x32x64xbf16> to vector<1x1x32x64xbf16>
    %61 = vector.shape_cast %60 : vector<1x1x32x64xbf16> to vector<32x64xbf16>
    %cst_20 = arith.constant dense<0.000000e+00> : vector<18x64xf32>
    %62 = tpu.matmul %59, %61, %cst_20 {dimension_numbers = #tpu.dot_dimension_numbers<[1], [0], [0], [1], [0, 0, 1, 1], [], []>} : vector<18x32xbf16>, vector<32x64xbf16>, vector<18x64xf32> -> vector<18x64xf32>
    %63 = arith.addf %57, %62 : vector<18x64xf32>
    %64 = vector.extract_strided_slice %40 {offsets = [0, 0, 1, 0], sizes = [2, 3, 3, 32], strides = [1, 1, 1, 1]} : vector<2x4x4x32xbf16> to vector<2x3x3x32xbf16>
    %65 = vector.shape_cast %64 : vector<2x3x3x32xbf16> to vector<18x32xbf16>
    %66 = vector.extract_strided_slice %50 {offsets = [0, 2, 0, 0], sizes = [1, 1, 32, 64], strides = [1, 1, 1, 1]} : vector<4x4x32x64xbf16> to vector<1x1x32x64xbf16>
    %67 = vector.shape_cast %66 : vector<1x1x32x64xbf16> to vector<32x64xbf16>
    %cst_21 = arith.constant dense<0.000000e+00> : vector<18x64xf32>
    %68 = tpu.matmul %65, %67, %cst_21 {dimension_numbers = #tpu.dot_dimension_numbers<[1], [0], [0], [1], [0, 0, 1, 1], [], []>} : vector<18x32xbf16>, vector<32x64xbf16>, vector<18x64xf32> -> vector<18x64xf32>
    %69 = arith.addf %63, %68 : vector<18x64xf32>
    %70 = vector.extract_strided_slice %42 {offsets = [0, 0, 1, 0], sizes = [2, 3, 3, 32], strides = [1, 1, 1, 1]} : vector<2x4x4x32xbf16> to vector<2x3x3x32xbf16>
    %71 = vector.shape_cast %70 : vector<2x3x3x32xbf16> to vector<18x32xbf16>
    %72 = vector.extract_strided_slice %50 {offsets = [0, 3, 0, 0], sizes = [1, 1, 32, 64], strides = [1, 1, 1, 1]} : vector<4x4x32x64xbf16> to vector<1x1x32x64xbf16>
    %73 = vector.shape_cast %72 : vector<1x1x32x64xbf16> to vector<32x64xbf16>
    %cst_22 = arith.constant dense<0.000000e+00> : vector<18x64xf32>
    %74 = tpu.matmul %71, %73, %cst_22 {dimension_numbers = #tpu.dot_dimension_numbers<[1], [0], [0], [1], [0, 0, 1, 1], [], []>} : vector<18x32xbf16>, vector<32x64xbf16>, vector<18x64xf32> -> vector<18x64xf32>
    %75 = arith.addf %69, %74 : vector<18x64xf32>
    %76 = vector.extract_strided_slice %47 {offsets = [0, 0, 0, 0], sizes = [2, 3, 3, 32], strides = [1, 1, 1, 1]} : vector<2x4x4x32xbf16> to vector<2x3x3x32xbf16>
    %77 = vector.shape_cast %76 : vector<2x3x3x32xbf16> to vector<18x32xbf16>
    %78 = vector.extract_strided_slice %50 {offsets = [1, 0, 0, 0], sizes = [1, 1, 32, 64], strides = [1, 1, 1, 1]} : vector<4x4x32x64xbf16> to vector<1x1x32x64xbf16>
    %79 = vector.shape_cast %78 : vector<1x1x32x64xbf16> to vector<32x64xbf16>
    %cst_23 = arith.constant dense<0.000000e+00> : vector<18x64xf32>
    %80 = tpu.matmul %77, %79, %cst_23 {dimension_numbers = #tpu.dot_dimension_numbers<[1], [0], [0], [1], [0, 0, 1, 1], [], []>} : vector<18x32xbf16>, vector<32x64xbf16>, vector<18x64xf32> -> vector<18x64xf32>
    %81 = arith.addf %75, %80 : vector<18x64xf32>
    %82 = vector.extract_strided_slice %49 {offsets = [0, 0, 0, 0], sizes = [2, 3, 3, 32], strides = [1, 1, 1, 1]} : vector<2x4x4x32xbf16> to vector<2x3x3x32xbf16>
    %83 = vector.shape_cast %82 : vector<2x3x3x32xbf16> to vector<18x32xbf16>
    %84 = vector.extract_strided_slice %50 {offsets = [1, 1, 0, 0], sizes = [1, 1, 32, 64], strides = [1, 1, 1, 1]} : vector<4x4x32x64xbf16> to vector<1x1x32x64xbf16>
    %85 = vector.shape_cast %84 : vector<1x1x32x64xbf16> to vector<32x64xbf16>
    %cst_24 = arith.constant dense<0.000000e+00> : vector<18x64xf32>
    %86 = tpu.matmul %83, %85, %cst_24 {dimension_numbers = #tpu.dot_dimension_numbers<[1], [0], [0], [1], [0, 0, 1, 1], [], []>} : vector<18x32xbf16>, vector<32x64xbf16>, vector<18x64xf32> -> vector<18x64xf32>
    %87 = arith.addf %81, %86 : vector<18x64xf32>
    %88 = vector.extract_strided_slice %47 {offsets = [0, 0, 1, 0], sizes = [2, 3, 3, 32], strides = [1, 1, 1, 1]} : vector<2x4x4x32xbf16> to vector<2x3x3x32xbf16>
    %89 = vector.shape_cast %88 : vector<2x3x3x32xbf16> to vector<18x32xbf16>
    %90 = vector.extract_strided_slice %50 {offsets = [1, 2, 0, 0], sizes = [1, 1, 32, 64], strides = [1, 1, 1, 1]} : vector<4x4x32x64xbf16> to vector<1x1x32x64xbf16>
    %91 = vector.shape_cast %90 : vector<1x1x32x64xbf16> to vector<32x64xbf16>
    %cst_25 = arith.constant dense<0.000000e+00> : vector<18x64xf32>
    %92 = tpu.matmul %89, %91, %cst_25 {dimension_numbers = #tpu.dot_dimension_numbers<[1], [0], [0], [1], [0, 0, 1, 1], [], []>} : vector<18x32xbf16>, vector<32x64xbf16>, vector<18x64xf32> -> vector<18x64xf32>
    %93 = arith.addf %87, %92 : vector<18x64xf32>
    %94 = vector.extract_strided_slice %49 {offsets = [0, 0, 1, 0], sizes = [2, 3, 3, 32], strides = [1, 1, 1, 1]} : vector<2x4x4x32xbf16> to vector<2x3x3x32xbf16>
    %95 = vector.shape_cast %94 : vector<2x3x3x32xbf16> to vector<18x32xbf16>
    %96 = vector.extract_strided_slice %50 {offsets = [1, 3, 0, 0], sizes = [1, 1, 32, 64], strides = [1, 1, 1, 1]} : vector<4x4x32x64xbf16> to vector<1x1x32x64xbf16>
    %97 = vector.shape_cast %96 : vector<1x1x32x64xbf16> to vector<32x64xbf16>
    %cst_26 = arith.constant dense<0.000000e+00> : vector<18x64xf32>
    %98 = tpu.matmul %95, %97, %cst_26 {dimension_numbers = #tpu.dot_dimension_numbers<[1], [0], [0], [1], [0, 0, 1, 1], [], []>} : vector<18x32xbf16>, vector<32x64xbf16>, vector<18x64xf32> -> vector<18x64xf32>
    %99 = arith.addf %93, %98 : vector<18x64xf32>
    %100 = vector.extract_strided_slice %40 {offsets = [0, 1, 0, 0], sizes = [2, 3, 3, 32], strides = [1, 1, 1, 1]} : vector<2x4x4x32xbf16> to vector<2x3x3x32xbf16>
    %101 = vector.shape_cast %100 : vector<2x3x3x32xbf16> to vector<18x32xbf16>
    %102 = vector.extract_strided_slice %50 {offsets = [2, 0, 0, 0], sizes = [1, 1, 32, 64], strides = [1, 1, 1, 1]} : vector<4x4x32x64xbf16> to vector<1x1x32x64xbf16>
    %103 = vector.shape_cast %102 : vector<1x1x32x64xbf16> to vector<32x64xbf16>
    %cst_27 = arith.constant dense<0.000000e+00> : vector<18x64xf32>
    %104 = tpu.matmul %101, %103, %cst_27 {dimension_numbers = #tpu.dot_dimension_numbers<[1], [0], [0], [1], [0, 0, 1, 1], [], []>} : vector<18x32xbf16>, vector<32x64xbf16>, vector<18x64xf32> -> vector<18x64xf32>
    %105 = arith.addf %99, %104 : vector<18x64xf32>
    %106 = vector.extract_strided_slice %42 {offsets = [0, 1, 0, 0], sizes = [2, 3, 3, 32], strides = [1, 1, 1, 1]} : vector<2x4x4x32xbf16> to vector<2x3x3x32xbf16>
    %107 = vector.shape_cast %106 : vector<2x3x3x32xbf16> to vector<18x32xbf16>
    %108 = vector.extract_strided_slice %50 {offsets = [2, 1, 0, 0], sizes = [1, 1, 32, 64], strides = [1, 1, 1, 1]} : vector<4x4x32x64xbf16> to vector<1x1x32x64xbf16>
    %109 = vector.shape_cast %108 : vector<1x1x32x64xbf16> to vector<32x64xbf16>
    %cst_28 = arith.constant dense<0.000000e+00> : vector<18x64xf32>
    %110 = tpu.matmul %107, %109, %cst_28 {dimension_numbers = #tpu.dot_dimension_numbers<[1], [0], [0], [1], [0, 0, 1, 1], [], []>} : vector<18x32xbf16>, vector<32x64xbf16>, vector<18x64xf32> -> vector<18x64xf32>
    %111 = arith.addf %105, %110 : vector<18x64xf32>
    %112 = vector.extract_strided_slice %40 {offsets = [0, 1, 1, 0], sizes = [2, 3, 3, 32], strides = [1, 1, 1, 1]} : vector<2x4x4x32xbf16> to vector<2x3x3x32xbf16>
    %113 = vector.shape_cast %112 : vector<2x3x3x32xbf16> to vector<18x32xbf16>
    %114 = vector.extract_strided_slice %50 {offsets = [2, 2, 0, 0], sizes = [1, 1, 32, 64], strides = [1, 1, 1, 1]} : vector<4x4x32x64xbf16> to vector<1x1x32x64xbf16>
    %115 = vector.shape_cast %114 : vector<1x1x32x64xbf16> to vector<32x64xbf16>
    %cst_29 = arith.constant dense<0.000000e+00> : vector<18x64xf32>
    %116 = tpu.matmul %113, %115, %cst_29 {dimension_numbers = #tpu.dot_dimension_numbers<[1], [0], [0], [1], [0, 0, 1, 1], [], []>} : vector<18x32xbf16>, vector<32x64xbf16>, vector<18x64xf32> -> vector<18x64xf32>
    %117 = arith.addf %111, %116 : vector<18x64xf32>
    %118 = vector.extract_strided_slice %42 {offsets = [0, 1, 1, 0], sizes = [2, 3, 3, 32], strides = [1, 1, 1, 1]} : vector<2x4x4x32xbf16> to vector<2x3x3x32xbf16>
    %119 = vector.shape_cast %118 : vector<2x3x3x32xbf16> to vector<18x32xbf16>
    %120 = vector.extract_strided_slice %50 {offsets = [2, 3, 0, 0], sizes = [1, 1, 32, 64], strides = [1, 1, 1, 1]} : vector<4x4x32x64xbf16> to vector<1x1x32x64xbf16>
    %121 = vector.shape_cast %120 : vector<1x1x32x64xbf16> to vector<32x64xbf16>
    %cst_30 = arith.constant dense<0.000000e+00> : vector<18x64xf32>
    %122 = tpu.matmul %119, %121, %cst_30 {dimension_numbers = #tpu.dot_dimension_numbers<[1], [0], [0], [1], [0, 0, 1, 1], [], []>} : vector<18x32xbf16>, vector<32x64xbf16>, vector<18x64xf32> -> vector<18x64xf32>
    %123 = arith.addf %117, %122 : vector<18x64xf32>
    %124 = vector.extract_strided_slice %47 {offsets = [0, 1, 0, 0], sizes = [2, 3, 3, 32], strides = [1, 1, 1, 1]} : vector<2x4x4x32xbf16> to vector<2x3x3x32xbf16>
    %125 = vector.shape_cast %124 : vector<2x3x3x32xbf16> to vector<18x32xbf16>
    %126 = vector.extract_strided_slice %50 {offsets = [3, 0, 0, 0], sizes = [1, 1, 32, 64], strides = [1, 1, 1, 1]} : vector<4x4x32x64xbf16> to vector<1x1x32x64xbf16>
    %127 = vector.shape_cast %126 : vector<1x1x32x64xbf16> to vector<32x64xbf16>
    %cst_31 = arith.constant dense<0.000000e+00> : vector<18x64xf32>
    %128 = tpu.matmul %125, %127, %cst_31 {dimension_numbers = #tpu.dot_dimension_numbers<[1], [0], [0], [1], [0, 0, 1, 1], [], []>} : vector<18x32xbf16>, vector<32x64xbf16>, vector<18x64xf32> -> vector<18x64xf32>
    %129 = arith.addf %123, %128 : vector<18x64xf32>
    %130 = vector.extract_strided_slice %49 {offsets = [0, 1, 0, 0], sizes = [2, 3, 3, 32], strides = [1, 1, 1, 1]} : vector<2x4x4x32xbf16> to vector<2x3x3x32xbf16>
    %131 = vector.shape_cast %130 : vector<2x3x3x32xbf16> to vector<18x32xbf16>
    %132 = vector.extract_strided_slice %50 {offsets = [3, 1, 0, 0], sizes = [1, 1, 32, 64], strides = [1, 1, 1, 1]} : vector<4x4x32x64xbf16> to vector<1x1x32x64xbf16>
    %133 = vector.shape_cast %132 : vector<1x1x32x64xbf16> to vector<32x64xbf16>
    %cst_32 = arith.constant dense<0.000000e+00> : vector<18x64xf32>
    %134 = tpu.matmul %131, %133, %cst_32 {dimension_numbers = #tpu.dot_dimension_numbers<[1], [0], [0], [1], [0, 0, 1, 1], [], []>} : vector<18x32xbf16>, vector<32x64xbf16>, vector<18x64xf32> -> vector<18x64xf32>
    %135 = arith.addf %129, %134 : vector<18x64xf32>
    %136 = vector.extract_strided_slice %47 {offsets = [0, 1, 1, 0], sizes = [2, 3, 3, 32], strides = [1, 1, 1, 1]} : vector<2x4x4x32xbf16> to vector<2x3x3x32xbf16>
    %137 = vector.shape_cast %136 : vector<2x3x3x32xbf16> to vector<18x32xbf16>
    %138 = vector.extract_strided_slice %50 {offsets = [3, 2, 0, 0], sizes = [1, 1, 32, 64], strides = [1, 1, 1, 1]} : vector<4x4x32x64xbf16> to vector<1x1x32x64xbf16>
    %139 = vector.shape_cast %138 : vector<1x1x32x64xbf16> to vector<32x64xbf16>
    %cst_33 = arith.constant dense<0.000000e+00> : vector<18x64xf32>
    %140 = tpu.matmul %137, %139, %cst_33 {dimension_numbers = #tpu.dot_dimension_numbers<[1], [0], [0], [1], [0, 0, 1, 1], [], []>} : vector<18x32xbf16>, vector<32x64xbf16>, vector<18x64xf32> -> vector<18x64xf32>
    %141 = arith.addf %135, %140 : vector<18x64xf32>
    %142 = vector.extract_strided_slice %49 {offsets = [0, 1, 1, 0], sizes = [2, 3, 3, 32], strides = [1, 1, 1, 1]} : vector<2x4x4x32xbf16> to vector<2x3x3x32xbf16>
    %143 = vector.shape_cast %142 : vector<2x3x3x32xbf16> to vector<18x32xbf16>
    %144 = vector.extract_strided_slice %50 {offsets = [3, 3, 0, 0], sizes = [1, 1, 32, 64], strides = [1, 1, 1, 1]} : vector<4x4x32x64xbf16> to vector<1x1x32x64xbf16>
    %145 = vector.shape_cast %144 : vector<1x1x32x64xbf16> to vector<32x64xbf16>
    %cst_34 = arith.constant dense<0.000000e+00> : vector<18x64xf32>
    %146 = tpu.matmul %143, %145, %cst_34 {dimension_numbers = #tpu.dot_dimension_numbers<[1], [0], [0], [1], [0, 0, 1, 1], [], []>} : vector<18x32xbf16>, vector<32x64xbf16>, vector<18x64xf32> -> vector<18x64xf32>
    %147 = arith.addf %141, %146 : vector<18x64xf32>
    %c0_35 = arith.constant 0 : index
    %c0_36 = arith.constant 0 : index
    %148 = vector.load %arg5[%c0_35, %c0_36] : memref<1x64xf32, #tpu.memory_space<vmem>>, vector<1x64xf32>
    %149 = vector.broadcast %148 : vector<1x64xf32> to vector<18x64xf32>
    %150 = arith.addf %147, %149 : vector<18x64xf32>
    %cst_37 = arith.constant 0.000000e+00 : f32
    %151 = vector.broadcast %cst_37 : f32 to vector<18x64xf32>
    %152 = arith.maximumf %150, %151 : vector<18x64xf32>
    %153 = arith.truncf %152 : vector<18x64xf32> to vector<18x64xbf16>
    %c0_38 = arith.constant 0 : index
    %c0_39 = arith.constant 0 : index
    %c0_40 = arith.constant 0 : index
    %c0_41 = arith.constant 0 : index
    %154 = vector.load %arg6[%c0_38, %c0_39, %c0_40, %c0_41] : memref<2x2x64x64xbf16, #tpu.memory_space<vmem>>, vector<2x2x64x64xbf16>
    %155 = vector.shape_cast %153 : vector<18x64xbf16> to vector<2x3x3x64xbf16>
    %cst_42 = arith.constant 0.000000e+00 : f32
    %156 = vector.broadcast %cst_42 : f32 to vector<8x64xf32>
    %157 = vector.extract_strided_slice %155 {offsets = [0, 0, 0, 0], sizes = [2, 2, 2, 64], strides = [1, 1, 1, 1]} : vector<2x3x3x64xbf16> to vector<2x2x2x64xbf16>
    %158 = vector.shape_cast %157 : vector<2x2x2x64xbf16> to vector<8x64xbf16>
    %159 = vector.extract_strided_slice %154 {offsets = [0, 0, 0, 0], sizes = [1, 1, 64, 64], strides = [1, 1, 1, 1]} : vector<2x2x64x64xbf16> to vector<1x1x64x64xbf16>
    %160 = vector.shape_cast %159 : vector<1x1x64x64xbf16> to vector<64x64xbf16>
    %cst_43 = arith.constant dense<0.000000e+00> : vector<8x64xf32>
    %161 = tpu.matmul %158, %160, %cst_43 {dimension_numbers = #tpu.dot_dimension_numbers<[1], [0], [0], [1], [0, 0, 1, 1], [], []>} : vector<8x64xbf16>, vector<64x64xbf16>, vector<8x64xf32> -> vector<8x64xf32>
    %162 = arith.addf %156, %161 : vector<8x64xf32>
    %163 = vector.extract_strided_slice %155 {offsets = [0, 0, 1, 0], sizes = [2, 2, 2, 64], strides = [1, 1, 1, 1]} : vector<2x3x3x64xbf16> to vector<2x2x2x64xbf16>
    %164 = vector.shape_cast %163 : vector<2x2x2x64xbf16> to vector<8x64xbf16>
    %165 = vector.extract_strided_slice %154 {offsets = [0, 1, 0, 0], sizes = [1, 1, 64, 64], strides = [1, 1, 1, 1]} : vector<2x2x64x64xbf16> to vector<1x1x64x64xbf16>
    %166 = vector.shape_cast %165 : vector<1x1x64x64xbf16> to vector<64x64xbf16>
    %cst_44 = arith.constant dense<0.000000e+00> : vector<8x64xf32>
    %167 = tpu.matmul %164, %166, %cst_44 {dimension_numbers = #tpu.dot_dimension_numbers<[1], [0], [0], [1], [0, 0, 1, 1], [], []>} : vector<8x64xbf16>, vector<64x64xbf16>, vector<8x64xf32> -> vector<8x64xf32>
    %168 = arith.addf %162, %167 : vector<8x64xf32>
    %169 = vector.extract_strided_slice %155 {offsets = [0, 1, 0, 0], sizes = [2, 2, 2, 64], strides = [1, 1, 1, 1]} : vector<2x3x3x64xbf16> to vector<2x2x2x64xbf16>
    %170 = vector.shape_cast %169 : vector<2x2x2x64xbf16> to vector<8x64xbf16>
    %171 = vector.extract_strided_slice %154 {offsets = [1, 0, 0, 0], sizes = [1, 1, 64, 64], strides = [1, 1, 1, 1]} : vector<2x2x64x64xbf16> to vector<1x1x64x64xbf16>
    %172 = vector.shape_cast %171 : vector<1x1x64x64xbf16> to vector<64x64xbf16>
    %cst_45 = arith.constant dense<0.000000e+00> : vector<8x64xf32>
    %173 = tpu.matmul %170, %172, %cst_45 {dimension_numbers = #tpu.dot_dimension_numbers<[1], [0], [0], [1], [0, 0, 1, 1], [], []>} : vector<8x64xbf16>, vector<64x64xbf16>, vector<8x64xf32> -> vector<8x64xf32>
    %174 = arith.addf %168, %173 : vector<8x64xf32>
    %175 = vector.extract_strided_slice %155 {offsets = [0, 1, 1, 0], sizes = [2, 2, 2, 64], strides = [1, 1, 1, 1]} : vector<2x3x3x64xbf16> to vector<2x2x2x64xbf16>
    %176 = vector.shape_cast %175 : vector<2x2x2x64xbf16> to vector<8x64xbf16>
    %177 = vector.extract_strided_slice %154 {offsets = [1, 1, 0, 0], sizes = [1, 1, 64, 64], strides = [1, 1, 1, 1]} : vector<2x2x64x64xbf16> to vector<1x1x64x64xbf16>
    %178 = vector.shape_cast %177 : vector<1x1x64x64xbf16> to vector<64x64xbf16>
    %cst_46 = arith.constant dense<0.000000e+00> : vector<8x64xf32>
    %179 = tpu.matmul %176, %178, %cst_46 {dimension_numbers = #tpu.dot_dimension_numbers<[1], [0], [0], [1], [0, 0, 1, 1], [], []>} : vector<8x64xbf16>, vector<64x64xbf16>, vector<8x64xf32> -> vector<8x64xf32>
    %180 = arith.addf %174, %179 : vector<8x64xf32>
    %c0_47 = arith.constant 0 : index
    %c0_48 = arith.constant 0 : index
    %181 = vector.load %arg7[%c0_47, %c0_48] : memref<1x64xf32, #tpu.memory_space<vmem>>, vector<1x64xf32>
    %182 = vector.broadcast %181 : vector<1x64xf32> to vector<8x64xf32>
    %183 = arith.addf %180, %182 : vector<8x64xf32>
    %cst_49 = arith.constant 0.000000e+00 : f32
    %184 = vector.broadcast %cst_49 : f32 to vector<8x64xf32>
    %185 = arith.maximumf %183, %184 : vector<8x64xf32>
    %186 = arith.truncf %185 : vector<8x64xf32> to vector<8x64xbf16>
    %c0_50 = arith.constant 0 : index
    %c0_51 = arith.constant 0 : index
    %c0_52 = arith.constant 0 : index
    %187 = vector.load %arg8[%c0_50, %c0_51, %c0_52] : memref<4x64x512xbf16, #tpu.memory_space<vmem>>, vector<4x64x512xbf16>
    %188 = vector.shape_cast %186 : vector<8x64xbf16> to vector<2x4x64xbf16>
    %cst_53 = arith.constant 0.000000e+00 : f32
    %189 = vector.broadcast %cst_53 : f32 to vector<2x512xf32>
    %190 = vector.extract_strided_slice %188 {offsets = [0, 0, 0], sizes = [2, 1, 64], strides = [1, 1, 1]} : vector<2x4x64xbf16> to vector<2x1x64xbf16>
    %191 = vector.shape_cast %190 : vector<2x1x64xbf16> to vector<2x64xbf16>
    %192 = vector.extract_strided_slice %187 {offsets = [0, 0, 0], sizes = [1, 64, 512], strides = [1, 1, 1]} : vector<4x64x512xbf16> to vector<1x64x512xbf16>
    %193 = vector.shape_cast %192 : vector<1x64x512xbf16> to vector<64x512xbf16>
    %cst_54 = arith.constant dense<0.000000e+00> : vector<2x512xf32>
    %194 = tpu.matmul %191, %193, %cst_54 {dimension_numbers = #tpu.dot_dimension_numbers<[1], [0], [0], [1], [0, 0, 1, 1], [], []>} : vector<2x64xbf16>, vector<64x512xbf16>, vector<2x512xf32> -> vector<2x512xf32>
    %195 = arith.addf %189, %194 : vector<2x512xf32>
    %196 = vector.extract_strided_slice %188 {offsets = [0, 1, 0], sizes = [2, 1, 64], strides = [1, 1, 1]} : vector<2x4x64xbf16> to vector<2x1x64xbf16>
    %197 = vector.shape_cast %196 : vector<2x1x64xbf16> to vector<2x64xbf16>
    %198 = vector.extract_strided_slice %187 {offsets = [1, 0, 0], sizes = [1, 64, 512], strides = [1, 1, 1]} : vector<4x64x512xbf16> to vector<1x64x512xbf16>
    %199 = vector.shape_cast %198 : vector<1x64x512xbf16> to vector<64x512xbf16>
    %cst_55 = arith.constant dense<0.000000e+00> : vector<2x512xf32>
    %200 = tpu.matmul %197, %199, %cst_55 {dimension_numbers = #tpu.dot_dimension_numbers<[1], [0], [0], [1], [0, 0, 1, 1], [], []>} : vector<2x64xbf16>, vector<64x512xbf16>, vector<2x512xf32> -> vector<2x512xf32>
    %201 = arith.addf %195, %200 : vector<2x512xf32>
    %202 = vector.extract_strided_slice %188 {offsets = [0, 2, 0], sizes = [2, 1, 64], strides = [1, 1, 1]} : vector<2x4x64xbf16> to vector<2x1x64xbf16>
    %203 = vector.shape_cast %202 : vector<2x1x64xbf16> to vector<2x64xbf16>
    %204 = vector.extract_strided_slice %187 {offsets = [2, 0, 0], sizes = [1, 64, 512], strides = [1, 1, 1]} : vector<4x64x512xbf16> to vector<1x64x512xbf16>
    %205 = vector.shape_cast %204 : vector<1x64x512xbf16> to vector<64x512xbf16>
    %cst_56 = arith.constant dense<0.000000e+00> : vector<2x512xf32>
    %206 = tpu.matmul %203, %205, %cst_56 {dimension_numbers = #tpu.dot_dimension_numbers<[1], [0], [0], [1], [0, 0, 1, 1], [], []>} : vector<2x64xbf16>, vector<64x512xbf16>, vector<2x512xf32> -> vector<2x512xf32>
    %207 = arith.addf %201, %206 : vector<2x512xf32>
    %208 = vector.extract_strided_slice %188 {offsets = [0, 3, 0], sizes = [2, 1, 64], strides = [1, 1, 1]} : vector<2x4x64xbf16> to vector<2x1x64xbf16>
    %209 = vector.shape_cast %208 : vector<2x1x64xbf16> to vector<2x64xbf16>
    %210 = vector.extract_strided_slice %187 {offsets = [3, 0, 0], sizes = [1, 64, 512], strides = [1, 1, 1]} : vector<4x64x512xbf16> to vector<1x64x512xbf16>
    %211 = vector.shape_cast %210 : vector<1x64x512xbf16> to vector<64x512xbf16>
    %cst_57 = arith.constant dense<0.000000e+00> : vector<2x512xf32>
    %212 = tpu.matmul %209, %211, %cst_57 {dimension_numbers = #tpu.dot_dimension_numbers<[1], [0], [0], [1], [0, 0, 1, 1], [], []>} : vector<2x64xbf16>, vector<64x512xbf16>, vector<2x512xf32> -> vector<2x512xf32>
    %213 = arith.addf %207, %212 : vector<2x512xf32>
    %c0_58 = arith.constant 0 : index
    %c0_59 = arith.constant 0 : index
    %214 = vector.load %arg9[%c0_58, %c0_59] : memref<1x512xf32, #tpu.memory_space<vmem>>, vector<1x512xf32>
    %215 = vector.broadcast %214 : vector<1x512xf32> to vector<2x512xf32>
    %216 = arith.addf %213, %215 : vector<2x512xf32>
    %cst_60 = arith.constant 0.000000e+00 : f32
    %217 = vector.broadcast %cst_60 : f32 to vector<2x512xf32>
    %218 = arith.maximumf %216, %217 : vector<2x512xf32>
    %219 = arith.truncf %218 : vector<2x512xf32> to vector<2x512xbf16>
    %c0_61 = arith.constant 0 : index
    %c0_62 = arith.constant 0 : index
    %220 = vector.load %arg10[%c0_61, %c0_62] : memref<512x128xbf16, #tpu.memory_space<vmem>>, vector<512x128xbf16>
    %cst_63 = arith.constant dense<0.000000e+00> : vector<2x128xf32>
    %221 = tpu.matmul %219, %220, %cst_63 {dimension_numbers = #tpu.dot_dimension_numbers<[1], [0], [0], [1], [0, 0, 1, 1], [], []>} : vector<2x512xbf16>, vector<512x128xbf16>, vector<2x128xf32> -> vector<2x128xf32>
    %c0_64 = arith.constant 0 : index
    %c0_65 = arith.constant 0 : index
    %222 = vector.load %arg11[%c0_64, %c0_65] : memref<1x128xf32, #tpu.memory_space<vmem>>, vector<1x128xf32>
    %223 = vector.broadcast %222 : vector<1x128xf32> to vector<2x128xf32>
    %224 = arith.addf %221, %223 : vector<2x128xf32>
    %c0_66 = arith.constant 0 : index
    %c0_67 = arith.constant 0 : index
    %225 = vector.load %arg12[%c0_66, %c0_67] : memref<2x128xf32, #tpu.memory_space<vmem>>, vector<2x128xf32>
    tpu.vector_store %arg12[%c0_66, %c0_67], %224 {strides = array<i32>} : memref<2x128xf32, #tpu.memory_space<vmem>>, vector<2x128xf32>,
    return
  }
  func.func @transform_0(%arg0: i32) -> (i32, i32, i32, i32) {
    %c0_i32 = arith.constant 0 : i32
    %c0_i32_0 = arith.constant 0 : i32
    %c0_i32_1 = arith.constant 0 : i32
    %c0_i32_2 = arith.constant 0 : i32
    return %arg0, %c0_i32, %c0_i32_0, %c0_i32_1 : i32, i32, i32, i32
  }
  func.func @transform_1(%arg0: i32) -> (i32, i32, i32, i32) {
    %c0_i32 = arith.constant 0 : i32
    %c0_i32_0 = arith.constant 0 : i32
    %c0_i32_1 = arith.constant 0 : i32
    %c0_i32_2 = arith.constant 0 : i32
    %c0_i32_3 = arith.constant 0 : i32
    return %c0_i32, %c0_i32_0, %c0_i32_1, %c0_i32_2 : i32, i32, i32, i32
  }
  func.func @transform_2(%arg0: i32) -> (i32, i32) {
    %c0_i32 = arith.constant 0 : i32
    %c0_i32_0 = arith.constant 0 : i32
    %c0_i32_1 = arith.constant 0 : i32
    return %c0_i32, %c0_i32_0 : i32, i32
  }
  func.func @transform_3(%arg0: i32) -> (i32, i32, i32, i32) {
    %c0_i32 = arith.constant 0 : i32
    %c0_i32_0 = arith.constant 0 : i32
    %c0_i32_1 = arith.constant 0 : i32
    %c0_i32_2 = arith.constant 0 : i32
    %c0_i32_3 = arith.constant 0 : i32
    return %c0_i32, %c0_i32_0, %c0_i32_1, %c0_i32_2 : i32, i32, i32, i32
  }
  func.func @transform_4(%arg0: i32) -> (i32, i32) {
    %c0_i32 = arith.constant 0 : i32
    %c0_i32_0 = arith.constant 0 : i32
    %c0_i32_1 = arith.constant 0 : i32
    return %c0_i32, %c0_i32_0 : i32, i32
  }
  func.func @transform_5(%arg0: i32) -> (i32, i32, i32, i32) {
    %c0_i32 = arith.constant 0 : i32
    %c0_i32_0 = arith.constant 0 : i32
    %c0_i32_1 = arith.constant 0 : i32
    %c0_i32_2 = arith.constant 0 : i32
    %c0_i32_3 = arith.constant 0 : i32
    return %c0_i32, %c0_i32_0, %c0_i32_1, %c0_i32_2 : i32, i32, i32, i32
  }
  func.func @transform_6(%arg0: i32) -> (i32, i32) {
    %c0_i32 = arith.constant 0 : i32
    %c0_i32_0 = arith.constant 0 : i32
    %c0_i32_1 = arith.constant 0 : i32
    return %c0_i32, %c0_i32_0 : i32, i32
  }
  func.func @transform_7(%arg0: i32) -> (i32, i32, i32) {
    %c0_i32 = arith.constant 0 : i32
    %c0_i32_0 = arith.constant 0 : i32
    %c0_i32_1 = arith.constant 0 : i32
    %c0_i32_2 = arith.constant 0 : i32
    return %c0_i32, %c0_i32_0, %c0_i32_1 : i32, i32, i32
  }
  func.func @transform_8(%arg0: i32) -> (i32, i32) {
    %c0_i32 = arith.constant 0 : i32
    %c0_i32_0 = arith.constant 0 : i32
    %c0_i32_1 = arith.constant 0 : i32
    return %c0_i32, %c0_i32_0 : i32, i32
  }
  func.func @transform_9(%arg0: i32) -> (i32, i32) {
    %c0_i32 = arith.constant 0 : i32
    %c0_i32_0 = arith.constant 0 : i32
    %c0_i32_1 = arith.constant 0 : i32
    return %c0_i32, %c0_i32_0 : i32, i32
  }
  func.func @transform_10(%arg0: i32) -> (i32, i32) {
    %c0_i32 = arith.constant 0 : i32
    %c0_i32_0 = arith.constant 0 : i32
    %c0_i32_1 = arith.constant 0 : i32
    return %c0_i32, %c0_i32_0 : i32, i32
  }
  func.func @transform_11(%arg0: i32) -> (i32, i32) {
    %c0_i32 = arith.constant 0 : i32
    %c0_i32_0 = arith.constant 0 : i32
    return %arg0, %c0_i32 : i32, i32
  }
}

</mosaic_0001>

<llo_original>
// kernel: network_forward.1
$region0: #{network_forward.1}
  #allocation0 [shape = 'u32[]', space=smem, size = 0x4, offset = 0x4, fixed_abs, tag = 'smem constant byte address 0x4 - core index']
  #allocation1 [shape = 'u32[144,128]{1,0:T(1,128)}', space=vmem, size = 0x12000, scoped, tag = 'internal scratch']
  %s0 = inlined_call_operand.vmem [shape: f32[2,9,9,64], index: 0, kind: input, shape index: {}]
  %s1 = inlined_call_operand.vmem [shape: bf16[2,2,64,32], index: 1, kind: input, shape index: {}]
  %s2 = inlined_call_operand.vmem [shape: f32[1,32], index: 2, kind: input, shape index: {}]
  %s3 = inlined_call_operand.vmem [shape: bf16[4,4,32,64], index: 3, kind: input, shape index: {}]
  %s4 = inlined_call_operand.vmem [shape: f32[1,64], index: 4, kind: input, shape index: {}]
  %s5 = inlined_call_operand.vmem [shape: bf16[2,2,64,64], index: 5, kind: input, shape index: {}]
  %s6 = inlined_call_operand.vmem [shape: f32[1,64], index: 6, kind: input, shape index: {}]
  %s7 = inlined_call_operand.vmem [shape: bf16[4,64,512], index: 7, kind: input, shape index: {}]
  %s8 = inlined_call_operand.vmem [shape: f32[1,512], index: 8, kind: input, shape index: {}]
  %s9 = inlined_call_operand.vmem [shape: bf16[512,128], index: 9, kind: input, shape index: {}]
  %s10 = inlined_call_operand.vmem [shape: f32[1,128], index: 10, kind: input, shape index: {}]
  %s11 = inlined_call_operand.hbm [shape: f32[2,128], index: 11, kind: output, shape index: {}]
  %s12 = sld [smem:[#allocation0]]
  $region54: #{network_forward.1} parent=0
    _
  %s14 = ssub.s32 1, %s12
  %s15 = scalar_select 0, %s14, %s12
  $region1: #{network_forward.1} parent=0
    #allocation2 [shape = 'u8[1024]{0}', space=vmem, size = 0x400, scoped, tag = 'output window, operand 0, single buffered']
    #allocation3 [shape = 's32[1]{0}', space=sflag, size = 0x4, scoped, tag = 'scoped memory for network_forward.1']
    %16 = vsyncpa [#allocation3], 0
    // Predicated region
    $region2: #{network_forward.1} parent=1 // pred_check
      _
    $region3: #{network_forward.1} parent=1 // pred_check_branch
      %18 = sbr.rel (0) target = $region5
    $region4: #{network_forward.1} parent=1 // pred_region
      _
    $region5: #{network_forward.1} parent=1 // pred_fallthru
      _
    // Predicated region
    $region6: #{network_forward.1} parent=1 // pred_check
      _
    $region7: #{network_forward.1} parent=1 // pred_check_branch
      %20 = sbr.rel (0) target = $region9
    $region8: #{network_forward.1} parent=1 // pred_region
      _
    $region9: #{network_forward.1} parent=1 // pred_fallthru
      _
    // Predicated region
    $region10: #{network_forward.1} parent=1 // pred_check
      _
    $region11: #{network_forward.1} parent=1 // pred_check_branch
      %22 = sbr.rel (0) target = $region13
    $region12: #{network_forward.1} parent=1 // pred_region
      _
    $region13: #{network_forward.1} parent=1 // pred_fallthru
      _
    // Predicated region
    $region14: #{network_forward.1} parent=1 // pred_check
      _
    $region15: #{network_forward.1} parent=1 // pred_check_branch
      %24 = sbr.rel (0) target = $region17
    $region16: #{network_forward.1} parent=1 // pred_region
      _
    $region17: #{network_forward.1} parent=1 // pred_fallthru
      _
    // Predicated region
    $region18: #{network_forward.1} parent=1 // pred_check
      _
    $region19: #{network_forward.1} parent=1 // pred_check_branch
      %26 = sbr.rel (0) target = $region21
    $region20: #{network_forward.1} parent=1 // pred_region
      _
    $region21: #{network_forward.1} parent=1 // pred_fallthru
      _
    // Predicated region
    $region22: #{network_forward.1} parent=1 // pred_check
      _
    $region23: #{network_forward.1} parent=1 // pred_check_branch
      %28 = sbr.rel (0) target = $region25
    $region24: #{network_forward.1} parent=1 // pred_region
      _
    $region25: #{network_forward.1} parent=1 // pred_fallthru
      _
    // Predicated region
    $region26: #{network_forward.1} parent=1 // pred_check
      _
    $region27: #{network_forward.1} parent=1 // pred_check_branch
      %30 = sbr.rel (0) target = $region29
    $region28: #{network_forward.1} parent=1 // pred_region
      _
    $region29: #{network_forward.1} parent=1 // pred_fallthru
      _
    // Predicated region
    $region30: #{network_forward.1} parent=1 // pred_check
      _
    $region31: #{network_forward.1} parent=1 // pred_check_branch
      %32 = sbr.rel (0) target = $region33
    $region32: #{network_forward.1} parent=1 // pred_region
      _
    $region33: #{network_forward.1} parent=1 // pred_fallthru
      _
    // Predicated region
    $region34: #{network_forward.1} parent=1 // pred_check
      _
    $region35: #{network_forward.1} parent=1 // pred_check_branch
      %34 = sbr.rel (0) target = $region37
    $region36: #{network_forward.1} parent=1 // pred_region
      _
    $region37: #{network_forward.1} parent=1 // pred_fallthru
      _
    // Predicated region
    $region38: #{network_forward.1} parent=1 // pred_check
      _
    $region39: #{network_forward.1} parent=1 // pred_check_branch
      %36 = sbr.rel (0) target = $region41
    $region40: #{network_forward.1} parent=1 // pred_region
      _
    $region41: #{network_forward.1} parent=1 // pred_fallthru
      _
    // Predicated region
    $region42: #{network_forward.1} parent=1 // pred_check
      _
    $region43: #{network_forward.1} parent=1 // pred_check_branch
      %38 = sbr.rel (0) target = $region45
    $region44: #{network_forward.1} parent=1 // pred_region
      _
    $region45: #{network_forward.1} parent=1 // pred_fallthru
      _
    %v40 = vld [vmem:[%s0] sm:$0xff]
    %v41 = vld [vmem:[%s0 + $0x8] sm:$0x1]
    %v42 = vld [vmem:[%s0 + $0x10] sm:$0xff]
    %v43 = vld [vmem:[%s0 + $0x18] sm:$0x1]
    %v44 = vld [vmem:[%s0 + $0x20] sm:$0xff]
    %v45 = vld [vmem:[%s0 + $0x28] sm:$0x1]
    %v46 = vld [vmem:[%s0 + $0x30] sm:$0xff]
    %v47 = vld [vmem:[%s0 + $0x38] sm:$0x1]
    %v48 = vld [vmem:[%s0 + $0x40] sm:$0xff]
    %v49 = vld [vmem:[%s0 + $0x48] sm:$0x1]
    %v50 = vld [vmem:[%s0 + $0x50] sm:$0xff]
    %v51 = vld [vmem:[%s0 + $0x58] sm:$0x1]
    %v52 = vld [vmem:[%s0 + $0x60] sm:$0xff]
    %v53 = vld [vmem:[%s0 + $0x68] sm:$0x1]
    %v54 = vld [vmem:[%s0 + $0x70] sm:$0xff]
    %v55 = vld [vmem:[%s0 + $0x78] sm:$0x1]
    %v56 = vld [vmem:[%s0 + $0x80] sm:$0xff]
    %v57 = vld [vmem:[%s0 + $0x88] sm:$0x1]
    %v58 = vld [vmem:[%s0 + $0x90] sm:$0xff]
    %v59 = vld [vmem:[%s0 + $0x98] sm:$0x1]
    %v60 = vld [vmem:[%s0 + $0xa0] sm:$0xff]
    %v61 = vld [vmem:[%s0 + $0xa8] sm:$0x1]
    %v62 = vld [vmem:[%s0 + $0xb0] sm:$0xff]
    %v63 = vld [vmem:[%s0 + $0xb8] sm:$0x1]
    %v64 = vld [vmem:[%s0 + $0xc0] sm:$0xff]
    %v65 = vld [vmem:[%s0 + $0xc8] sm:$0x1]
    %v66 = vld [vmem:[%s0 + $0xd0] sm:$0xff]
    %v67 = vld [vmem:[%s0 + $0xd8] sm:$0x1]
    %v68 = vld [vmem:[%s0 + $0xe0] sm:$0xff]
    %v69 = vld [vmem:[%s0 + $0xe8] sm:$0x1]
    %v70 = vld [vmem:[%s0 + $0xf0] sm:$0xff]
    %v71 = vld [vmem:[%s0 + $0xf8] sm:$0x1]
    %v72 = vld [vmem:[%s0 + $0x100] sm:$0xff]
    %v73 = vld [vmem:[%s0 + $0x108] sm:$0x1]
    %v74 = vld [vmem:[%s0 + $0x110] sm:$0xff]
    %v75 = vld [vmem:[%s0 + $0x118] sm:$0x1]
    %v76 = vpack.c.bf16 %v41, %v40
    %v77 = vpack.c.bf16 %v43, %v42
    %v78 = vpack.c.bf16 %v45, %v44
    %v79 = vpack.c.bf16 %v47, %v46
    %v80 = vpack.c.bf16 %v49, %v48
    %v81 = vpack.c.bf16 %v51, %v50
    %v82 = vpack.c.bf16 %v53, %v52
    %v83 = vpack.c.bf16 %v55, %v54
    %v84 = vpack.c.bf16 %v57, %v56
    %v85 = vpack.c.bf16 %v59, %v58
    %v86 = vpack.c.bf16 %v61, %v60
    %v87 = vpack.c.bf16 %v63, %v62
    %v88 = vpack.c.bf16 %v65, %v64
    %v89 = vpack.c.bf16 %v67, %v66
    %v90 = vpack.c.bf16 %v69, %v68
    %v91 = vpack.c.bf16 %v71, %v70
    %v92 = vpack.c.bf16 %v73, %v72
    %v93 = vpack.c.bf16 %v75, %v74
    %v94 = vld [vmem:[%s1] sm:$0xf]
    %v95 = vld [vmem:[%s1 + $0x4] sm:$0xf]
    %v96 = vld [vmem:[%s1 + $0x8] sm:$0xf]
    %v97 = vld [vmem:[%s1 + $0xc] sm:$0xf]
    %v98 = vld [vmem:[%s1 + $0x10] sm:$0xf]
    %v99 = vld [vmem:[%s1 + $0x14] sm:$0xf]
    %v100 = vld [vmem:[%s1 + $0x18] sm:$0xf]
    %v101 = vld [vmem:[%s1 + $0x1c] sm:$0xf]
    %v102 = vld [vmem:[%s1 + $0x20] sm:$0xf]
    %v103 = vld [vmem:[%s1 + $0x24] sm:$0xf]
    %v104 = vld [vmem:[%s1 + $0x28] sm:$0xf]
    %v105 = vld [vmem:[%s1 + $0x2c] sm:$0xf]
    %v106 = vld [vmem:[%s1 + $0x30] sm:$0xf]
    %v107 = vld [vmem:[%s1 + $0x34] sm:$0xf]
    %v108 = vld [vmem:[%s1 + $0x38] sm:$0xf]
    %v109 = vld [vmem:[%s1 + $0x3c] sm:$0xf]
    %v110 = vld [vmem:[%s1 + $0x40] sm:$0xf]
    %v111 = vld [vmem:[%s1 + $0x44] sm:$0xf]
    %v112 = vld [vmem:[%s1 + $0x48] sm:$0xf]
    %v113 = vld [vmem:[%s1 + $0x4c] sm:$0xf]
    %v114 = vld [vmem:[%s1 + $0x50] sm:$0xf]
    %v115 = vld [vmem:[%s1 + $0x54] sm:$0xf]
    %v116 = vld [vmem:[%s1 + $0x58] sm:$0xf]
    %v117 = vld [vmem:[%s1 + $0x5c] sm:$0xf]
    %v118 = vld [vmem:[%s1 + $0x60] sm:$0xf]
    %v119 = vld [vmem:[%s1 + $0x64] sm:$0xf]
    %v120 = vld [vmem:[%s1 + $0x68] sm:$0xf]
    %v121 = vld [vmem:[%s1 + $0x6c] sm:$0xf]
    %v122 = vld [vmem:[%s1 + $0x70] sm:$0xf]
    %v123 = vld [vmem:[%s1 + $0x74] sm:$0xf]
    %v124 = vld [vmem:[%s1 + $0x78] sm:$0xf]
    %v125 = vld [vmem:[%s1 + $0x7c] sm:$0xf]
    %v142 = vunpack.c.l.b16 %v76
    %v143 = vunpack.c.h.b16 %v76
    %v144 = vunpack.c.l.b16 %v77
    %v145 = vunpack.c.h.b16 %v77
    %v146 = vunpack.c.l.b16 %v78
    %v147 = vunpack.c.h.b16 %v78
    %v148 = vunpack.c.l.b16 %v79
    %v149 = vunpack.c.h.b16 %v79
    %v150 = vunpack.c.l.b16 %v80
    %v151 = vunpack.c.h.b16 %v80
    %v152 = vunpack.c.l.b16 %v81
    %v153 = vunpack.c.h.b16 %v81
    %v154 = vunpack.c.l.b16 %v82
    %v155 = vunpack.c.h.b16 %v82
    %v156 = vunpack.c.l.b16 %v83
    %v157 = vunpack.c.h.b16 %v83
    %v158 = vunpack.c.l.b16 %v85
    %v159 = vunpack.c.h.b16 %v85
    %v160 = vunpack.c.l.b16 %v86
    %v161 = vunpack.c.h.b16 %v86
    %v162 = vunpack.c.l.b16 %v87
    %v163 = vunpack.c.h.b16 %v87
    %v164 = vunpack.c.l.b16 %v88
    %v165 = vunpack.c.h.b16 %v88
    %v166 = vunpack.c.l.b16 %v89
    %v167 = vunpack.c.h.b16 %v89
    %v168 = vunpack.c.l.b16 %v90
    %v169 = vunpack.c.h.b16 %v90
    %v170 = vunpack.c.l.b16 %v91
    %v171 = vunpack.c.h.b16 %v91
    %v172 = vunpack.c.l.b16 %v92
    %v173 = vunpack.c.h.b16 %v92
    %v174 = vpack.c.b16 %v142, %v142
    %v175 = vpack.c.b16 %v143, %v143
    %v176 = vpack.c.b16 %v144, %v144
    %v177 = vpack.c.b16 %v145, %v145
    %v178 = vpack.c.b16 %v146, %v146
    %v179 = vpack.c.b16 %v147, %v147
    %v180 = vpack.c.b16 %v148, %v148
    %v181 = vpack.c.b16 %v149, %v149
    %v182 = vpack.c.b16 %v150, %v150
    %v183 = vpack.c.b16 %v151, %v151
    %v184 = vpack.c.b16 %v152, %v152
    %v185 = vpack.c.b16 %v153, %v153
    %v186 = vpack.c.b16 %v154, %v154
    %v187 = vpack.c.b16 %v155, %v155
    %v188 = vpack.c.b16 %v156, %v156
    %v189 = vpack.c.b16 %v157, %v157
    %v190 = vpack.c.b16 %v158, %v158
    %v191 = vpack.c.b16 %v159, %v159
    %v192 = vpack.c.b16 %v160, %v160
    %v193 = vpack.c.b16 %v161, %v161
    %v194 = vpack.c.b16 %v162, %v162
    %v195 = vpack.c.b16 %v163, %v163
    %v196 = vpack.c.b16 %v164, %v164
    %v197 = vpack.c.b16 %v165, %v165
    %v198 = vpack.c.b16 %v166, %v166
    %v199 = vpack.c.b16 %v167, %v167
    %v200 = vpack.c.b16 %v168, %v168
    %v201 = vpack.c.b16 %v169, %v169
    %v202 = vpack.c.b16 %v170, %v170
    %v203 = vpack.c.b16 %v171, %v171
    %v204 = vpack.c.b16 %v172, %v172
    %v205 = vpack.c.b16 %v173, %v173
    %vm206 = vsmask.f32 3328
    %vm207 = vsmask.f32 7440
    %vm208 = vmor %vm206, %vm207
    %v210 = vshrl.u32 %v174, 16
    %v212 = vrot.slane %v210, 4
    %v213 = vshll.u32 %v174, 16
    %v215 = vrot.slane %v213, 5
    %v216 = vor.u32 %v212, %v215
    %v217 = vrot.slane %v216, 4
    %v219 = vshll.u32 %v175, 16
    %v221 = vrot.slane %v219, 5
    %v222 = vsel %vm208, %v217, %v221
    %v224 = vshrl.u32 %v176, 16
    %v226 = vrot.slane %v224, 4
    %v227 = vshll.u32 %v176, 16
    %v229 = vrot.slane %v227, 5
    %v230 = vor.u32 %v226, %v229
    %v231 = vrot.slane %v230, 4
    %v233 = vshll.u32 %v177, 16
    %v235 = vrot.slane %v233, 5
    %v236 = vsel %vm208, %v231, %v235
    %v238 = vshrl.u32 %v178, 16
    %v240 = vrot.slane %v238, 4
    %v241 = vshll.u32 %v178, 16
    %v243 = vrot.slane %v241, 5
    %v244 = vor.u32 %v240, %v243
    %v245 = vrot.slane %v244, 4
    %v247 = vshll.u32 %v179, 16
    %v249 = vrot.slane %v247, 5
    %v250 = vsel %vm208, %v245, %v249
    %v252 = vshrl.u32 %v180, 16
    %v254 = vrot.slane %v252, 4
    %v255 = vshll.u32 %v180, 16
    %v257 = vrot.slane %v255, 5
    %v258 = vor.u32 %v254, %v257
    %v259 = vrot.slane %v258, 4
    %v261 = vshll.u32 %v181, 16
    %v263 = vrot.slane %v261, 5
    %v264 = vsel %vm208, %v259, %v263
    %v266 = vshrl.u32 %v182, 16
    %v268 = vrot.slane %v266, 4
    %v269 = vshll.u32 %v182, 16
    %v271 = vrot.slane %v269, 5
    %v272 = vor.u32 %v268, %v271
    %v273 = vrot.slane %v272, 4
    %v275 = vshll.u32 %v183, 16
    %v277 = vrot.slane %v275, 5
    %v278 = vsel %vm208, %v273, %v277
    %v280 = vshrl.u32 %v184, 16
    %v282 = vrot.slane %v280, 4
    %v283 = vshll.u32 %v184, 16
    %v285 = vrot.slane %v283, 5
    %v286 = vor.u32 %v282, %v285
    %v287 = vrot.slane %v286, 4
    %v289 = vshll.u32 %v185, 16
    %v291 = vrot.slane %v289, 5
    %v292 = vsel %vm208, %v287, %v291
    %v294 = vshrl.u32 %v186, 16
    %v296 = vrot.slane %v294, 4
    %v297 = vshll.u32 %v186, 16
    %v299 = vrot.slane %v297, 5
    %v300 = vor.u32 %v296, %v299
    %v301 = vrot.slane %v300, 4
    %v303 = vshll.u32 %v187, 16
    %v305 = vrot.slane %v303, 5
    %v306 = vsel %vm208, %v301, %v305
    %v308 = vshrl.u32 %v188, 16
    %v310 = vrot.slane %v308, 4
    %v311 = vshll.u32 %v188, 16
    %v313 = vrot.slane %v311, 5
    %v314 = vor.u32 %v310, %v313
    %v315 = vrot.slane %v314, 4
    %v317 = vshll.u32 %v189, 16
    %v319 = vrot.slane %v317, 5
    %v320 = vsel %vm208, %v315, %v319
    %v322 = vshrl.u32 %v190, 16
    %v324 = vrot.slane %v322, 4
    %v325 = vshll.u32 %v190, 16
    %v327 = vrot.slane %v325, 5
    %v328 = vor.u32 %v324, %v327
    %v329 = vrot.slane %v328, 4
    %v331 = vshll.u32 %v191, 16
    %v333 = vrot.slane %v331, 5
    %v334 = vsel %vm208, %v329, %v333
    %v336 = vshrl.u32 %v192, 16
    %v338 = vrot.slane %v336, 4
    %v339 = vshll.u32 %v192, 16
    %v341 = vrot.slane %v339, 5
    %v342 = vor.u32 %v338, %v341
    %v343 = vrot.slane %v342, 4
    %v345 = vshll.u32 %v193, 16
    %v347 = vrot.slane %v345, 5
    %v348 = vsel %vm208, %v343, %v347
    %v350 = vshrl.u32 %v194, 16
    %v352 = vrot.slane %v350, 4
    %v353 = vshll.u32 %v194, 16
    %v355 = vrot.slane %v353, 5
    %v356 = vor.u32 %v352, %v355
    %v357 = vrot.slane %v356, 4
    %v359 = vshll.u32 %v195, 16
    %v361 = vrot.slane %v359, 5
    %v362 = vsel %vm208, %v357, %v361
    %v364 = vshrl.u32 %v196, 16
    %v366 = vrot.slane %v364, 4
    %v367 = vshll.u32 %v196, 16
    %v369 = vrot.slane %v367, 5
    %v370 = vor.u32 %v366, %v369
    %v371 = vrot.slane %v370, 4
    %v373 = vshll.u32 %v197, 16
    %v375 = vrot.slane %v373, 5
    %v376 = vsel %vm208, %v371, %v375
    %v378 = vshrl.u32 %v198, 16
    %v380 = vrot.slane %v378, 4
    %v381 = vshll.u32 %v198, 16
    %v383 = vrot.slane %v381, 5
    %v384 = vor.u32 %v380, %v383
    %v385 = vrot.slane %v384, 4
    %v387 = vshll.u32 %v199, 16
    %v389 = vrot.slane %v387, 5
    %v390 = vsel %vm208, %v385, %v389
    %v392 = vshrl.u32 %v200, 16
    %v394 = vrot.slane %v392, 4
    %v395 = vshll.u32 %v200, 16
    %v397 = vrot.slane %v395, 5
    %v398 = vor.u32 %v394, %v397
    %v399 = vrot.slane %v398, 4
    %v401 = vshll.u32 %v201, 16
    %v403 = vrot.slane %v401, 5
    %v404 = vsel %vm208, %v399, %v403
    %v406 = vshrl.u32 %v202, 16
    %v408 = vrot.slane %v406, 4
    %v409 = vshll.u32 %v202, 16
    %v411 = vrot.slane %v409, 5
    %v412 = vor.u32 %v408, %v411
    %v413 = vrot.slane %v412, 4
    %v415 = vshll.u32 %v203, 16
    %v417 = vrot.slane %v415, 5
    %v418 = vsel %vm208, %v413, %v417
    %v420 = vshrl.u32 %v204, 16
    %v422 = vrot.slane %v420, 4
    %v423 = vshll.u32 %v204, 16
    %v425 = vrot.slane %v423, 5
    %v426 = vor.u32 %v422, %v425
    %v427 = vrot.slane %v426, 4
    %v429 = vshll.u32 %v205, 16
    %v431 = vrot.slane %v429, 5
    %v432 = vsel %vm208, %v427, %v431
    %v433 = vunpack.c.l.b16 %v222
    %v434 = vunpack.c.l.b16 %v236
    %v435 = vunpack.c.l.b16 %v250
    %v436 = vunpack.c.l.b16 %v264
    %v437 = vunpack.c.l.b16 %v278
    %v438 = vunpack.c.l.b16 %v292
    %v439 = vunpack.c.l.b16 %v306
    %v440 = vunpack.c.l.b16 %v320
    %v441 = vunpack.c.l.b16 %v334
    %v442 = vunpack.c.l.b16 %v348
    %v443 = vunpack.c.l.b16 %v362
    %v444 = vunpack.c.l.b16 %v376
    %v445 = vunpack.c.l.b16 %v390
    %v446 = vunpack.c.l.b16 %v404
    %v447 = vunpack.c.l.b16 %v418
    %v448 = vunpack.c.l.b16 %v432
    %v449 = vpack.c.b16 %v434, %v433
    %v450 = vpack.c.b16 %v436, %v435
    %v451 = vpack.c.b16 %v438, %v437
    %v452 = vpack.c.b16 %v440, %v439
    %v453 = vpack.c.b16 %v442, %v441
    %v454 = vpack.c.b16 %v444, %v443
    %v455 = vpack.c.b16 %v446, %v445
    %v456 = vpack.c.b16 %v448, %v447
    %v465 = vunpack.c.l.b16 %v102
    %v466 = vunpack.c.l.b16 %v103
    %v467 = vunpack.c.l.b16 %v104
    %v468 = vunpack.c.l.b16 %v105
    %v469 = vunpack.c.l.b16 %v106
    %v470 = vunpack.c.l.b16 %v107
    %v471 = vunpack.c.l.b16 %v108
    %v472 = vunpack.c.l.b16 %v109
    %v473 = vpack.c.b16 %v466, %v465
    %v474 = vpack.c.b16 %v468, %v467
    %v475 = vpack.c.b16 %v470, %v469
    %v476 = vpack.c.b16 %v472, %v471
    %vm481 = vcmask 523264
    %v483 = vsel %vm481, %v449, 0
    %v486 = vsel %vm481, %v450, 0
    %v489 = vsel %vm481, %v451, 0
    %v492 = vsel %vm481, %v452, 0
    %v495 = vsel %vm481, %v453, 0
    %v498 = vsel %vm481, %v454, 0
    %v501 = vsel %vm481, %v455, 0
    %v504 = vsel %vm481, %v456, 0
    %506 = vmatprep.subr.bf16.mxu0 0
    %507 = vmatpush1.bf16.msra.mxu0 %v473
    %508 = vmatprep.subr.bf16.mxu0 0
    %509 = vmatpush1.bf16.msra.mxu0 %v474
    %510 = vmatprep.subr.bf16.mxu0 0
    %511 = vmatpush1.bf16.msra.mxu0 %v475
    %512 = vmatprep.subr.bf16.mxu0 0
    %513 = vmatpush1.bf16.msra.mxu0 %v476
    %514 = vmatprep.subr.bf16.mxu0 0
    %515 = vmatpush1.bf16.msra.mxu0 0
    %516 = vmatprep.subr.bf16.mxu0 0
    %517 = vmatpush1.bf16.msra.mxu0 0
    %518 = vmatprep.subr.bf16.mxu0 0
    %519 = vmatpush1.bf16.msra.mxu0 0
    %520 = vmatprep.subr.bf16.mxu0 0
    %521 = vmatpush1.bf16.msra.mxu0 0
    %522 = vmatprep.subr.bf16.mxu0 0
    %523 = vmatpush1.bf16.msra.mxu0 0
    %524 = vmatprep.subr.bf16.mxu0 0
    %525 = vmatpush1.bf16.msra.mxu0 0
    %526 = vmatprep.subr.bf16.mxu0 0
    %527 = vmatpush1.bf16.msra.mxu0 0
    %528 = vmatprep.subr.bf16.mxu0 0
    %529 = vmatpush1.bf16.msra.mxu0 0
    %530 = vmatprep.subr.bf16.mxu0 0
    %531 = vmatpush1.bf16.msra.mxu0 0
    %532 = vmatprep.subr.bf16.mxu0 0
    %533 = vmatpush1.bf16.msra.mxu0 0
    %534 = vmatprep.subr.bf16.mxu0 0
    %535 = vmatpush1.bf16.msra.mxu0 0
    %536 = vmatprep.subr.bf16.mxu0 0
    %537 = vmatpush1.bf16.msra.mxu0 0
    %538 = vmatprep.mubr.bf16.mxu0 0
    %539 = vmatmul.mubr.bf16.gmra.mrb[0].mxu0 %v483
    %v540 = vpop.f32.mrb[0].mxu0
    %v541 = vadd.f32 0.0, %v540
    %v542 = vpop.f32.mrb[0].mxu0
    %v543 = vpop.f32.mrb[0].mxu0
    %v544 = vadd.f32 0.0, %v543
    %v545 = vpop.f32.mrb[0].mxu0
    %546 = vmatprep.mubr.bf16.mxu0 0
    %547 = vmatmul.mubr.bf16.gmra.mrb[0].mxu0 %v486
    %v548 = vpop.f32.mrb[0].mxu0
    %v549 = vadd.f32 0.0, %v548
    %v550 = vpop.f32.mrb[0].mxu0
    %v551 = vpop.f32.mrb[0].mxu0
    %v552 = vadd.f32 0.0, %v551
    %v553 = vpop.f32.mrb[0].mxu0
    %554 = vmatprep.mubr.bf16.mxu0 0
    %555 = vmatmul.mubr.bf16.gmra.mrb[0].mxu0 %v489
    %v556 = vpop.f32.mrb[0].mxu0
    %v557 = vadd.f32 0.0, %v556
    %v558 = vpop.f32.mrb[0].mxu0
    %v559 = vpop.f32.mrb[0].mxu0
    %v560 = vadd.f32 0.0, %v559
    %v561 = vpop.f32.mrb[0].mxu0
    %562 = vmatprep.mubr.bf16.mxu0 0
    %563 = vmatmul.mubr.bf16.gmra.mrb[0].mxu0 %v492
    %v564 = vpop.f32.mrb[0].mxu0
    %v565 = vadd.f32 0.0, %v564
    %v566 = vpop.f32.mrb[0].mxu0
    %v567 = vpop.f32.mrb[0].mxu0
    %v568 = vadd.f32 0.0, %v567
    %v569 = vpop.f32.mrb[0].mxu0
    %570 = vmatprep.mubr.bf16.mxu0 0
    %571 = vmatmul.mubr.bf16.gmra.mrb[0].mxu0 %v495
    %v572 = vpop.f32.mrb[0].mxu0
    %v573 = vadd.f32 0.0, %v572
    %v574 = vpop.f32.mrb[0].mxu0
    %v575 = vpop.f32.mrb[0].mxu0
    %v576 = vadd.f32 0.0, %v575
    %v577 = vpop.f32.mrb[0].mxu0
    %578 = vmatprep.mubr.bf16.mxu0 0
    %579 = vmatmul.mubr.bf16.gmra.mrb[0].mxu0 %v498
    %v580 = vpop.f32.mrb[0].mxu0
    %v581 = vadd.f32 0.0, %v580
    %v582 = vpop.f32.mrb[0].mxu0
    %v583 = vpop.f32.mrb[0].mxu0
    %v584 = vadd.f32 0.0, %v583
    %v585 = vpop.f32.mrb[0].mxu0
    %586 = vmatprep.mubr.bf16.mxu0 0
    %587 = vmatmul.mubr.bf16.gmra.mrb[0].mxu0 %v501
    %v588 = vpop.f32.mrb[0].mxu0
    %v589 = vadd.f32 0.0, %v588
    %v590 = vpop.f32.mrb[0].mxu0
    %v591 = vpop.f32.mrb[0].mxu0
    %v592 = vadd.f32 0.0, %v591
    %v593 = vpop.f32.mrb[0].mxu0
    %594 = vmatprep.mubr.bf16.mxu0 0
    %595 = vmatmul.mubr.bf16.gmra.mrb[0].mxu0 %v504
    %v596 = vpop.f32.mrb[0].mxu0
    %v597 = vadd.f32 0.0, %v596
    %v598 = vpop.f32.mrb[0].mxu0
    %v599 = vpop.f32.mrb[0].mxu0
    %v600 = vadd.f32 0.0, %v599
    %v601 = vpop.f32.mrb[0].mxu0
    %602 = vdwg.mxu0
    %v603 = vpack.c.b16 %v144, %v142
    %v604 = vpack.c.b16 %v148, %v146
    %v605 = vpack.c.b16 %v152, %v150
    %v606 = vpack.c.b16 %v156, %v154
    %v607 = vpack.c.b16 %v160, %v158
    %v608 = vpack.c.b16 %v164, %v162
    %v609 = vpack.c.b16 %v168, %v166
    %v610 = vpack.c.b16 %v172, %v170
    %v619 = vunpack.c.l.b16 %v94
    %v620 = vunpack.c.l.b16 %v95
    %v621 = vunpack.c.l.b16 %v96
    %v622 = vunpack.c.l.b16 %v97
    %v623 = vunpack.c.l.b16 %v98
    %v624 = vunpack.c.l.b16 %v99
    %v625 = vunpack.c.l.b16 %v100
    %v626 = vunpack.c.l.b16 %v101
    %v627 = vpack.c.b16 %v620, %v619
    %v628 = vpack.c.b16 %v622, %v621
    %v629 = vpack.c.b16 %v624, %v623
    %v630 = vpack.c.b16 %v626, %v625
    %v636 = vsel %vm481, %v603, 0
    %v639 = vsel %vm481, %v604, 0
    %v642 = vsel %vm481, %v605, 0
    %v645 = vsel %vm481, %v606, 0
    %v648 = vsel %vm481, %v607, 0
    %v651 = vsel %vm481, %v608, 0
    %v654 = vsel %vm481, %v609, 0
    %v657 = vsel %vm481, %v610, 0
    %659 = vmatprep.subr.bf16.mxu0 0
    %660 = vmatpush1.bf16.msra.mxu0 %v627
    %661 = vmatprep.subr.bf16.mxu0 0
    %662 = vmatpush1.bf16.msra.mxu0 %v628
    %663 = vmatprep.subr.bf16.mxu0 0
    %664 = vmatpush1.bf16.msra.mxu0 %v629
    %665 = vmatprep.subr.bf16.mxu0 0
    %666 = vmatpush1.bf16.msra.mxu0 %v630
    %667 = vmatprep.subr.bf16.mxu0 0
    %668 = vmatpush1.bf16.msra.mxu0 0
    %669 = vmatprep.subr.bf16.mxu0 0
    %670 = vmatpush1.bf16.msra.mxu0 0
    %671 = vmatprep.subr.bf16.mxu0 0
    %672 = vmatpush1.bf16.msra.mxu0 0
    %673 = vmatprep.subr.bf16.mxu0 0
    %674 = vmatpush1.bf16.msra.mxu0 0
    %675 = vmatprep.subr.bf16.mxu0 0
    %676 = vmatpush1.bf16.msra.mxu0 0
    %677 = vmatprep.subr.bf16.mxu0 0
    %678 = vmatpush1.bf16.msra.mxu0 0
    %679 = vmatprep.subr.bf16.mxu0 0
    %680 = vmatpush1.bf16.msra.mxu0 0
    %681 = vmatprep.subr.bf16.mxu0 0
    %682 = vmatpush1.bf16.msra.mxu0 0
    %683 = vmatprep.subr.bf16.mxu0 0
    %684 = vmatpush1.bf16.msra.mxu0 0
    %685 = vmatprep.subr.bf16.mxu0 0
    %686 = vmatpush1.bf16.msra.mxu0 0
    %687 = vmatprep.subr.bf16.mxu0 0
    %688 = vmatpush1.bf16.msra.mxu0 0
    %689 = vmatprep.subr.bf16.mxu0 0
    %690 = vmatpush1.bf16.msra.mxu0 0
    %691 = vmatprep.mubr.bf16.mxu0 0
    %692 = vmatmul.mubr.bf16.gmra.mrb[0].mxu0 %v636
    %v693 = vpop.f32.mrb[0].mxu0
    %v694 = vadd.f32 %v541, %v693
    %v695 = vpop.f32.mrb[0].mxu0
    %v696 = vpop.f32.mrb[0].mxu0
    %v697 = vadd.f32 %v544, %v696
    %v698 = vpop.f32.mrb[0].mxu0
    %699 = vmatprep.mubr.bf16.mxu0 0
    %700 = vmatmul.mubr.bf16.gmra.mrb[0].mxu0 %v639
    %v701 = vpop.f32.mrb[0].mxu0
    %v702 = vadd.f32 %v549, %v701
    %v703 = vpop.f32.mrb[0].mxu0
    %v704 = vpop.f32.mrb[0].mxu0
    %v705 = vadd.f32 %v552, %v704
    %v706 = vpop.f32.mrb[0].mxu0
    %707 = vmatprep.mubr.bf16.mxu0 0
    %708 = vmatmul.mubr.bf16.gmra.mrb[0].mxu0 %v642
    %v709 = vpop.f32.mrb[0].mxu0
    %v710 = vadd.f32 %v557, %v709
    %v711 = vpop.f32.mrb[0].mxu0
    %v712 = vpop.f32.mrb[0].mxu0
    %v713 = vadd.f32 %v560, %v712
    %v714 = vpop.f32.mrb[0].mxu0
    %715 = vmatprep.mubr.bf16.mxu0 0
    %716 = vmatmul.mubr.bf16.gmra.mrb[0].mxu0 %v645
    %v717 = vpop.f32.mrb[0].mxu0
    %v718 = vadd.f32 %v565, %v717
    %v719 = vpop.f32.mrb[0].mxu0
    %v720 = vpop.f32.mrb[0].mxu0
    %v721 = vadd.f32 %v568, %v720
    %v722 = vpop.f32.mrb[0].mxu0
    %723 = vmatprep.mubr.bf16.mxu0 0
    %724 = vmatmul.mubr.bf16.gmra.mrb[0].mxu0 %v648
    %v725 = vpop.f32.mrb[0].mxu0
    %v726 = vadd.f32 %v573, %v725
    %v727 = vpop.f32.mrb[0].mxu0
    %v728 = vpop.f32.mrb[0].mxu0
    %v729 = vadd.f32 %v576, %v728
    %v730 = vpop.f32.mrb[0].mxu0
    %731 = vmatprep.mubr.bf16.mxu0 0
    %732 = vmatmul.mubr.bf16.gmra.mrb[0].mxu0 %v651
    %v733 = vpop.f32.mrb[0].mxu0
    %v734 = vadd.f32 %v581, %v733
    %v735 = vpop.f32.mrb[0].mxu0
    %v736 = vpop.f32.mrb[0].mxu0
    %v737 = vadd.f32 %v584, %v736
    %v738 = vpop.f32.mrb[0].mxu0
    %739 = vmatprep.mubr.bf16.mxu0 0
    %740 = vmatmul.mubr.bf16.gmra.mrb[0].mxu0 %v654
    %v741 = vpop.f32.mrb[0].mxu0
    %v742 = vadd.f32 %v589, %v741
    %v743 = vpop.f32.mrb[0].mxu0
    %v744 = vpop.f32.mrb[0].mxu0
    %v745 = vadd.f32 %v592, %v744
    %v746 = vpop.f32.mrb[0].mxu0
    %747 = vmatprep.mubr.bf16.mxu0 0
    %748 = vmatmul.mubr.bf16.gmra.mrb[0].mxu0 %v657
    %v749 = vpop.f32.mrb[0].mxu0
    %v750 = vadd.f32 %v597, %v749
    %v751 = vpop.f32.mrb[0].mxu0
    %v752 = vpop.f32.mrb[0].mxu0
    %v753 = vadd.f32 %v600, %v752
    %v754 = vpop.f32.mrb[0].mxu0
    %755 = vdwg.mxu0
    %v758 = vunpack.c.l.b16 %v84
    %v759 = vunpack.c.l.b16 %v93
    %v760 = vpack.c.b16 %v146, %v144
    %v761 = vpack.c.b16 %v150, %v148
    %v762 = vpack.c.b16 %v154, %v152
    %v763 = vpack.c.b16 %v758, %v156
    %v764 = vpack.c.b16 %v162, %v160
    %v765 = vpack.c.b16 %v166, %v164
    %v766 = vpack.c.b16 %v170, %v168
    %v767 = vpack.c.b16 %v759, %v172
    %v776 = vunpack.c.l.b16 %v110
    %v777 = vunpack.c.l.b16 %v111
    %v778 = vunpack.c.l.b16 %v112
    %v779 = vunpack.c.l.b16 %v113
    %v780 = vunpack.c.l.b16 %v114
    %v781 = vunpack.c.l.b16 %v115
    %v782 = vunpack.c.l.b16 %v116
    %v783 = vunpack.c.l.b16 %v117
    %v784 = vpack.c.b16 %v777, %v776
    %v785 = vpack.c.b16 %v779, %v778
    %v786 = vpack.c.b16 %v781, %v780
    %v787 = vpack.c.b16 %v783, %v782
    %v793 = vsel %vm481, %v760, 0
    %v796 = vsel %vm481, %v761, 0
    %v799 = vsel %vm481, %v762, 0
    %v802 = vsel %vm481, %v763, 0
    %v805 = vsel %vm481, %v764, 0
    %v808 = vsel %vm481, %v765, 0
    %v811 = vsel %vm481, %v766, 0
    %v814 = vsel %vm481, %v767, 0
    %816 = vmatprep.subr.bf16.mxu0 0
    %817 = vmatpush1.bf16.msra.mxu0 %v784
    %818 = vmatprep.subr.bf16.mxu0 0
    %819 = vmatpush1.bf16.msra.mxu0 %v785
    %820 = vmatprep.subr.bf16.mxu0 0
    %821 = vmatpush1.bf16.msra.mxu0 %v786
    %822 = vmatprep.subr.bf16.mxu0 0
    %823 = vmatpush1.bf16.msra.mxu0 %v787
    %824 = vmatprep.subr.bf16.mxu0 0
    %825 = vmatpush1.bf16.msra.mxu0 0
    %826 = vmatprep.subr.bf16.mxu0 0
    %827 = vmatpush1.bf16.msra.mxu0 0
    %828 = vmatprep.subr.bf16.mxu0 0
    %829 = vmatpush1.bf16.msra.mxu0 0
    %830 = vmatprep.subr.bf16.mxu0 0
    %831 = vmatpush1.bf16.msra.mxu0 0
    %832 = vmatprep.subr.bf16.mxu0 0
    %833 = vmatpush1.bf16.msra.mxu0 0
    %834 = vmatprep.subr.bf16.mxu0 0
    %835 = vmatpush1.bf16.msra.mxu0 0
    %836 = vmatprep.subr.bf16.mxu0 0
    %837 = vmatpush1.bf16.msra.mxu0 0
    %838 = vmatprep.subr.bf16.mxu0 0
    %839 = vmatpush1.bf16.msra.mxu0 0
    %840 = vmatprep.subr.bf16.mxu0 0
    %841 = vmatpush1.bf16.msra.mxu0 0
    %842 = vmatprep.subr.bf16.mxu0 0
    %843 = vmatpush1.bf16.msra.mxu0 0
    %844 = vmatprep.subr.bf16.mxu0 0
    %845 = vmatpush1.bf16.msra.mxu0 0
    %846 = vmatprep.subr.bf16.mxu0 0
    %847 = vmatpush1.bf16.msra.mxu0 0
    %848 = vmatprep.mubr.bf16.mxu0 0
    %849 = vmatmul.mubr.bf16.gmra.mrb[0].mxu0 %v793
    %v850 = vpop.f32.mrb[0].mxu0
    %v851 = vadd.f32 0.0, %v850
    %v852 = vpop.f32.mrb[0].mxu0
    %v853 = vpop.f32.mrb[0].mxu0
    %v854 = vadd.f32 0.0, %v853
    %v855 = vpop.f32.mrb[0].mxu0
    %856 = vmatprep.mubr.bf16.mxu0 0
    %857 = vmatmul.mubr.bf16.gmra.mrb[0].mxu0 %v796
    %v858 = vpop.f32.mrb[0].mxu0
    %v859 = vadd.f32 0.0, %v858
    %v860 = vpop.f32.mrb[0].mxu0
    %v861 = vpop.f32.mrb[0].mxu0
    %v862 = vadd.f32 0.0, %v861
    %v863 = vpop.f32.mrb[0].mxu0
    %864 = vmatprep.mubr.bf16.mxu0 0
    %865 = vmatmul.mubr.bf16.gmra.mrb[0].mxu0 %v799
    %v866 = vpop.f32.mrb[0].mxu0
    %v867 = vadd.f32 0.0, %v866
    %v868 = vpop.f32.mrb[0].mxu0
    %v869 = vpop.f32.mrb[0].mxu0
    %v870 = vadd.f32 0.0, %v869
    %v871 = vpop.f32.mrb[0].mxu0
    %872 = vmatprep.mubr.bf16.mxu0 0
    %873 = vmatmul.mubr.bf16.gmra.mrb[0].mxu0 %v802
    %v874 = vpop.f32.mrb[0].mxu0
    %v875 = vadd.f32 0.0, %v874
    %v876 = vpop.f32.mrb[0].mxu0
    %v877 = vpop.f32.mrb[0].mxu0
    %v878 = vadd.f32 0.0, %v877
    %v879 = vpop.f32.mrb[0].mxu0
    %880 = vmatprep.mubr.bf16.mxu0 0
    %881 = vmatmul.mubr.bf16.gmra.mrb[0].mxu0 %v805
    %v882 = vpop.f32.mrb[0].mxu0
    %v883 = vadd.f32 0.0, %v882
    %v884 = vpop.f32.mrb[0].mxu0
    %v885 = vpop.f32.mrb[0].mxu0
    %v886 = vadd.f32 0.0, %v885
    %v887 = vpop.f32.mrb[0].mxu0
    %888 = vmatprep.mubr.bf16.mxu0 0
    %889 = vmatmul.mubr.bf16.gmra.mrb[0].mxu0 %v808
    %v890 = vpop.f32.mrb[0].mxu0
    %v891 = vadd.f32 0.0, %v890
    %v892 = vpop.f32.mrb[0].mxu0
    %v893 = vpop.f32.mrb[0].mxu0
    %v894 = vadd.f32 0.0, %v893
    %v895 = vpop.f32.mrb[0].mxu0
    %896 = vmatprep.mubr.bf16.mxu0 0
    %897 = vmatmul.mubr.bf16.gmra.mrb[0].mxu0 %v811
    %v898 = vpop.f32.mrb[0].mxu0
    %v899 = vadd.f32 0.0, %v898
    %v900 = vpop.f32.mrb[0].mxu0
    %v901 = vpop.f32.mrb[0].mxu0
    %v902 = vadd.f32 0.0, %v901
    %v903 = vpop.f32.mrb[0].mxu0
    %904 = vmatprep.mubr.bf16.mxu0 0
    %905 = vmatmul.mubr.bf16.gmra.mrb[0].mxu0 %v814
    %v906 = vpop.f32.mrb[0].mxu0
    %v907 = vadd.f32 0.0, %v906
    %v908 = vpop.f32.mrb[0].mxu0
    %v909 = vpop.f32.mrb[0].mxu0
    %v910 = vadd.f32 0.0, %v909
    %v911 = vpop.f32.mrb[0].mxu0
    %912 = vdwg.mxu0
    %v913 = vadd.f32 %v694, %v851
    %v914 = vadd.f32 %v697, %v854
    %v915 = vadd.f32 %v702, %v859
    %v916 = vadd.f32 %v705, %v862
    %v917 = vadd.f32 %v710, %v867
    %v918 = vadd.f32 %v713, %v870
    %v919 = vadd.f32 %v718, %v875
    %v920 = vadd.f32 %v721, %v878
    %v921 = vadd.f32 %v726, %v883
    %v922 = vadd.f32 %v729, %v886
    %v923 = vadd.f32 %v734, %v891
    %v924 = vadd.f32 %v737, %v894
    %v925 = vadd.f32 %v742, %v899
    %v926 = vadd.f32 %v745, %v902
    %v927 = vadd.f32 %v750, %v907
    %v928 = vadd.f32 %v753, %v910
    %v929 = vunpack.c.h.b16 %v84
    %v930 = vunpack.c.h.b16 %v93
    %v931 = vpack.c.b16 %v758, %v758
    %v932 = vpack.c.b16 %v929, %v929
    %v933 = vpack.c.b16 %v759, %v759
    %v934 = vpack.c.b16 %v930, %v930
    %v936 = vshrl.u32 %v931, 16
    %v938 = vrot.slane %v936, 4
    %v939 = vshll.u32 %v931, 16
    %v941 = vrot.slane %v939, 5
    %v942 = vor.u32 %v938, %v941
    %v943 = vrot.slane %v942, 4
    %v945 = vshll.u32 %v932, 16
    %v947 = vrot.slane %v945, 5
    %v948 = vsel %vm208, %v943, %v947
    %v950 = vshrl.u32 %v933, 16
    %v952 = vrot.slane %v950, 4
    %v953 = vshll.u32 %v933, 16
    %v955 = vrot.slane %v953, 5
    %v956 = vor.u32 %v952, %v955
    %v957 = vrot.slane %v956, 4
    %v959 = vshll.u32 %v934, 16
    %v961 = vrot.slane %v959, 5
    %v962 = vsel %vm208, %v957, %v961
    %v963 = vunpack.c.l.b16 %v948
    %v964 = vunpack.c.l.b16 %v962
    %v965 = vpack.c.b16 %v435, %v434
    %v966 = vpack.c.b16 %v437, %v436
    %v967 = vpack.c.b16 %v439, %v438
    %v968 = vpack.c.b16 %v963, %v440
    %v969 = vpack.c.b16 %v443, %v442
    %v970 = vpack.c.b16 %v445, %v444
    %v971 = vpack.c.b16 %v447, %v446
    %v972 = vpack.c.b16 %v964, %v448
    %v981 = vunpack.c.l.b16 %v118
    %v982 = vunpack.c.l.b16 %v119
    %v983 = vunpack.c.l.b16 %v120
    %v984 = vunpack.c.l.b16 %v121
    %v985 = vunpack.c.l.b16 %v122
    %v986 = vunpack.c.l.b16 %v123
    %v987 = vunpack.c.l.b16 %v124
    %v988 = vunpack.c.l.b16 %v125
    %v989 = vpack.c.b16 %v982, %v981
    %v990 = vpack.c.b16 %v984, %v983
    %v991 = vpack.c.b16 %v986, %v985
    %v992 = vpack.c.b16 %v988, %v987
    %v998 = vsel %vm481, %v965, 0
    %v1001 = vsel %vm481, %v966, 0
    %v1004 = vsel %vm481, %v967, 0
    %v1007 = vsel %vm481, %v968, 0
    %v1010 = vsel %vm481, %v969, 0
    %v1013 = vsel %vm481, %v970, 0
    %v1016 = vsel %vm481, %v971, 0
    %v1019 = vsel %vm481, %v972, 0
    %1021 = vmatprep.subr.bf16.mxu0 0
    %1022 = vmatpush1.bf16.msra.mxu0 %v989
    %1023 = vmatprep.subr.bf16.mxu0 0
    %1024 = vmatpush1.bf16.msra.mxu0 %v990
    %1025 = vmatprep.subr.bf16.mxu0 0
    %1026 = vmatpush1.bf16.msra.mxu0 %v991
    %1027 = vmatprep.subr.bf16.mxu0 0
    %1028 = vmatpush1.bf16.msra.mxu0 %v992
    %1029 = vmatprep.subr.bf16.mxu0 0
    %1030 = vmatpush1.bf16.msra.mxu0 0
    %1031 = vmatprep.subr.bf16.mxu0 0
    %1032 = vmatpush1.bf16.msra.mxu0 0
    %1033 = vmatprep.subr.bf16.mxu0 0
    %1034 = vmatpush1.bf16.msra.mxu0 0
    %1035 = vmatprep.subr.bf16.mxu0 0
    %1036 = vmatpush1.bf16.msra.mxu0 0
    %1037 = vmatprep.subr.bf16.mxu0 0
    %1038 = vmatpush1.bf16.msra.mxu0 0
    %1039 = vmatprep.subr.bf16.mxu0 0
    %1040 = vmatpush1.bf16.msra.mxu0 0
    %1041 = vmatprep.subr.bf16.mxu0 0
    %1042 = vmatpush1.bf16.msra.mxu0 0
    %1043 = vmatprep.subr.bf16.mxu0 0
    %1044 = vmatpush1.bf16.msra.mxu0 0
    %1045 = vmatprep.subr.bf16.mxu0 0
    %1046 = vmatpush1.bf16.msra.mxu0 0
    %1047 = vmatprep.subr.bf16.mxu0 0
    %1048 = vmatpush1.bf16.msra.mxu0 0
    %1049 = vmatprep.subr.bf16.mxu0 0
    %1050 = vmatpush1.bf16.msra.mxu0 0
    %1051 = vmatprep.subr.bf16.mxu0 0
    %1052 = vmatpush1.bf16.msra.mxu0 0
    %1053 = vmatprep.mubr.bf16.mxu0 0
    %1054 = vmatmul.mubr.bf16.gmra.mrb[0].mxu0 %v998
    %v1055 = vpop.f32.mrb[0].mxu0
    %v1056 = vadd.f32 0.0, %v1055
    %v1057 = vpop.f32.mrb[0].mxu0
    %v1058 = vpop.f32.mrb[0].mxu0
    %v1059 = vadd.f32 0.0, %v1058
    %v1060 = vpop.f32.mrb[0].mxu0
    %1061 = vmatprep.mubr.bf16.mxu0 0
    %1062 = vmatmul.mubr.bf16.gmra.mrb[0].mxu0 %v1001
    %v1063 = vpop.f32.mrb[0].mxu0
    %v1064 = vadd.f32 0.0, %v1063
    %v1065 = vpop.f32.mrb[0].mxu0
    %v1066 = vpop.f32.mrb[0].mxu0
    %v1067 = vadd.f32 0.0, %v1066
    %v1068 = vpop.f32.mrb[0].mxu0
    %1069 = vmatprep.mubr.bf16.mxu0 0
    %1070 = vmatmul.mubr.bf16.gmra.mrb[0].mxu0 %v1004
    %v1071 = vpop.f32.mrb[0].mxu0
    %v1072 = vadd.f32 0.0, %v1071
    %v1073 = vpop.f32.mrb[0].mxu0
    %v1074 = vpop.f32.mrb[0].mxu0
    %v1075 = vadd.f32 0.0, %v1074
    %v1076 = vpop.f32.mrb[0].mxu0
    %1077 = vmatprep.mubr.bf16.mxu0 0
    %1078 = vmatmul.mubr.bf16.gmra.mrb[0].mxu0 %v1007
    %v1079 = vpop.f32.mrb[0].mxu0
    %v1080 = vadd.f32 0.0, %v1079
    %v1081 = vpop.f32.mrb[0].mxu0
    %v1082 = vpop.f32.mrb[0].mxu0
    %v1083 = vadd.f32 0.0, %v1082
    %v1084 = vpop.f32.mrb[0].mxu0
    %1085 = vmatprep.mubr.bf16.mxu0 0
    %1086 = vmatmul.mubr.bf16.gmra.mrb[0].mxu0 %v1010
    %v1087 = vpop.f32.mrb[0].mxu0
    %v1088 = vadd.f32 0.0, %v1087
    %v1089 = vpop.f32.mrb[0].mxu0
    %v1090 = vpop.f32.mrb[0].mxu0
    %v1091 = vadd.f32 0.0, %v1090
    %v1092 = vpop.f32.mrb[0].mxu0
    %1093 = vmatprep.mubr.bf16.mxu0 0
    %1094 = vmatmul.mubr.bf16.gmra.mrb[0].mxu0 %v1013
    %v1095 = vpop.f32.mrb[0].mxu0
    %v1096 = vadd.f32 0.0, %v1095
    %v1097 = vpop.f32.mrb[0].mxu0
    %v1098 = vpop.f32.mrb[0].mxu0
    %v1099 = vadd.f32 0.0, %v1098
    %v1100 = vpop.f32.mrb[0].mxu0
    %1101 = vmatprep.mubr.bf16.mxu0 0
    %1102 = vmatmul.mubr.bf16.gmra.mrb[0].mxu0 %v1016
    %v1103 = vpop.f32.mrb[0].mxu0
    %v1104 = vadd.f32 0.0, %v1103
    %v1105 = vpop.f32.mrb[0].mxu0
    %v1106 = vpop.f32.mrb[0].mxu0
    %v1107 = vadd.f32 0.0, %v1106
    %v1108 = vpop.f32.mrb[0].mxu0
    %1109 = vmatprep.mubr.bf16.mxu0 0
    %1110 = vmatmul.mubr.bf16.gmra.mrb[0].mxu0 %v1019
    %v1111 = vpop.f32.mrb[0].mxu0
    %v1112 = vadd.f32 0.0, %v1111
    %v1113 = vpop.f32.mrb[0].mxu0
    %v1114 = vpop.f32.mrb[0].mxu0
    %v1115 = vadd.f32 0.0, %v1114
    %v1116 = vpop.f32.mrb[0].mxu0
    %1117 = vdwg.mxu0
    %v1118 = vadd.f32 %v913, %v1056
    %v1119 = vadd.f32 %v914, %v1059
    %v1120 = vadd.f32 %v915, %v1064
    %v1121 = vadd.f32 %v916, %v1067
    %v1122 = vadd.f32 %v917, %v1072
    %v1123 = vadd.f32 %v918, %v1075
    %v1124 = vadd.f32 %v919, %v1080
    %v1125 = vadd.f32 %v920, %v1083
    %v1126 = vadd.f32 %v921, %v1088
    %v1127 = vadd.f32 %v922, %v1091
    %v1128 = vadd.f32 %v923, %v1096
    %v1129 = vadd.f32 %v924, %v1099
    %v1130 = vadd.f32 %v925, %v1104
    %v1131 = vadd.f32 %v926, %v1107
    %v1132 = vadd.f32 %v927, %v1112
    %v1133 = vadd.f32 %v928, %v1115
    %v1134 = vld [vmem:[%s2] sm:$0x1]
    %v1136 = vlaneseq
    %v1137 = vshrl.u32 %v1136, 7
    %v1138 = vsub.s32 0, %v1137
    %v1139 = vrot.slane %v1134, %v1138
    %v1141 = vadd.f32 %v1118, %v1139
    %v1142 = vadd.f32 %v1119, %v1139
    %v1143 = vadd.f32 %v1120, %v1139
    %v1144 = vadd.f32 %v1121, %v1139
    %v1145 = vadd.f32 %v1122, %v1139
    %v1146 = vadd.f32 %v1123, %v1139
    %v1147 = vadd.f32 %v1124, %v1139
    %v1148 = vadd.f32 %v1125, %v1139
    %v1149 = vadd.f32 %v1126, %v1139
    %v1150 = vadd.f32 %v1127, %v1139
    %v1151 = vadd.f32 %v1128, %v1139
    %v1152 = vadd.f32 %v1129, %v1139
    %v1153 = vadd.f32 %v1130, %v1139
    %v1154 = vadd.f32 %v1131, %v1139
    %v1155 = vadd.f32 %v1132, %v1139
    %v1156 = vadd.f32 %v1133, %v1139
    %v1157 = vmax.f32 %v1141, 0.0
    %v1158 = vmax.f32 %v1142, 0.0
    %v1159 = vmax.f32 %v1143, 0.0
    %v1160 = vmax.f32 %v1144, 0.0
    %v1161 = vmax.f32 %v1145, 0.0
    %v1162 = vmax.f32 %v1146, 0.0
    %v1163 = vmax.f32 %v1147, 0.0
    %v1164 = vmax.f32 %v1148, 0.0
    %v1165 = vmax.f32 %v1149, 0.0
    %v1166 = vmax.f32 %v1150, 0.0
    %v1167 = vmax.f32 %v1151, 0.0
    %v1168 = vmax.f32 %v1152, 0.0
    %v1169 = vmax.f32 %v1153, 0.0
    %v1170 = vmax.f32 %v1154, 0.0
    %v1171 = vmax.f32 %v1155, 0.0
    %v1172 = vmax.f32 %v1156, 0.0
    %v1173 = vpack.c.bf16 %v1158, %v1157
    %v1174 = vpack.c.bf16 %v1160, %v1159
    %v1175 = vpack.c.bf16 %v1162, %v1161
    %v1176 = vpack.c.bf16 %v1164, %v1163
    %v1177 = vpack.c.bf16 %v1166, %v1165
    %v1178 = vpack.c.bf16 %v1168, %v1167
    %v1179 = vpack.c.bf16 %v1170, %v1169
    %v1180 = vpack.c.bf16 %v1172, %v1171
    %v1189 = vunpack.c.l.b16 %v1173
    %v1190 = vunpack.c.h.b16 %v1173
    %v1191 = vunpack.c.l.b16 %v1174
    %v1192 = vunpack.c.h.b16 %v1174
    %v1193 = vunpack.c.l.b16 %v1175
    %v1194 = vunpack.c.h.b16 %v1175
    %v1195 = vunpack.c.l.b16 %v1176
    %v1196 = vunpack.c.h.b16 %v1176
    %v1197 = vunpack.c.l.b16 %v1177
    %v1198 = vunpack.c.h.b16 %v1177
    %v1199 = vunpack.c.l.b16 %v1178
    %v1200 = vunpack.c.h.b16 %v1178
    %v1201 = vunpack.c.l.b16 %v1179
    %v1202 = vunpack.c.h.b16 %v1179
    %v1203 = vunpack.c.l.b16 %v1180
    %v1204 = vunpack.c.h.b16 %v1180
    %v1205 = vpack.c.b16 %v1189, %v1189
    %v1206 = vpack.c.b16 %v1190, %v1190
    %v1207 = vpack.c.b16 %v1191, %v1191
    %v1208 = vpack.c.b16 %v1192, %v1192
    %v1209 = vpack.c.b16 %v1193, %v1193
    %v1210 = vpack.c.b16 %v1194, %v1194
    %v1211 = vpack.c.b16 %v1195, %v1195
    %v1212 = vpack.c.b16 %v1196, %v1196
    %v1213 = vpack.c.b16 %v1197, %v1197
    %v1214 = vpack.c.b16 %v1198, %v1198
    %v1215 = vpack.c.b16 %v1199, %v1199
    %v1216 = vpack.c.b16 %v1200, %v1200
    %v1217 = vpack.c.b16 %v1201, %v1201
    %v1218 = vpack.c.b16 %v1202, %v1202
    %v1219 = vpack.c.b16 %v1203, %v1203
    %v1220 = vpack.c.b16 %v1204, %v1204
    %v1222 = vunpack.c.l.s4 1966171168
    %v1223 = vunpack.c.0.s8 %v1222
    %v1224 = vlaneseq
    %v1225 = vshrl.u32 %v1224, 7
    %v1226 = vsub.s32 %v1223, %v1225
    %v1227 = vrot.slane %v1205, %v1226
    %v1228 = vcombine.high %v1227, %v1227
    %v1230 = vunpack.c.l.s4 1966171168
    %v1231 = vunpack.c.0.s8 %v1230
    %v1232 = vlaneseq
    %v1233 = vshrl.u32 %v1232, 7
    %v1234 = vsub.s32 %v1231, %v1233
    %v1235 = vrot.slane %v1227, %v1234
    %v1237 = vunpack.c.l.s4 1966171168
    %v1238 = vunpack.c.0.s8 %v1237
    %v1239 = vlaneseq
    %v1240 = vshrl.u32 %v1239, 7
    %v1241 = vsub.s32 %v1238, %v1240
    %v1242 = vrot.slane %v1228, %v1241
    %v1243 = vcombine.high %v1235, %v1235
    %v1244 = vcombine.high %v1242, %v1242
    %v1246 = vunpack.c.l.s4 1966171168
    %v1247 = vunpack.c.0.s8 %v1246
    %v1248 = vlaneseq
    %v1249 = vshrl.u32 %v1248, 7
    %v1250 = vsub.s32 %v1247, %v1249
    %v1251 = vrot.slane %v1207, %v1250
    %v1252 = vcombine.high %v1251, %v1251
    %v1254 = vunpack.c.l.s4 1966171168
    %v1255 = vunpack.c.0.s8 %v1254
    %v1256 = vlaneseq
    %v1257 = vshrl.u32 %v1256, 7
    %v1258 = vsub.s32 %v1255, %v1257
    %v1259 = vrot.slane %v1251, %v1258
    %v1261 = vunpack.c.l.s4 1966171168
    %v1262 = vunpack.c.0.s8 %v1261
    %v1263 = vlaneseq
    %v1264 = vshrl.u32 %v1263, 7
    %v1265 = vsub.s32 %v1262, %v1264
    %v1266 = vrot.slane %v1252, %v1265
    %v1267 = vcombine.high %v1259, %v1259
    %v1268 = vcombine.high %v1266, %v1266
    %v1270 = vunpack.c.l.s4 1966171168
    %v1271 = vunpack.c.0.s8 %v1270
    %v1272 = vlaneseq
    %v1273 = vshrl.u32 %v1272, 7
    %v1274 = vsub.s32 %v1271, %v1273
    %v1275 = vrot.slane %v1209, %v1274
    %v1276 = vcombine.high %v1275, %v1275
    %v1278 = vunpack.c.l.s4 1966171168
    %v1279 = vunpack.c.0.s8 %v1278
    %v1280 = vlaneseq
    %v1281 = vshrl.u32 %v1280, 7
    %v1282 = vsub.s32 %v1279, %v1281
    %v1283 = vrot.slane %v1275, %v1282
    %v1285 = vunpack.c.l.s4 1966171168
    %v1286 = vunpack.c.0.s8 %v1285
    %v1287 = vlaneseq
    %v1288 = vshrl.u32 %v1287, 7
    %v1289 = vsub.s32 %v1286, %v1288
    %v1290 = vrot.slane %v1276, %v1289
    %v1291 = vcombine.high %v1283, %v1283
    %v1292 = vcombine.high %v1290, %v1290
    %v1294 = vunpack.c.l.s4 1966171168
    %v1295 = vunpack.c.0.s8 %v1294
    %v1296 = vlaneseq
    %v1297 = vshrl.u32 %v1296, 7
    %v1298 = vsub.s32 %v1295, %v1297
    %v1299 = vrot.slane %v1211, %v1298
    %v1300 = vcombine.high %v1299, %v1299
    %v1302 = vunpack.c.l.s4 1966171168
    %v1303 = vunpack.c.0.s8 %v1302
    %v1304 = vlaneseq
    %v1305 = vshrl.u32 %v1304, 7
    %v1306 = vsub.s32 %v1303, %v1305
    %v1307 = vrot.slane %v1299, %v1306
    %v1309 = vunpack.c.l.s4 1966171168
    %v1310 = vunpack.c.0.s8 %v1309
    %v1311 = vlaneseq
    %v1312 = vshrl.u32 %v1311, 7
    %v1313 = vsub.s32 %v1310, %v1312
    %v1314 = vrot.slane %v1300, %v1313
    %v1315 = vcombine.high %v1307, %v1307
    %v1316 = vcombine.high %v1314, %v1314
    %v1318 = vunpack.c.l.s4 1966171168
    %v1319 = vunpack.c.0.s8 %v1318
    %v1320 = vlaneseq
    %v1321 = vshrl.u32 %v1320, 7
    %v1322 = vsub.s32 %v1319, %v1321
    %v1323 = vrot.slane %v1213, %v1322
    %v1324 = vcombine.high %v1323, %v1323
    %v1326 = vunpack.c.l.s4 1966171168
    %v1327 = vunpack.c.0.s8 %v1326
    %v1328 = vlaneseq
    %v1329 = vshrl.u32 %v1328, 7
    %v1330 = vsub.s32 %v1327, %v1329
    %v1331 = vrot.slane %v1323, %v1330
    %v1333 = vunpack.c.l.s4 1966171168
    %v1334 = vunpack.c.0.s8 %v1333
    %v1335 = vlaneseq
    %v1336 = vshrl.u32 %v1335, 7
    %v1337 = vsub.s32 %v1334, %v1336
    %v1338 = vrot.slane %v1324, %v1337
    %v1339 = vcombine.high %v1331, %v1331
    %v1340 = vcombine.high %v1338, %v1338
    %v1342 = vunpack.c.l.s4 1966171168
    %v1343 = vunpack.c.0.s8 %v1342
    %v1344 = vlaneseq
    %v1345 = vshrl.u32 %v1344, 7
    %v1346 = vsub.s32 %v1343, %v1345
    %v1347 = vrot.slane %v1215, %v1346
    %v1348 = vcombine.high %v1347, %v1347
    %v1350 = vunpack.c.l.s4 1966171168
    %v1351 = vunpack.c.0.s8 %v1350
    %v1352 = vlaneseq
    %v1353 = vshrl.u32 %v1352, 7
    %v1354 = vsub.s32 %v1351, %v1353
    %v1355 = vrot.slane %v1347, %v1354
    %v1357 = vunpack.c.l.s4 1966171168
    %v1358 = vunpack.c.0.s8 %v1357
    %v1359 = vlaneseq
    %v1360 = vshrl.u32 %v1359, 7
    %v1361 = vsub.s32 %v1358, %v1360
    %v1362 = vrot.slane %v1348, %v1361
    %v1363 = vcombine.high %v1355, %v1355
    %v1364 = vcombine.high %v1362, %v1362
    %v1366 = vunpack.c.l.s4 1966171168
    %v1367 = vunpack.c.0.s8 %v1366
    %v1368 = vlaneseq
    %v1369 = vshrl.u32 %v1368, 7
    %v1370 = vsub.s32 %v1367, %v1369
    %v1371 = vrot.slane %v1217, %v1370
    %v1372 = vcombine.high %v1371, %v1371
    %v1374 = vunpack.c.l.s4 1966171168
    %v1375 = vunpack.c.0.s8 %v1374
    %v1376 = vlaneseq
    %v1377 = vshrl.u32 %v1376, 7
    %v1378 = vsub.s32 %v1375, %v1377
    %v1379 = vrot.slane %v1371, %v1378
    %v1381 = vunpack.c.l.s4 1966171168
    %v1382 = vunpack.c.0.s8 %v1381
    %v1383 = vlaneseq
    %v1384 = vshrl.u32 %v1383, 7
    %v1385 = vsub.s32 %v1382, %v1384
    %v1386 = vrot.slane %v1372, %v1385
    %v1387 = vcombine.high %v1379, %v1379
    %v1388 = vcombine.high %v1386, %v1386
    %v1390 = vunpack.c.l.s4 1966171168
    %v1391 = vunpack.c.0.s8 %v1390
    %v1392 = vlaneseq
    %v1393 = vshrl.u32 %v1392, 7
    %v1394 = vsub.s32 %v1391, %v1393
    %v1395 = vrot.slane %v1219, %v1394
    %v1396 = vcombine.high %v1395, %v1395
    %v1398 = vunpack.c.l.s4 1966171168
    %v1399 = vunpack.c.0.s8 %v1398
    %v1400 = vlaneseq
    %v1401 = vshrl.u32 %v1400, 7
    %v1402 = vsub.s32 %v1399, %v1401
    %v1403 = vrot.slane %v1395, %v1402
    %v1405 = vunpack.c.l.s4 1966171168
    %v1406 = vunpack.c.0.s8 %v1405
    %v1407 = vlaneseq
    %v1408 = vshrl.u32 %v1407, 7
    %v1409 = vsub.s32 %v1406, %v1408
    %v1410 = vrot.slane %v1396, %v1409
    %v1411 = vcombine.high %v1403, %v1403
    %v1412 = vcombine.high %v1410, %v1410
    %v1414 = vunpack.c.l.s4 1966171168
    %v1415 = vunpack.c.0.s8 %v1414
    %v1416 = vlaneseq
    %v1417 = vshrl.u32 %v1416, 7
    %v1418 = vsub.s32 %v1415, %v1417
    %v1419 = vrot.slane %v1206, %v1418
    %v1420 = vcombine.high %v1419, %v1419
    %v1422 = vunpack.c.l.s4 1966171168
    %v1423 = vunpack.c.0.s8 %v1422
    %v1424 = vlaneseq
    %v1425 = vshrl.u32 %v1424, 7
    %v1426 = vsub.s32 %v1423, %v1425
    %v1427 = vrot.slane %v1419, %v1426
    %v1429 = vunpack.c.l.s4 1966171168
    %v1430 = vunpack.c.0.s8 %v1429
    %v1431 = vlaneseq
    %v1432 = vshrl.u32 %v1431, 7
    %v1433 = vsub.s32 %v1430, %v1432
    %v1434 = vrot.slane %v1420, %v1433
    %v1435 = vcombine.high %v1427, %v1427
    %v1436 = vcombine.high %v1434, %v1434
    %v1438 = vunpack.c.l.s4 1966171168
    %v1439 = vunpack.c.0.s8 %v1438
    %v1440 = vlaneseq
    %v1441 = vshrl.u32 %v1440, 7
    %v1442 = vsub.s32 %v1439, %v1441
    %v1443 = vrot.slane %v1208, %v1442
    %v1444 = vcombine.high %v1443, %v1443
    %v1446 = vunpack.c.l.s4 1966171168
    %v1447 = vunpack.c.0.s8 %v1446
    %v1448 = vlaneseq
    %v1449 = vshrl.u32 %v1448, 7
    %v1450 = vsub.s32 %v1447, %v1449
    %v1451 = vrot.slane %v1443, %v1450
    %v1453 = vunpack.c.l.s4 1966171168
    %v1454 = vunpack.c.0.s8 %v1453
    %v1455 = vlaneseq
    %v1456 = vshrl.u32 %v1455, 7
    %v1457 = vsub.s32 %v1454, %v1456
    %v1458 = vrot.slane %v1444, %v1457
    %v1459 = vcombine.high %v1451, %v1451
    %v1460 = vcombine.high %v1458, %v1458
    %v1462 = vunpack.c.l.s4 1966171168
    %v1463 = vunpack.c.0.s8 %v1462
    %v1464 = vlaneseq
    %v1465 = vshrl.u32 %v1464, 7
    %v1466 = vsub.s32 %v1463, %v1465
    %v1467 = vrot.slane %v1210, %v1466
    %v1468 = vcombine.high %v1467, %v1467
    %v1470 = vunpack.c.l.s4 1966171168
    %v1471 = vunpack.c.0.s8 %v1470
    %v1472 = vlaneseq
    %v1473 = vshrl.u32 %v1472, 7
    %v1474 = vsub.s32 %v1471, %v1473
    %v1475 = vrot.slane %v1467, %v1474
    %v1477 = vunpack.c.l.s4 1966171168
    %v1478 = vunpack.c.0.s8 %v1477
    %v1479 = vlaneseq
    %v1480 = vshrl.u32 %v1479, 7
    %v1481 = vsub.s32 %v1478, %v1480
    %v1482 = vrot.slane %v1468, %v1481
    %v1483 = vcombine.high %v1475, %v1475
    %v1484 = vcombine.high %v1482, %v1482
    %v1486 = vunpack.c.l.s4 1966171168
    %v1487 = vunpack.c.0.s8 %v1486
    %v1488 = vlaneseq
    %v1489 = vshrl.u32 %v1488, 7
    %v1490 = vsub.s32 %v1487, %v1489
    %v1491 = vrot.slane %v1212, %v1490
    %v1492 = vcombine.high %v1491, %v1491
    %v1494 = vunpack.c.l.s4 1966171168
    %v1495 = vunpack.c.0.s8 %v1494
    %v1496 = vlaneseq
    %v1497 = vshrl.u32 %v1496, 7
    %v1498 = vsub.s32 %v1495, %v1497
    %v1499 = vrot.slane %v1491, %v1498
    %v1501 = vunpack.c.l.s4 1966171168
    %v1502 = vunpack.c.0.s8 %v1501
    %v1503 = vlaneseq
    %v1504 = vshrl.u32 %v1503, 7
    %v1505 = vsub.s32 %v1502, %v1504
    %v1506 = vrot.slane %v1492, %v1505
    %v1507 = vcombine.high %v1499, %v1499
    %v1508 = vcombine.high %v1506, %v1506
    %v1510 = vunpack.c.l.s4 1966171168
    %v1511 = vunpack.c.0.s8 %v1510
    %v1512 = vlaneseq
    %v1513 = vshrl.u32 %v1512, 7
    %v1514 = vsub.s32 %v1511, %v1513
    %v1515 = vrot.slane %v1214, %v1514
    %v1516 = vcombine.high %v1515, %v1515
    %v1518 = vunpack.c.l.s4 1966171168
    %v1519 = vunpack.c.0.s8 %v1518
    %v1520 = vlaneseq
    %v1521 = vshrl.u32 %v1520, 7
    %v1522 = vsub.s32 %v1519, %v1521
    %v1523 = vrot.slane %v1515, %v1522
    %v1525 = vunpack.c.l.s4 1966171168
    %v1526 = vunpack.c.0.s8 %v1525
    %v1527 = vlaneseq
    %v1528 = vshrl.u32 %v1527, 7
    %v1529 = vsub.s32 %v1526, %v1528
    %v1530 = vrot.slane %v1516, %v1529
    %v1531 = vcombine.high %v1523, %v1523
    %v1532 = vcombine.high %v1530, %v1530
    %v1534 = vunpack.c.l.s4 1966171168
    %v1535 = vunpack.c.0.s8 %v1534
    %v1536 = vlaneseq
    %v1537 = vshrl.u32 %v1536, 7
    %v1538 = vsub.s32 %v1535, %v1537
    %v1539 = vrot.slane %v1216, %v1538
    %v1540 = vcombine.high %v1539, %v1539
    %v1542 = vunpack.c.l.s4 1966171168
    %v1543 = vunpack.c.0.s8 %v1542
    %v1544 = vlaneseq
    %v1545 = vshrl.u32 %v1544, 7
    %v1546 = vsub.s32 %v1543, %v1545
    %v1547 = vrot.slane %v1539, %v1546
    %v1549 = vunpack.c.l.s4 1966171168
    %v1550 = vunpack.c.0.s8 %v1549
    %v1551 = vlaneseq
    %v1552 = vshrl.u32 %v1551, 7
    %v1553 = vsub.s32 %v1550, %v1552
    %v1554 = vrot.slane %v1540, %v1553
    %v1555 = vcombine.high %v1547, %v1547
    %v1556 = vcombine.high %v1554, %v1554
    %v1558 = vunpack.c.l.s4 1966171168
    %v1559 = vunpack.c.0.s8 %v1558
    %v1560 = vlaneseq
    %v1561 = vshrl.u32 %v1560, 7
    %v1562 = vsub.s32 %v1559, %v1561
    %v1563 = vrot.slane %v1218, %v1562
    %v1564 = vcombine.high %v1563, %v1563
    %v1566 = vunpack.c.l.s4 1966171168
    %v1567 = vunpack.c.0.s8 %v1566
    %v1568 = vlaneseq
    %v1569 = vshrl.u32 %v1568, 7
    %v1570 = vsub.s32 %v1567, %v1569
    %v1571 = vrot.slane %v1563, %v1570
    %v1573 = vunpack.c.l.s4 1966171168
    %v1574 = vunpack.c.0.s8 %v1573
    %v1575 = vlaneseq
    %v1576 = vshrl.u32 %v1575, 7
    %v1577 = vsub.s32 %v1574, %v1576
    %v1578 = vrot.slane %v1564, %v1577
    %v1579 = vcombine.high %v1571, %v1571
    %v1580 = vcombine.high %v1578, %v1578
    %v1582 = vunpack.c.l.s4 1966171168
    %v1583 = vunpack.c.0.s8 %v1582
    %v1584 = vlaneseq
    %v1585 = vshrl.u32 %v1584, 7
    %v1586 = vsub.s32 %v1583, %v1585
    %v1587 = vrot.slane %v1220, %v1586
    %v1588 = vcombine.high %v1587, %v1587
    %v1590 = vunpack.c.l.s4 1966171168
    %v1591 = vunpack.c.0.s8 %v1590
    %v1592 = vlaneseq
    %v1593 = vshrl.u32 %v1592, 7
    %v1594 = vsub.s32 %v1591, %v1593
    %v1595 = vrot.slane %v1587, %v1594
    %v1597 = vunpack.c.l.s4 1966171168
    %v1598 = vunpack.c.0.s8 %v1597
    %v1599 = vlaneseq
    %v1600 = vshrl.u32 %v1599, 7
    %v1601 = vsub.s32 %v1598, %v1600
    %v1602 = vrot.slane %v1588, %v1601
    %v1603 = vcombine.high %v1595, %v1595
    %v1604 = vcombine.high %v1602, %v1602
    %v1605 = vld [vmem:[%s3] sm:$0xf]
    %v1606 = vld [vmem:[%s3 + $0x4] sm:$0xf]
    %v1607 = vld [vmem:[%s3 + $0x8] sm:$0xf]
    %v1608 = vld [vmem:[%s3 + $0xc] sm:$0xf]
    %v1609 = vld [vmem:[%s3 + $0x10] sm:$0xf]
    %v1610 = vld [vmem:[%s3 + $0x14] sm:$0xf]
    %v1611 = vld [vmem:[%s3 + $0x18] sm:$0xf]
    %v1612 = vld [vmem:[%s3 + $0x1c] sm:$0xf]
    %v1613 = vld [vmem:[%s3 + $0x20] sm:$0xf]
    %v1614 = vld [vmem:[%s3 + $0x24] sm:$0xf]
    %v1615 = vld [vmem:[%s3 + $0x28] sm:$0xf]
    %v1616 = vld [vmem:[%s3 + $0x2c] sm:$0xf]
    %v1617 = vld [vmem:[%s3 + $0x30] sm:$0xf]
    %v1618 = vld [vmem:[%s3 + $0x34] sm:$0xf]
    %v1619 = vld [vmem:[%s3 + $0x38] sm:$0xf]
    %v1620 = vld [vmem:[%s3 + $0x3c] sm:$0xf]
    %v1621 = vld [vmem:[%s3 + $0x40] sm:$0xf]
    %v1622 = vld [vmem:[%s3 + $0x44] sm:$0xf]
    %v1623 = vld [vmem:[%s3 + $0x48] sm:$0xf]
    %v1624 = vld [vmem:[%s3 + $0x4c] sm:$0xf]
    %v1625 = vld [vmem:[%s3 + $0x50] sm:$0xf]
    %v1626 = vld [vmem:[%s3 + $0x54] sm:$0xf]
    %v1627 = vld [vmem:[%s3 + $0x58] sm:$0xf]
    %v1628 = vld [vmem:[%s3 + $0x5c] sm:$0xf]
    %v1629 = vld [vmem:[%s3 + $0x60] sm:$0xf]
    %v1630 = vld [vmem:[%s3 + $0x64] sm:$0xf]
    %v1631 = vld [vmem:[%s3 + $0x68] sm:$0xf]
    %v1632 = vld [vmem:[%s3 + $0x6c] sm:$0xf]
    %v1633 = vld [vmem:[%s3 + $0x70] sm:$0xf]
    %v1634 = vld [vmem:[%s3 + $0x74] sm:$0xf]
    %v1635 = vld [vmem:[%s3 + $0x78] sm:$0xf]
    %v1636 = vld [vmem:[%s3 + $0x7c] sm:$0xf]
    %v1637 = vld [vmem:[%s3 + $0x80] sm:$0xf]
    %v1638 = vld [vmem:[%s3 + $0x84] sm:$0xf]
    %v1639 = vld [vmem:[%s3 + $0x88] sm:$0xf]
    %v1640 = vld [vmem:[%s3 + $0x8c] sm:$0xf]
    %v1641 = vld [vmem:[%s3 + $0x90] sm:$0xf]
    %v1642 = vld [vmem:[%s3 + $0x94] sm:$0xf]
    %v1643 = vld [vmem:[%s3 + $0x98] sm:$0xf]
    %v1644 = vld [vmem:[%s3 + $0x9c] sm:$0xf]
    %v1645 = vld [vmem:[%s3 + $0xa0] sm:$0xf]
    %v1646 = vld [vmem:[%s3 + $0xa4] sm:$0xf]
    %v1647 = vld [vmem:[%s3 + $0xa8] sm:$0xf]
    %v1648 = vld [vmem:[%s3 + $0xac] sm:$0xf]
    %v1649 = vld [vmem:[%s3 + $0xb0] sm:$0xf]
    %v1650 = vld [vmem:[%s3 + $0xb4] sm:$0xf]
    %v1651 = vld [vmem:[%s3 + $0xb8] sm:$0xf]
    %v1652 = vld [vmem:[%s3 + $0xbc] sm:$0xf]
    %v1653 = vld [vmem:[%s3 + $0xc0] sm:$0xf]
    %v1654 = vld [vmem:[%s3 + $0xc4] sm:$0xf]
    %v1655 = vld [vmem:[%s3 + $0xc8] sm:$0xf]
    %v1656 = vld [vmem:[%s3 + $0xcc] sm:$0xf]
    %v1657 = vld [vmem:[%s3 + $0xd0] sm:$0xf]
    %v1658 = vld [vmem:[%s3 + $0xd4] sm:$0xf]
    %v1659 = vld [vmem:[%s3 + $0xd8] sm:$0xf]
    %v1660 = vld [vmem:[%s3 + $0xdc] sm:$0xf]
    %v1661 = vld [vmem:[%s3 + $0xe0] sm:$0xf]
    %v1662 = vld [vmem:[%s3 + $0xe4] sm:$0xf]
    %v1663 = vld [vmem:[%s3 + $0xe8] sm:$0xf]
    %v1664 = vld [vmem:[%s3 + $0xec] sm:$0xf]
    %v1665 = vld [vmem:[%s3 + $0xf0] sm:$0xf]
    %v1666 = vld [vmem:[%s3 + $0xf4] sm:$0xf]
    %v1667 = vld [vmem:[%s3 + $0xf8] sm:$0xf]
    %v1668 = vld [vmem:[%s3 + $0xfc] sm:$0xf]
    %v1670 = vunpack.c.l.s4 1966171168
    %v1671 = vunpack.c.0.s8 %v1670
    %v1672 = vlaneseq
    %v1673 = vshrl.u32 %v1672, 7
    %v1674 = vsub.s32 %v1671, %v1673
    %v1675 = vrot.slane %v1235, %v1674
    %v1677 = vunpack.c.l.s4 1966171168
    %v1678 = vunpack.c.0.s8 %v1677
    %v1679 = vlaneseq
    %v1680 = vshrl.u32 %v1679, 7
    %v1681 = vsub.s32 %v1678, %v1680
    %v1682 = vrot.slane %v1675, %v1681
    %v1684 = vunpack.c.l.s4 1966171168
    %v1685 = vunpack.c.0.s8 %v1684
    %v1686 = vlaneseq
    %v1687 = vshrl.u32 %v1686, 7
    %v1688 = vsub.s32 %v1685, %v1687
    %v1689 = vrot.slane %v1242, %v1688
    %v1691 = vunpack.c.l.s4 1966171168
    %v1692 = vunpack.c.0.s8 %v1691
    %v1693 = vlaneseq
    %v1694 = vshrl.u32 %v1693, 7
    %v1695 = vsub.s32 %v1692, %v1694
    %v1696 = vrot.slane %v1689, %v1695
    %v1698 = vunpack.c.l.s4 1966171168
    %v1699 = vunpack.c.0.s8 %v1698
    %v1700 = vlaneseq
    %v1701 = vshrl.u32 %v1700, 7
    %v1702 = vsub.s32 %v1699, %v1701
    %v1703 = vrot.slane %v1243, %v1702
    %v1705 = vunpack.c.l.s4 1966171168
    %v1706 = vunpack.c.0.s8 %v1705
    %v1707 = vlaneseq
    %v1708 = vshrl.u32 %v1707, 7
    %v1709 = vsub.s32 %v1706, %v1708
    %v1710 = vrot.slane %v1703, %v1709
    %v1712 = vunpack.c.l.s4 1966171168
    %v1713 = vunpack.c.0.s8 %v1712
    %v1714 = vlaneseq
    %v1715 = vshrl.u32 %v1714, 7
    %v1716 = vsub.s32 %v1713, %v1715
    %v1717 = vrot.slane %v1259, %v1716
    %v1719 = vunpack.c.l.s4 1966171168
    %v1720 = vunpack.c.0.s8 %v1719
    %v1721 = vlaneseq
    %v1722 = vshrl.u32 %v1721, 7
    %v1723 = vsub.s32 %v1720, %v1722
    %v1724 = vrot.slane %v1717, %v1723
    %v1726 = vunpack.c.l.s4 1966171168
    %v1727 = vunpack.c.0.s8 %v1726
    %v1728 = vlaneseq
    %v1729 = vshrl.u32 %v1728, 7
    %v1730 = vsub.s32 %v1727, %v1729
    %v1731 = vrot.slane %v1266, %v1730
    %v1733 = vunpack.c.l.s4 1966171168
    %v1734 = vunpack.c.0.s8 %v1733
    %v1735 = vlaneseq
    %v1736 = vshrl.u32 %v1735, 7
    %v1737 = vsub.s32 %v1734, %v1736
    %v1738 = vrot.slane %v1731, %v1737
    %v1740 = vunpack.c.l.s4 1966171168
    %v1741 = vunpack.c.0.s8 %v1740
    %v1742 = vlaneseq
    %v1743 = vshrl.u32 %v1742, 7
    %v1744 = vsub.s32 %v1741, %v1743
    %v1745 = vrot.slane %v1267, %v1744
    %v1747 = vunpack.c.l.s4 1966171168
    %v1748 = vunpack.c.0.s8 %v1747
    %v1749 = vlaneseq
    %v1750 = vshrl.u32 %v1749, 7
    %v1751 = vsub.s32 %v1748, %v1750
    %v1752 = vrot.slane %v1745, %v1751
    %v1754 = vunpack.c.l.s4 1966171168
    %v1755 = vunpack.c.0.s8 %v1754
    %v1756 = vlaneseq
    %v1757 = vshrl.u32 %v1756, 7
    %v1758 = vsub.s32 %v1755, %v1757
    %v1759 = vrot.slane %v1283, %v1758
    %v1761 = vunpack.c.l.s4 1966171168
    %v1762 = vunpack.c.0.s8 %v1761
    %v1763 = vlaneseq
    %v1764 = vshrl.u32 %v1763, 7
    %v1765 = vsub.s32 %v1762, %v1764
    %v1766 = vrot.slane %v1759, %v1765
    %v1768 = vunpack.c.l.s4 1966171168
    %v1769 = vunpack.c.0.s8 %v1768
    %v1770 = vlaneseq
    %v1771 = vshrl.u32 %v1770, 7
    %v1772 = vsub.s32 %v1769, %v1771
    %v1773 = vrot.slane %v1290, %v1772
    %v1775 = vunpack.c.l.s4 1966171168
    %v1776 = vunpack.c.0.s8 %v1775
    %v1777 = vlaneseq
    %v1778 = vshrl.u32 %v1777, 7
    %v1779 = vsub.s32 %v1776, %v1778
    %v1780 = vrot.slane %v1773, %v1779
    %v1782 = vunpack.c.l.s4 1966171168
    %v1783 = vunpack.c.0.s8 %v1782
    %v1784 = vlaneseq
    %v1785 = vshrl.u32 %v1784, 7
    %v1786 = vsub.s32 %v1783, %v1785
    %v1787 = vrot.slane %v1291, %v1786
    %v1789 = vunpack.c.l.s4 1966171168
    %v1790 = vunpack.c.0.s8 %v1789
    %v1791 = vlaneseq
    %v1792 = vshrl.u32 %v1791, 7
    %v1793 = vsub.s32 %v1790, %v1792
    %v1794 = vrot.slane %v1787, %v1793
    %v1796 = vunpack.c.l.s4 1966171168
    %v1797 = vunpack.c.0.s8 %v1796
    %v1798 = vlaneseq
    %v1799 = vshrl.u32 %v1798, 7
    %v1800 = vsub.s32 %v1797, %v1799
    %v1801 = vrot.slane %v1331, %v1800
    %v1803 = vunpack.c.l.s4 1966171168
    %v1804 = vunpack.c.0.s8 %v1803
    %v1805 = vlaneseq
    %v1806 = vshrl.u32 %v1805, 7
    %v1807 = vsub.s32 %v1804, %v1806
    %v1808 = vrot.slane %v1801, %v1807
    %v1810 = vunpack.c.l.s4 1966171168
    %v1811 = vunpack.c.0.s8 %v1810
    %v1812 = vlaneseq
    %v1813 = vshrl.u32 %v1812, 7
    %v1814 = vsub.s32 %v1811, %v1813
    %v1815 = vrot.slane %v1338, %v1814
    %v1817 = vunpack.c.l.s4 1966171168
    %v1818 = vunpack.c.0.s8 %v1817
    %v1819 = vlaneseq
    %v1820 = vshrl.u32 %v1819, 7
    %v1821 = vsub.s32 %v1818, %v1820
    %v1822 = vrot.slane %v1815, %v1821
    %v1824 = vunpack.c.l.s4 1966171168
    %v1825 = vunpack.c.0.s8 %v1824
    %v1826 = vlaneseq
    %v1827 = vshrl.u32 %v1826, 7
    %v1828 = vsub.s32 %v1825, %v1827
    %v1829 = vrot.slane %v1339, %v1828
    %v1831 = vunpack.c.l.s4 1966171168
    %v1832 = vunpack.c.0.s8 %v1831
    %v1833 = vlaneseq
    %v1834 = vshrl.u32 %v1833, 7
    %v1835 = vsub.s32 %v1832, %v1834
    %v1836 = vrot.slane %v1829, %v1835
    %v1838 = vunpack.c.l.s4 1966171168
    %v1839 = vunpack.c.0.s8 %v1838
    %v1840 = vlaneseq
    %v1841 = vshrl.u32 %v1840, 7
    %v1842 = vsub.s32 %v1839, %v1841
    %v1843 = vrot.slane %v1355, %v1842
    %v1845 = vunpack.c.l.s4 1966171168
    %v1846 = vunpack.c.0.s8 %v1845
    %v1847 = vlaneseq
    %v1848 = vshrl.u32 %v1847, 7
    %v1849 = vsub.s32 %v1846, %v1848
    %v1850 = vrot.slane %v1843, %v1849
    %v1852 = vunpack.c.l.s4 1966171168
    %v1853 = vunpack.c.0.s8 %v1852
    %v1854 = vlaneseq
    %v1855 = vshrl.u32 %v1854, 7
    %v1856 = vsub.s32 %v1853, %v1855
    %v1857 = vrot.slane %v1362, %v1856
    %v1859 = vunpack.c.l.s4 1966171168
    %v1860 = vunpack.c.0.s8 %v1859
    %v1861 = vlaneseq
    %v1862 = vshrl.u32 %v1861, 7
    %v1863 = vsub.s32 %v1860, %v1862
    %v1864 = vrot.slane %v1857, %v1863
    %v1866 = vunpack.c.l.s4 1966171168
    %v1867 = vunpack.c.0.s8 %v1866
    %v1868 = vlaneseq
    %v1869 = vshrl.u32 %v1868, 7
    %v1870 = vsub.s32 %v1867, %v1869
    %v1871 = vrot.slane %v1363, %v1870
    %v1873 = vunpack.c.l.s4 1966171168
    %v1874 = vunpack.c.0.s8 %v1873
    %v1875 = vlaneseq
    %v1876 = vshrl.u32 %v1875, 7
    %v1877 = vsub.s32 %v1874, %v1876
    %v1878 = vrot.slane %v1871, %v1877
    %v1880 = vunpack.c.l.s4 1966171168
    %v1881 = vunpack.c.0.s8 %v1880
    %v1882 = vlaneseq
    %v1883 = vshrl.u32 %v1882, 7
    %v1884 = vsub.s32 %v1881, %v1883
    %v1885 = vrot.slane %v1379, %v1884
    %v1887 = vunpack.c.l.s4 1966171168
    %v1888 = vunpack.c.0.s8 %v1887
    %v1889 = vlaneseq
    %v1890 = vshrl.u32 %v1889, 7
    %v1891 = vsub.s32 %v1888, %v1890
    %v1892 = vrot.slane %v1885, %v1891
    %v1894 = vunpack.c.l.s4 1966171168
    %v1895 = vunpack.c.0.s8 %v1894
    %v1896 = vlaneseq
    %v1897 = vshrl.u32 %v1896, 7
    %v1898 = vsub.s32 %v1895, %v1897
    %v1899 = vrot.slane %v1386, %v1898
    %v1901 = vunpack.c.l.s4 1966171168
    %v1902 = vunpack.c.0.s8 %v1901
    %v1903 = vlaneseq
    %v1904 = vshrl.u32 %v1903, 7
    %v1905 = vsub.s32 %v1902, %v1904
    %v1906 = vrot.slane %v1899, %v1905
    %v1908 = vunpack.c.l.s4 1966171168
    %v1909 = vunpack.c.0.s8 %v1908
    %v1910 = vlaneseq
    %v1911 = vshrl.u32 %v1910, 7
    %v1912 = vsub.s32 %v1909, %v1911
    %v1913 = vrot.slane %v1387, %v1912
    %v1915 = vunpack.c.l.s4 1966171168
    %v1916 = vunpack.c.0.s8 %v1915
    %v1917 = vlaneseq
    %v1918 = vshrl.u32 %v1917, 7
    %v1919 = vsub.s32 %v1916, %v1918
    %v1920 = vrot.slane %v1913, %v1919
    %v1921 = vunpack.c.l.b16 %v1682
    %v1922 = vunpack.c.l.b16 %v1696
    %v1923 = vunpack.c.l.b16 %v1710
    %v1924 = vunpack.c.l.b16 %v1724
    %v1925 = vunpack.c.l.b16 %v1738
    %v1926 = vunpack.c.l.b16 %v1752
    %v1927 = vunpack.c.l.b16 %v1766
    %v1928 = vunpack.c.l.b16 %v1780
    %v1929 = vunpack.c.l.b16 %v1794
    %v1930 = vunpack.c.l.b16 %v1808
    %v1931 = vunpack.c.l.b16 %v1822
    %v1932 = vunpack.c.l.b16 %v1836
    %v1933 = vunpack.c.l.b16 %v1850
    %v1934 = vunpack.c.l.b16 %v1864
    %v1935 = vunpack.c.l.b16 %v1878
    %v1936 = vunpack.c.l.b16 %v1892
    %v1937 = vunpack.c.l.b16 %v1906
    %v1938 = vunpack.c.l.b16 %v1920
    %v1939 = vrot.slane %v1921, 1
    %vm1940 = vcmask 1041409
    %v1941 = vsel %vm1940, %v1922, %v1939
    %v1942 = vrot.slane %v1923, 7
    %vm1943 = vcmask 1042434
    %v1944 = vsel %vm1943, %v1942, %v1941
    %v1945 = vrot.slane %v1924, 6
    %vm1946 = vcmask 1043459
    %v1947 = vsel %vm1946, %v1945, %v1944
    %v1948 = vrot.slane %v1925, 5
    %vm1949 = vcmask 1044484
    %v1950 = vsel %vm1949, %v1948, %v1947
    %v1951 = vrot.slane %v1926, 4
    %vm1952 = vcmask 1045509
    %v1953 = vsel %vm1952, %v1951, %v1950
    %v1954 = vrot.slane %v1927, 3
    %vm1955 = vcmask 1046534
    %v1956 = vsel %vm1955, %v1954, %v1953
    %v1957 = vrot.slane %v1928, 2
    %vm1958 = vcmask 1047559
    %v1959 = vsel %vm1958, %v1957, %v1956
    %v1960 = vrot.slane %v1929, 1
    %v1961 = vsel %vm1940, %v1930, %v1960
    %v1962 = vrot.slane %v1931, 7
    %v1963 = vsel %vm1943, %v1962, %v1961
    %v1964 = vrot.slane %v1932, 6
    %v1965 = vsel %vm1946, %v1964, %v1963
    %v1966 = vrot.slane %v1933, 5
    %v1967 = vsel %vm1949, %v1966, %v1965
    %v1968 = vrot.slane %v1934, 4
    %v1969 = vsel %vm1952, %v1968, %v1967
    %v1970 = vrot.slane %v1935, 3
    %v1971 = vsel %vm1955, %v1970, %v1969
    %v1972 = vrot.slane %v1936, 2
    %v1973 = vsel %vm1958, %v1972, %v1971
    %v1974 = vrot.slane %v1937, 1
    %v1975 = vsel %vm1940, %v1938, %v1974
    %v1976 = vpack.c.b16 %v1973, %v1959
    %v1977 = vpack.c.b16 %v1975, %v1975
    %v1982 = vunpack.c.l.b16 %v1609
    %v1983 = vunpack.c.l.b16 %v1610
    %v1984 = vunpack.c.l.b16 %v1611
    %v1985 = vunpack.c.l.b16 %v1612
    %v1986 = vpack.c.b16 %v1983, %v1982
    %v1987 = vpack.c.b16 %v1985, %v1984
    %vm1990 = vcmask 261120
    %v1992 = vsel %vm1990, %v1976, 0
    %v1995 = vsel %vm1990, %v1977, 0
    %1997 = vmatprep.subr.bf16.mxu0 0
    %1998 = vmatpush1.bf16.msra.mxu0 %v1986
    %1999 = vmatprep.subr.bf16.mxu0 0
    %2000 = vmatpush1.bf16.msra.mxu0 %v1987
    %2001 = vmatprep.subr.bf16.mxu0 0
    %2002 = vmatpush1.bf16.msra.mxu0 0
    %2003 = vmatprep.subr.bf16.mxu0 0
    %2004 = vmatpush1.bf16.msra.mxu0 0
    %2005 = vmatprep.subr.bf16.mxu0 0
    %2006 = vmatpush1.bf16.msra.mxu0 0
    %2007 = vmatprep.subr.bf16.mxu0 0
    %2008 = vmatpush1.bf16.msra.mxu0 0
    %2009 = vmatprep.subr.bf16.mxu0 0
    %2010 = vmatpush1.bf16.msra.mxu0 0
    %2011 = vmatprep.subr.bf16.mxu0 0
    %2012 = vmatpush1.bf16.msra.mxu0 0
    %2013 = vmatprep.subr.bf16.mxu0 0
    %2014 = vmatpush1.bf16.msra.mxu0 0
    %2015 = vmatprep.subr.bf16.mxu0 0
    %2016 = vmatpush1.bf16.msra.mxu0 0
    %2017 = vmatprep.subr.bf16.mxu0 0
    %2018 = vmatpush1.bf16.msra.mxu0 0
    %2019 = vmatprep.subr.bf16.mxu0 0
    %2020 = vmatpush1.bf16.msra.mxu0 0
    %2021 = vmatprep.subr.bf16.mxu0 0
    %2022 = vmatpush1.bf16.msra.mxu0 0
    %2023 = vmatprep.subr.bf16.mxu0 0
    %2024 = vmatpush1.bf16.msra.mxu0 0
    %2025 = vmatprep.subr.bf16.mxu0 0
    %2026 = vmatpush1.bf16.msra.mxu0 0
    %2027 = vmatprep.subr.bf16.mxu0 0
    %2028 = vmatpush1.bf16.msra.mxu0 0
    %2029 = vmatprep.mubr.bf16.mxu0 0
    %2030 = vmatmul.mubr.bf16.gmra.mrb[0].mxu0 %v1992
    %v2031 = vpop.f32.mrb[0].mxu0
    %v2032 = vadd.f32 0.0, %v2031
    %v2033 = vpop.f32.mrb[0].mxu0
    %v2034 = vpop.f32.mrb[0].mxu0
    %v2035 = vadd.f32 0.0, %v2034
    %v2036 = vpop.f32.mrb[0].mxu0
    %2037 = vmatprep.mubr.bf16.mxu0 0
    %2038 = vmatmul.mubr.bf16.gmra.mrb[0].mxu0 %v1995
    %v2039 = vpop.f32.mrb[0].mxu0
    %v2040 = vadd.f32 0.0, %v2039
    %v2041 = vpop.f32.mrb[0].mxu0
    %v2042 = vpop.f32.mrb[0].mxu0
    %v2043 = vpop.f32.mrb[0].mxu0
    %2044 = vdwg.mxu0
    %v2045 = vrot.slane %v1922, 7
    %v2046 = vsel %vm1940, %v2045, %v1921
    %v2047 = vrot.slane %v1923, 6
    %v2048 = vsel %vm1943, %v2047, %v2046
    %v2049 = vrot.slane %v1924, 5
    %v2050 = vsel %vm1946, %v2049, %v2048
    %v2051 = vrot.slane %v1925, 4
    %v2052 = vsel %vm1949, %v2051, %v2050
    %v2053 = vrot.slane %v1926, 3
    %v2054 = vsel %vm1952, %v2053, %v2052
    %v2055 = vrot.slane %v1927, 2
    %v2056 = vsel %vm1955, %v2055, %v2054
    %v2057 = vrot.slane %v1928, 1
    %v2058 = vsel %vm1958, %v2057, %v2056
    %v2059 = vrot.slane %v1930, 7
    %v2060 = vsel %vm1940, %v2059, %v1929
    %v2061 = vrot.slane %v1931, 6
    %v2062 = vsel %vm1943, %v2061, %v2060
    %v2063 = vrot.slane %v1932, 5
    %v2064 = vsel %vm1946, %v2063, %v2062
    %v2065 = vrot.slane %v1933, 4
    %v2066 = vsel %vm1949, %v2065, %v2064
    %v2067 = vrot.slane %v1934, 3
    %v2068 = vsel %vm1952, %v2067, %v2066
    %v2069 = vrot.slane %v1935, 2
    %v2070 = vsel %vm1955, %v2069, %v2068
    %v2071 = vrot.slane %v1936, 1
    %v2072 = vsel %vm1958, %v2071, %v2070
    %v2073 = vrot.slane %v1938, 7
    %v2074 = vsel %vm1940, %v2073, %v1937
    %v2075 = vpack.c.b16 %v2072, %v2058
    %v2076 = vpack.c.b16 %v2074, %v2074
    %v2081 = vunpack.c.l.b16 %v1605
    %v2082 = vunpack.c.l.b16 %v1606
    %v2083 = vunpack.c.l.b16 %v1607
    %v2084 = vunpack.c.l.b16 %v1608
    %v2085 = vpack.c.b16 %v2082, %v2081
    %v2086 = vpack.c.b16 %v2084, %v2083
    %v2090 = vsel %vm1990, %v2075, 0
    %v2093 = vsel %vm1990, %v2076, 0
    %2095 = vmatprep.subr.bf16.mxu0 0
    %2096 = vmatpush1.bf16.msra.mxu0 %v2085
    %2097 = vmatprep.subr.bf16.mxu0 0
    %2098 = vmatpush1.bf16.msra.mxu0 %v2086
    %2099 = vmatprep.subr.bf16.mxu0 0
    %2100 = vmatpush1.bf16.msra.mxu0 0
    %2101 = vmatprep.subr.bf16.mxu0 0
    %2102 = vmatpush1.bf16.msra.mxu0 0
    %2103 = vmatprep.subr.bf16.mxu0 0
    %2104 = vmatpush1.bf16.msra.mxu0 0
    %2105 = vmatprep.subr.bf16.mxu0 0
    %2106 = vmatpush1.bf16.msra.mxu0 0
    %2107 = vmatprep.subr.bf16.mxu0 0
    %2108 = vmatpush1.bf16.msra.mxu0 0
    %2109 = vmatprep.subr.bf16.mxu0 0
    %2110 = vmatpush1.bf16.msra.mxu0 0
    %2111 = vmatprep.subr.bf16.mxu0 0
    %2112 = vmatpush1.bf16.msra.mxu0 0
    %2113 = vmatprep.subr.bf16.mxu0 0
    %2114 = vmatpush1.bf16.msra.mxu0 0
    %2115 = vmatprep.subr.bf16.mxu0 0
    %2116 = vmatpush1.bf16.msra.mxu0 0
    %2117 = vmatprep.subr.bf16.mxu0 0
    %2118 = vmatpush1.bf16.msra.mxu0 0
    %2119 = vmatprep.subr.bf16.mxu0 0
    %2120 = vmatpush1.bf16.msra.mxu0 0
    %2121 = vmatprep.subr.bf16.mxu0 0
    %2122 = vmatpush1.bf16.msra.mxu0 0
    %2123 = vmatprep.subr.bf16.mxu0 0
    %2124 = vmatpush1.bf16.msra.mxu0 0
    %2125 = vmatprep.subr.bf16.mxu0 0
    %2126 = vmatpush1.bf16.msra.mxu0 0
    %2127 = vmatprep.mubr.bf16.mxu0 0
    %2128 = vmatmul.mubr.bf16.gmra.mrb[0].mxu0 %v2090
    %v2129 = vpop.f32.mrb[0].mxu0
    %v2130 = vadd.f32 %v2032, %v2129
    %v2131 = vpop.f32.mrb[0].mxu0
    %v2132 = vpop.f32.mrb[0].mxu0
    %v2133 = vadd.f32 %v2035, %v2132
    %v2134 = vpop.f32.mrb[0].mxu0
    %2135 = vmatprep.mubr.bf16.mxu0 0
    %2136 = vmatmul.mubr.bf16.gmra.mrb[0].mxu0 %v2093
    %v2137 = vpop.f32.mrb[0].mxu0
    %v2138 = vadd.f32 %v2040, %v2137
    %v2139 = vpop.f32.mrb[0].mxu0
    %v2140 = vpop.f32.mrb[0].mxu0
    %v2141 = vpop.f32.mrb[0].mxu0
    %2142 = vdwg.mxu0
    %v2144 = vunpack.c.l.s4 1966171168
    %v2145 = vunpack.c.0.s8 %v2144
    %v2146 = vlaneseq
    %v2147 = vshrl.u32 %v2146, 7
    %v2148 = vsub.s32 %v2145, %v2147
    %v2149 = vrot.slane %v1244, %v2148
    %v2151 = vunpack.c.l.s4 1966171168
    %v2152 = vunpack.c.0.s8 %v2151
    %v2153 = vlaneseq
    %v2154 = vshrl.u32 %v2153, 7
    %v2155 = vsub.s32 %v2152, %v2154
    %v2156 = vrot.slane %v2149, %v2155
    %v2158 = vunpack.c.l.s4 1966171168
    %v2159 = vunpack.c.0.s8 %v2158
    %v2160 = vlaneseq
    %v2161 = vshrl.u32 %v2160, 7
    %v2162 = vsub.s32 %v2159, %v2161
    %v2163 = vrot.slane %v1268, %v2162
    %v2165 = vunpack.c.l.s4 1966171168
    %v2166 = vunpack.c.0.s8 %v2165
    %v2167 = vlaneseq
    %v2168 = vshrl.u32 %v2167, 7
    %v2169 = vsub.s32 %v2166, %v2168
    %v2170 = vrot.slane %v2163, %v2169
    %v2172 = vunpack.c.l.s4 1966171168
    %v2173 = vunpack.c.0.s8 %v2172
    %v2174 = vlaneseq
    %v2175 = vshrl.u32 %v2174, 7
    %v2176 = vsub.s32 %v2173, %v2175
    %v2177 = vrot.slane %v1292, %v2176
    %v2179 = vunpack.c.l.s4 1966171168
    %v2180 = vunpack.c.0.s8 %v2179
    %v2181 = vlaneseq
    %v2182 = vshrl.u32 %v2181, 7
    %v2183 = vsub.s32 %v2180, %v2182
    %v2184 = vrot.slane %v2177, %v2183
    %v2186 = vunpack.c.l.s4 1966171168
    %v2187 = vunpack.c.0.s8 %v2186
    %v2188 = vlaneseq
    %v2189 = vshrl.u32 %v2188, 7
    %v2190 = vsub.s32 %v2187, %v2189
    %v2191 = vrot.slane %v1340, %v2190
    %v2193 = vunpack.c.l.s4 1966171168
    %v2194 = vunpack.c.0.s8 %v2193
    %v2195 = vlaneseq
    %v2196 = vshrl.u32 %v2195, 7
    %v2197 = vsub.s32 %v2194, %v2196
    %v2198 = vrot.slane %v2191, %v2197
    %v2200 = vunpack.c.l.s4 1966171168
    %v2201 = vunpack.c.0.s8 %v2200
    %v2202 = vlaneseq
    %v2203 = vshrl.u32 %v2202, 7
    %v2204 = vsub.s32 %v2201, %v2203
    %v2205 = vrot.slane %v1364, %v2204
    %v2207 = vunpack.c.l.s4 1966171168
    %v2208 = vunpack.c.0.s8 %v2207
    %v2209 = vlaneseq
    %v2210 = vshrl.u32 %v2209, 7
    %v2211 = vsub.s32 %v2208, %v2210
    %v2212 = vrot.slane %v2205, %v2211
    %v2214 = vunpack.c.l.s4 1966171168
    %v2215 = vunpack.c.0.s8 %v2214
    %v2216 = vlaneseq
    %v2217 = vshrl.u32 %v2216, 7
    %v2218 = vsub.s32 %v2215, %v2217
    %v2219 = vrot.slane %v1388, %v2218
    %v2221 = vunpack.c.l.s4 1966171168
    %v2222 = vunpack.c.0.s8 %v2221
    %v2223 = vlaneseq
    %v2224 = vshrl.u32 %v2223, 7
    %v2225 = vsub.s32 %v2222, %v2224
    %v2226 = vrot.slane %v2219, %v2225
    %v2227 = vunpack.c.l.b16 %v2156
    %v2228 = vunpack.c.l.b16 %v2170
    %v2229 = vunpack.c.l.b16 %v2184
    %v2230 = vunpack.c.l.b16 %v2198
    %v2231 = vunpack.c.l.b16 %v2212
    %v2232 = vunpack.c.l.b16 %v2226
    %v2233 = vsel %vm1940, %v1942, %v1922
    %v2234 = vrot.slane %v2227, 6
    %v2235 = vsel %vm1943, %v2234, %v2233
    %v2236 = vsel %vm1946, %v1948, %v2235
    %v2237 = vsel %vm1949, %v1951, %v2236
    %v2238 = vrot.slane %v2228, 3
    %v2239 = vsel %vm1952, %v2238, %v2237
    %v2240 = vsel %vm1955, %v1957, %v2239
    %v2241 = vsel %vm1958, %v1960, %v2240
    %v2242 = vsel %vm1940, %v1962, %v2229
    %v2243 = vsel %vm1943, %v1964, %v2242
    %v2244 = vrot.slane %v2230, 5
    %v2245 = vsel %vm1946, %v2244, %v2243
    %v2246 = vsel %vm1949, %v1968, %v2245
    %v2247 = vsel %vm1952, %v1970, %v2246
    %v2248 = vrot.slane %v2231, 2
    %v2249 = vsel %vm1955, %v2248, %v2247
    %v2250 = vsel %vm1958, %v1974, %v2249
    %v2251 = vrot.slane %v2232, 7
    %v2252 = vsel %vm1940, %v2251, %v1938
    %v2253 = vpack.c.b16 %v2250, %v2241
    %v2254 = vpack.c.b16 %v2252, %v2252
    %v2259 = vunpack.c.l.b16 %v1613
    %v2260 = vunpack.c.l.b16 %v1614
    %v2261 = vunpack.c.l.b16 %v1615
    %v2262 = vunpack.c.l.b16 %v1616
    %v2263 = vpack.c.b16 %v2260, %v2259
    %v2264 = vpack.c.b16 %v2262, %v2261
    %v2268 = vsel %vm1990, %v2253, 0
    %v2271 = vsel %vm1990, %v2254, 0
    %2273 = vmatprep.subr.bf16.mxu0 0
    %2274 = vmatpush1.bf16.msra.mxu0 %v2263
    %2275 = vmatprep.subr.bf16.mxu0 0
    %2276 = vmatpush1.bf16.msra.mxu0 %v2264
    %2277 = vmatprep.subr.bf16.mxu0 0
    %2278 = vmatpush1.bf16.msra.mxu0 0
    %2279 = vmatprep.subr.bf16.mxu0 0
    %2280 = vmatpush1.bf16.msra.mxu0 0
    %2281 = vmatprep.subr.bf16.mxu0 0
    %2282 = vmatpush1.bf16.msra.mxu0 0
    %2283 = vmatprep.subr.bf16.mxu0 0
    %2284 = vmatpush1.bf16.msra.mxu0 0
    %2285 = vmatprep.subr.bf16.mxu0 0
    %2286 = vmatpush1.bf16.msra.mxu0 0
    %2287 = vmatprep.subr.bf16.mxu0 0
    %2288 = vmatpush1.bf16.msra.mxu0 0
    %2289 = vmatprep.subr.bf16.mxu0 0
    %2290 = vmatpush1.bf16.msra.mxu0 0
    %2291 = vmatprep.subr.bf16.mxu0 0
    %2292 = vmatpush1.bf16.msra.mxu0 0
    %2293 = vmatprep.subr.bf16.mxu0 0
    %2294 = vmatpush1.bf16.msra.mxu0 0
    %2295 = vmatprep.subr.bf16.mxu0 0
    %2296 = vmatpush1.bf16.msra.mxu0 0
    %2297 = vmatprep.subr.bf16.mxu0 0
    %2298 = vmatpush1.bf16.msra.mxu0 0
    %2299 = vmatprep.subr.bf16.mxu0 0
    %2300 = vmatpush1.bf16.msra.mxu0 0
    %2301 = vmatprep.subr.bf16.mxu0 0
    %2302 = vmatpush1.bf16.msra.mxu0 0
    %2303 = vmatprep.subr.bf16.mxu0 0
    %2304 = vmatpush1.bf16.msra.mxu0 0
    %2305 = vmatprep.mubr.bf16.mxu0 0
    %2306 = vmatmul.mubr.bf16.gmra.mrb[0].mxu0 %v2268
    %v2307 = vpop.f32.mrb[0].mxu0
    %v2308 = vadd.f32 0.0, %v2307
    %v2309 = vpop.f32.mrb[0].mxu0
    %v2310 = vpop.f32.mrb[0].mxu0
    %v2311 = vadd.f32 0.0, %v2310
    %v2312 = vpop.f32.mrb[0].mxu0
    %2313 = vmatprep.mubr.bf16.mxu0 0
    %2314 = vmatmul.mubr.bf16.gmra.mrb[0].mxu0 %v2271
    %v2315 = vpop.f32.mrb[0].mxu0
    %v2316 = vadd.f32 0.0, %v2315
    %v2317 = vpop.f32.mrb[0].mxu0
    %v2318 = vpop.f32.mrb[0].mxu0
    %v2319 = vpop.f32.mrb[0].mxu0
    %2320 = vdwg.mxu0
    %v2321 = vadd.f32 %v2130, %v2308
    %v2322 = vadd.f32 %v2133, %v2311
    %v2323 = vadd.f32 %v2138, %v2316
    %v2324 = vrot.slane %v1922, 1
    %v2325 = vsel %vm1940, %v1923, %v2324
    %v2326 = vrot.slane %v2227, 7
    %v2327 = vsel %vm1943, %v2326, %v2325
    %v2328 = vrot.slane %v1925, 6
    %v2329 = vsel %vm1946, %v2328, %v2327
    %v2330 = vrot.slane %v1926, 5
    %v2331 = vsel %vm1949, %v2330, %v2329
    %v2332 = vrot.slane %v2228, 4
    %v2333 = vsel %vm1952, %v2332, %v2331
    %v2334 = vrot.slane %v1928, 3
    %v2335 = vsel %vm1955, %v2334, %v2333
    %v2336 = vrot.slane %v1929, 2
    %v2337 = vsel %vm1958, %v2336, %v2335
    %v2338 = vrot.slane %v2229, 1
    %v2339 = vsel %vm1940, %v1931, %v2338
    %v2340 = vrot.slane %v1932, 7
    %v2341 = vsel %vm1943, %v2340, %v2339
    %v2342 = vrot.slane %v2230, 6
    %v2343 = vsel %vm1946, %v2342, %v2341
    %v2344 = vrot.slane %v1934, 5
    %v2345 = vsel %vm1949, %v2344, %v2343
    %v2346 = vrot.slane %v1935, 4
    %v2347 = vsel %vm1952, %v2346, %v2345
    %v2348 = vrot.slane %v2231, 3
    %v2349 = vsel %vm1955, %v2348, %v2347
    %v2350 = vrot.slane %v1937, 2
    %v2351 = vsel %vm1958, %v2350, %v2349
    %v2352 = vrot.slane %v1938, 1
    %v2353 = vsel %vm1940, %v2232, %v2352
    %v2354 = vpack.c.b16 %v2351, %v2337
    %v2355 = vpack.c.b16 %v2353, %v2353
    %v2360 = vunpack.c.l.b16 %v1617
    %v2361 = vunpack.c.l.b16 %v1618
    %v2362 = vunpack.c.l.b16 %v1619
    %v2363 = vunpack.c.l.b16 %v1620
    %v2364 = vpack.c.b16 %v2361, %v2360
    %v2365 = vpack.c.b16 %v2363, %v2362
    %v2369 = vsel %vm1990, %v2354, 0
    %v2372 = vsel %vm1990, %v2355, 0
    %2374 = vmatprep.subr.bf16.mxu0 0
    %2375 = vmatpush1.bf16.msra.mxu0 %v2364
    %2376 = vmatprep.subr.bf16.mxu0 0
    %2377 = vmatpush1.bf16.msra.mxu0 %v2365
    %2378 = vmatprep.subr.bf16.mxu0 0
    %2379 = vmatpush1.bf16.msra.mxu0 0
    %2380 = vmatprep.subr.bf16.mxu0 0
    %2381 = vmatpush1.bf16.msra.mxu0 0
    %2382 = vmatprep.subr.bf16.mxu0 0
    %2383 = vmatpush1.bf16.msra.mxu0 0
    %2384 = vmatprep.subr.bf16.mxu0 0
    %2385 = vmatpush1.bf16.msra.mxu0 0
    %2386 = vmatprep.subr.bf16.mxu0 0
    %2387 = vmatpush1.bf16.msra.mxu0 0
    %2388 = vmatprep.subr.bf16.mxu0 0
    %2389 = vmatpush1.bf16.msra.mxu0 0
    %2390 = vmatprep.subr.bf16.mxu0 0
    %2391 = vmatpush1.bf16.msra.mxu0 0
    %2392 = vmatprep.subr.bf16.mxu0 0
    %2393 = vmatpush1.bf16.msra.mxu0 0
    %2394 = vmatprep.subr.bf16.mxu0 0
    %2395 = vmatpush1.bf16.msra.mxu0 0
    %2396 = vmatprep.subr.bf16.mxu0 0
    %2397 = vmatpush1.bf16.msra.mxu0 0
    %2398 = vmatprep.subr.bf16.mxu0 0
    %2399 = vmatpush1.bf16.msra.mxu0 0
    %2400 = vmatprep.subr.bf16.mxu0 0
    %2401 = vmatpush1.bf16.msra.mxu0 0
    %2402 = vmatprep.subr.bf16.mxu0 0
    %2403 = vmatpush1.bf16.msra.mxu0 0
    %2404 = vmatprep.subr.bf16.mxu0 0
    %2405 = vmatpush1.bf16.msra.mxu0 0
    %2406 = vmatprep.mubr.bf16.mxu0 0
    %2407 = vmatmul.mubr.bf16.gmra.mrb[0].mxu0 %v2369
    %v2408 = vpop.f32.mrb[0].mxu0
    %v2409 = vadd.f32 0.0, %v2408
    %v2410 = vpop.f32.mrb[0].mxu0
    %v2411 = vpop.f32.mrb[0].mxu0
    %v2412 = vadd.f32 0.0, %v2411
    %v2413 = vpop.f32.mrb[0].mxu0
    %2414 = vmatprep.mubr.bf16.mxu0 0
    %2415 = vmatmul.mubr.bf16.gmra.mrb[0].mxu0 %v2372
    %v2416 = vpop.f32.mrb[0].mxu0
    %v2417 = vadd.f32 0.0, %v2416
    %v2418 = vpop.f32.mrb[0].mxu0
    %v2419 = vpop.f32.mrb[0].mxu0
    %v2420 = vpop.f32.mrb[0].mxu0
    %2421 = vdwg.mxu0
    %v2422 = vadd.f32 %v2321, %v2409
    %v2423 = vadd.f32 %v2322, %v2412
    %v2424 = vadd.f32 %v2323, %v2417
    %v2426 = vunpack.c.l.s4 1966171168
    %v2427 = vunpack.c.0.s8 %v2426
    %v2428 = vlaneseq
    %v2429 = vshrl.u32 %v2428, 7
    %v2430 = vsub.s32 %v2427, %v2429
    %v2431 = vrot.slane %v1427, %v2430
    %v2433 = vunpack.c.l.s4 1966171168
    %v2434 = vunpack.c.0.s8 %v2433
    %v2435 = vlaneseq
    %v2436 = vshrl.u32 %v2435, 7
    %v2437 = vsub.s32 %v2434, %v2436
    %v2438 = vrot.slane %v2431, %v2437
    %v2440 = vunpack.c.l.s4 1966171168
    %v2441 = vunpack.c.0.s8 %v2440
    %v2442 = vlaneseq
    %v2443 = vshrl.u32 %v2442, 7
    %v2444 = vsub.s32 %v2441, %v2443
    %v2445 = vrot.slane %v1434, %v2444
    %v2447 = vunpack.c.l.s4 1966171168
    %v2448 = vunpack.c.0.s8 %v2447
    %v2449 = vlaneseq
    %v2450 = vshrl.u32 %v2449, 7
    %v2451 = vsub.s32 %v2448, %v2450
    %v2452 = vrot.slane %v2445, %v2451
    %v2454 = vunpack.c.l.s4 1966171168
    %v2455 = vunpack.c.0.s8 %v2454
    %v2456 = vlaneseq
    %v2457 = vshrl.u32 %v2456, 7
    %v2458 = vsub.s32 %v2455, %v2457
    %v2459 = vrot.slane %v1435, %v2458
    %v2461 = vunpack.c.l.s4 1966171168
    %v2462 = vunpack.c.0.s8 %v2461
    %v2463 = vlaneseq
    %v2464 = vshrl.u32 %v2463, 7
    %v2465 = vsub.s32 %v2462, %v2464
    %v2466 = vrot.slane %v2459, %v2465
    %v2468 = vunpack.c.l.s4 1966171168
    %v2469 = vunpack.c.0.s8 %v2468
    %v2470 = vlaneseq
    %v2471 = vshrl.u32 %v2470, 7
    %v2472 = vsub.s32 %v2469, %v2471
    %v2473 = vrot.slane %v1451, %v2472
    %v2475 = vunpack.c.l.s4 1966171168
    %v2476 = vunpack.c.0.s8 %v2475
    %v2477 = vlaneseq
    %v2478 = vshrl.u32 %v2477, 7
    %v2479 = vsub.s32 %v2476, %v2478
    %v2480 = vrot.slane %v2473, %v2479
    %v2482 = vunpack.c.l.s4 1966171168
    %v2483 = vunpack.c.0.s8 %v2482
    %v2484 = vlaneseq
    %v2485 = vshrl.u32 %v2484, 7
    %v2486 = vsub.s32 %v2483, %v2485
    %v2487 = vrot.slane %v1458, %v2486
    %v2489 = vunpack.c.l.s4 1966171168
    %v2490 = vunpack.c.0.s8 %v2489
    %v2491 = vlaneseq
    %v2492 = vshrl.u32 %v2491, 7
    %v2493 = vsub.s32 %v2490, %v2492
    %v2494 = vrot.slane %v2487, %v2493
    %v2496 = vunpack.c.l.s4 1966171168
    %v2497 = vunpack.c.0.s8 %v2496
    %v2498 = vlaneseq
    %v2499 = vshrl.u32 %v2498, 7
    %v2500 = vsub.s32 %v2497, %v2499
    %v2501 = vrot.slane %v1459, %v2500
    %v2503 = vunpack.c.l.s4 1966171168
    %v2504 = vunpack.c.0.s8 %v2503
    %v2505 = vlaneseq
    %v2506 = vshrl.u32 %v2505, 7
    %v2507 = vsub.s32 %v2504, %v2506
    %v2508 = vrot.slane %v2501, %v2507
    %v2510 = vunpack.c.l.s4 1966171168
    %v2511 = vunpack.c.0.s8 %v2510
    %v2512 = vlaneseq
    %v2513 = vshrl.u32 %v2512, 7
    %v2514 = vsub.s32 %v2511, %v2513
    %v2515 = vrot.slane %v1475, %v2514
    %v2517 = vunpack.c.l.s4 1966171168
    %v2518 = vunpack.c.0.s8 %v2517
    %v2519 = vlaneseq
    %v2520 = vshrl.u32 %v2519, 7
    %v2521 = vsub.s32 %v2518, %v2520
    %v2522 = vrot.slane %v2515, %v2521
    %v2524 = vunpack.c.l.s4 1966171168
    %v2525 = vunpack.c.0.s8 %v2524
    %v2526 = vlaneseq
    %v2527 = vshrl.u32 %v2526, 7
    %v2528 = vsub.s32 %v2525, %v2527
    %v2529 = vrot.slane %v1482, %v2528
    %v2531 = vunpack.c.l.s4 1966171168
    %v2532 = vunpack.c.0.s8 %v2531
    %v2533 = vlaneseq
    %v2534 = vshrl.u32 %v2533, 7
    %v2535 = vsub.s32 %v2532, %v2534
    %v2536 = vrot.slane %v2529, %v2535
    %v2538 = vunpack.c.l.s4 1966171168
    %v2539 = vunpack.c.0.s8 %v2538
    %v2540 = vlaneseq
    %v2541 = vshrl.u32 %v2540, 7
    %v2542 = vsub.s32 %v2539, %v2541
    %v2543 = vrot.slane %v1483, %v2542
    %v2545 = vunpack.c.l.s4 1966171168
    %v2546 = vunpack.c.0.s8 %v2545
    %v2547 = vlaneseq
    %v2548 = vshrl.u32 %v2547, 7
    %v2549 = vsub.s32 %v2546, %v2548
    %v2550 = vrot.slane %v2543, %v2549
    %v2552 = vunpack.c.l.s4 1966171168
    %v2553 = vunpack.c.0.s8 %v2552
    %v2554 = vlaneseq
    %v2555 = vshrl.u32 %v2554, 7
    %v2556 = vsub.s32 %v2553, %v2555
    %v2557 = vrot.slane %v1523, %v2556
    %v2559 = vunpack.c.l.s4 1966171168
    %v2560 = vunpack.c.0.s8 %v2559
    %v2561 = vlaneseq
    %v2562 = vshrl.u32 %v2561, 7
    %v2563 = vsub.s32 %v2560, %v2562
    %v2564 = vrot.slane %v2557, %v2563
    %v2566 = vunpack.c.l.s4 1966171168
    %v2567 = vunpack.c.0.s8 %v2566
    %v2568 = vlaneseq
    %v2569 = vshrl.u32 %v2568, 7
    %v2570 = vsub.s32 %v2567, %v2569
    %v2571 = vrot.slane %v1530, %v2570
    %v2573 = vunpack.c.l.s4 1966171168
    %v2574 = vunpack.c.0.s8 %v2573
    %v2575 = vlaneseq
    %v2576 = vshrl.u32 %v2575, 7
    %v2577 = vsub.s32 %v2574, %v2576
    %v2578 = vrot.slane %v2571, %v2577
    %v2580 = vunpack.c.l.s4 1966171168
    %v2581 = vunpack.c.0.s8 %v2580
    %v2582 = vlaneseq
    %v2583 = vshrl.u32 %v2582, 7
    %v2584 = vsub.s32 %v2581, %v2583
    %v2585 = vrot.slane %v1531, %v2584
    %v2587 = vunpack.c.l.s4 1966171168
    %v2588 = vunpack.c.0.s8 %v2587
    %v2589 = vlaneseq
    %v2590 = vshrl.u32 %v2589, 7
    %v2591 = vsub.s32 %v2588, %v2590
    %v2592 = vrot.slane %v2585, %v2591
    %v2594 = vunpack.c.l.s4 1966171168
    %v2595 = vunpack.c.0.s8 %v2594
    %v2596 = vlaneseq
    %v2597 = vshrl.u32 %v2596, 7
    %v2598 = vsub.s32 %v2595, %v2597
    %v2599 = vrot.slane %v1547, %v2598
    %v2601 = vunpack.c.l.s4 1966171168
    %v2602 = vunpack.c.0.s8 %v2601
    %v2603 = vlaneseq
    %v2604 = vshrl.u32 %v2603, 7
    %v2605 = vsub.s32 %v2602, %v2604
    %v2606 = vrot.slane %v2599, %v2605
    %v2608 = vunpack.c.l.s4 1966171168
    %v2609 = vunpack.c.0.s8 %v2608
    %v2610 = vlaneseq
    %v2611 = vshrl.u32 %v2610, 7
    %v2612 = vsub.s32 %v2609, %v2611
    %v2613 = vrot.slane %v1554, %v2612
    %v2615 = vunpack.c.l.s4 1966171168
    %v2616 = vunpack.c.0.s8 %v2615
    %v2617 = vlaneseq
    %v2618 = vshrl.u32 %v2617, 7
    %v2619 = vsub.s32 %v2616, %v2618
    %v2620 = vrot.slane %v2613, %v2619
    %v2622 = vunpack.c.l.s4 1966171168
    %v2623 = vunpack.c.0.s8 %v2622
    %v2624 = vlaneseq
    %v2625 = vshrl.u32 %v2624, 7
    %v2626 = vsub.s32 %v2623, %v2625
    %v2627 = vrot.slane %v1555, %v2626
    %v2629 = vunpack.c.l.s4 1966171168
    %v2630 = vunpack.c.0.s8 %v2629
    %v2631 = vlaneseq
    %v2632 = vshrl.u32 %v2631, 7
    %v2633 = vsub.s32 %v2630, %v2632
    %v2634 = vrot.slane %v2627, %v2633
    %v2636 = vunpack.c.l.s4 1966171168
    %v2637 = vunpack.c.0.s8 %v2636
    %v2638 = vlaneseq
    %v2639 = vshrl.u32 %v2638, 7
    %v2640 = vsub.s32 %v2637, %v2639
    %v2641 = vrot.slane %v1571, %v2640
    %v2643 = vunpack.c.l.s4 1966171168
    %v2644 = vunpack.c.0.s8 %v2643
    %v2645 = vlaneseq
    %v2646 = vshrl.u32 %v2645, 7
    %v2647 = vsub.s32 %v2644, %v2646
    %v2648 = vrot.slane %v2641, %v2647
    %v2650 = vunpack.c.l.s4 1966171168
    %v2651 = vunpack.c.0.s8 %v2650
    %v2652 = vlaneseq
    %v2653 = vshrl.u32 %v2652, 7
    %v2654 = vsub.s32 %v2651, %v2653
    %v2655 = vrot.slane %v1578, %v2654
    %v2657 = vunpack.c.l.s4 1966171168
    %v2658 = vunpack.c.0.s8 %v2657
    %v2659 = vlaneseq
    %v2660 = vshrl.u32 %v2659, 7
    %v2661 = vsub.s32 %v2658, %v2660
    %v2662 = vrot.slane %v2655, %v2661
    %v2664 = vunpack.c.l.s4 1966171168
    %v2665 = vunpack.c.0.s8 %v2664
    %v2666 = vlaneseq
    %v2667 = vshrl.u32 %v2666, 7
    %v2668 = vsub.s32 %v2665, %v2667
    %v2669 = vrot.slane %v1579, %v2668
    %v2671 = vunpack.c.l.s4 1966171168
    %v2672 = vunpack.c.0.s8 %v2671
    %v2673 = vlaneseq
    %v2674 = vshrl.u32 %v2673, 7
    %v2675 = vsub.s32 %v2672, %v2674
    %v2676 = vrot.slane %v2669, %v2675
    %v2677 = vunpack.c.l.b16 %v2438
    %v2678 = vunpack.c.l.b16 %v2452
    %v2679 = vunpack.c.l.b16 %v2466
    %v2680 = vunpack.c.l.b16 %v2480
    %v2681 = vunpack.c.l.b16 %v2494
    %v2682 = vunpack.c.l.b16 %v2508
    %v2683 = vunpack.c.l.b16 %v2522
    %v2684 = vunpack.c.l.b16 %v2536
    %v2685 = vunpack.c.l.b16 %v2550
    %v2686 = vunpack.c.l.b16 %v2564
    %v2687 = vunpack.c.l.b16 %v2578
    %v2688 = vunpack.c.l.b16 %v2592
    %v2689 = vunpack.c.l.b16 %v2606
    %v2690 = vunpack.c.l.b16 %v2620
    %v2691 = vunpack.c.l.b16 %v2634
    %v2692 = vunpack.c.l.b16 %v2648
    %v2693 = vunpack.c.l.b16 %v2662
    %v2694 = vunpack.c.l.b16 %v2676
    %v2695 = vrot.slane %v2678, 7
    %v2696 = vsel %vm1940, %v2695, %v2677
    %v2697 = vrot.slane %v2679, 6
    %v2698 = vsel %vm1943, %v2697, %v2696
    %v2699 = vrot.slane %v2680, 5
    %v2700 = vsel %vm1946, %v2699, %v2698
    %v2701 = vrot.slane %v2681, 4
    %v2702 = vsel %vm1949, %v2701, %v2700
    %v2703 = vrot.slane %v2682, 3
    %v2704 = vsel %vm1952, %v2703, %v2702
    %v2705 = vrot.slane %v2683, 2
    %v2706 = vsel %vm1955, %v2705, %v2704
    %v2707 = vrot.slane %v2684, 1
    %v2708 = vsel %vm1958, %v2707, %v2706
    %v2709 = vrot.slane %v2686, 7
    %v2710 = vsel %vm1940, %v2709, %v2685
    %v2711 = vrot.slane %v2687, 6
    %v2712 = vsel %vm1943, %v2711, %v2710
    %v2713 = vrot.slane %v2688, 5
    %v2714 = vsel %vm1946, %v2713, %v2712
    %v2715 = vrot.slane %v2689, 4
    %v2716 = vsel %vm1949, %v2715, %v2714
    %v2717 = vrot.slane %v2690, 3
    %v2718 = vsel %vm1952, %v2717, %v2716
    %v2719 = vrot.slane %v2691, 2
    %v2720 = vsel %vm1955, %v2719, %v2718
    %v2721 = vrot.slane %v2692, 1
    %v2722 = vsel %vm1958, %v2721, %v2720
    %v2723 = vrot.slane %v2694, 7
    %v2724 = vsel %vm1940, %v2723, %v2693
    %v2725 = vpack.c.b16 %v2722, %v2708
    %v2726 = vpack.c.b16 %v2724, %v2724
    %v2731 = vunpack.c.l.b16 %v1621
    %v2732 = vunpack.c.l.b16 %v1622
    %v2733 = vunpack.c.l.b16 %v1623
    %v2734 = vunpack.c.l.b16 %v1624
    %v2735 = vpack.c.b16 %v2732, %v2731
    %v2736 = vpack.c.b16 %v2734, %v2733
    %v2740 = vsel %vm1990, %v2725, 0
    %v2743 = vsel %vm1990, %v2726, 0
    %2745 = vmatprep.subr.bf16.mxu0 0
    %2746 = vmatpush1.bf16.msra.mxu0 %v2735
    %2747 = vmatprep.subr.bf16.mxu0 0
    %2748 = vmatpush1.bf16.msra.mxu0 %v2736
    %2749 = vmatprep.subr.bf16.mxu0 0
    %2750 = vmatpush1.bf16.msra.mxu0 0
    %2751 = vmatprep.subr.bf16.mxu0 0
    %2752 = vmatpush1.bf16.msra.mxu0 0
    %2753 = vmatprep.subr.bf16.mxu0 0
    %2754 = vmatpush1.bf16.msra.mxu0 0
    %2755 = vmatprep.subr.bf16.mxu0 0
    %2756 = vmatpush1.bf16.msra.mxu0 0
    %2757 = vmatprep.subr.bf16.mxu0 0
    %2758 = vmatpush1.bf16.msra.mxu0 0
    %2759 = vmatprep.subr.bf16.mxu0 0
    %2760 = vmatpush1.bf16.msra.mxu0 0
    %2761 = vmatprep.subr.bf16.mxu0 0
    %2762 = vmatpush1.bf16.msra.mxu0 0
    %2763 = vmatprep.subr.bf16.mxu0 0
    %2764 = vmatpush1.bf16.msra.mxu0 0
    %2765 = vmatprep.subr.bf16.mxu0 0
    %2766 = vmatpush1.bf16.msra.mxu0 0
    %2767 = vmatprep.subr.bf16.mxu0 0
    %2768 = vmatpush1.bf16.msra.mxu0 0
    %2769 = vmatprep.subr.bf16.mxu0 0
    %2770 = vmatpush1.bf16.msra.mxu0 0
    %2771 = vmatprep.subr.bf16.mxu0 0
    %2772 = vmatpush1.bf16.msra.mxu0 0
    %2773 = vmatprep.subr.bf16.mxu0 0
    %2774 = vmatpush1.bf16.msra.mxu0 0
    %2775 = vmatprep.subr.bf16.mxu0 0
    %2776 = vmatpush1.bf16.msra.mxu0 0
    %2777 = vmatprep.mubr.bf16.mxu0 0
    %2778 = vmatmul.mubr.bf16.gmra.mrb[0].mxu0 %v2740
    %v2779 = vpop.f32.mrb[0].mxu0
    %v2780 = vadd.f32 0.0, %v2779
    %v2781 = vpop.f32.mrb[0].mxu0
    %v2782 = vpop.f32.mrb[0].mxu0
    %v2783 = vadd.f32 0.0, %v2782
    %v2784 = vpop.f32.mrb[0].mxu0
    %2785 = vmatprep.mubr.bf16.mxu0 0
    %2786 = vmatmul.mubr.bf16.gmra.mrb[0].mxu0 %v2743
    %v2787 = vpop.f32.mrb[0].mxu0
    %v2788 = vadd.f32 0.0, %v2787
    %v2789 = vpop.f32.mrb[0].mxu0
    %v2790 = vpop.f32.mrb[0].mxu0
    %v2791 = vpop.f32.mrb[0].mxu0
    %2792 = vdwg.mxu0
    %v2793 = vadd.f32 %v2422, %v2780
    %v2794 = vadd.f32 %v2423, %v2783
    %v2795 = vadd.f32 %v2424, %v2788
    %v2796 = vrot.slane %v2677, 1
    %v2797 = vsel %vm1940, %v2678, %v2796
    %v2798 = vrot.slane %v2679, 7
    %v2799 = vsel %vm1943, %v2798, %v2797
    %v2800 = vrot.slane %v2680, 6
    %v2801 = vsel %vm1946, %v2800, %v2799
    %v2802 = vrot.slane %v2681, 5
    %v2803 = vsel %vm1949, %v2802, %v2801
    %v2804 = vrot.slane %v2682, 4
    %v2805 = vsel %vm1952, %v2804, %v2803
    %v2806 = vrot.slane %v2683, 3
    %v2807 = vsel %vm1955, %v2806, %v2805
    %v2808 = vrot.slane %v2684, 2
    %v2809 = vsel %vm1958, %v2808, %v2807
    %v2810 = vrot.slane %v2685, 1
    %v2811 = vsel %vm1940, %v2686, %v2810
    %v2812 = vrot.slane %v2687, 7
    %v2813 = vsel %vm1943, %v2812, %v2811
    %v2814 = vrot.slane %v2688, 6
    %v2815 = vsel %vm1946, %v2814, %v2813
    %v2816 = vrot.slane %v2689, 5
    %v2817 = vsel %vm1949, %v2816, %v2815
    %v2818 = vrot.slane %v2690, 4
    %v2819 = vsel %vm1952, %v2818, %v2817
    %v2820 = vrot.slane %v2691, 3
    %v2821 = vsel %vm1955, %v2820, %v2819
    %v2822 = vrot.slane %v2692, 2
    %v2823 = vsel %vm1958, %v2822, %v2821
    %v2824 = vrot.slane %v2693, 1
    %v2825 = vsel %vm1940, %v2694, %v2824
    %v2826 = vpack.c.b16 %v2823, %v2809
    %v2827 = vpack.c.b16 %v2825, %v2825
    %v2832 = vunpack.c.l.b16 %v1625
    %v2833 = vunpack.c.l.b16 %v1626
    %v2834 = vunpack.c.l.b16 %v1627
    %v2835 = vunpack.c.l.b16 %v1628
    %v2836 = vpack.c.b16 %v2833, %v2832
    %v2837 = vpack.c.b16 %v2835, %v2834
    %v2841 = vsel %vm1990, %v2826, 0
    %v2844 = vsel %vm1990, %v2827, 0
    %2846 = vmatprep.subr.bf16.mxu0 0
    %2847 = vmatpush1.bf16.msra.mxu0 %v2836
    %2848 = vmatprep.subr.bf16.mxu0 0
    %2849 = vmatpush1.bf16.msra.mxu0 %v2837
    %2850 = vmatprep.subr.bf16.mxu0 0
    %2851 = vmatpush1.bf16.msra.mxu0 0
    %2852 = vmatprep.subr.bf16.mxu0 0
    %2853 = vmatpush1.bf16.msra.mxu0 0
    %2854 = vmatprep.subr.bf16.mxu0 0
    %2855 = vmatpush1.bf16.msra.mxu0 0
    %2856 = vmatprep.subr.bf16.mxu0 0
    %2857 = vmatpush1.bf16.msra.mxu0 0
    %2858 = vmatprep.subr.bf16.mxu0 0
    %2859 = vmatpush1.bf16.msra.mxu0 0
    %2860 = vmatprep.subr.bf16.mxu0 0
    %2861 = vmatpush1.bf16.msra.mxu0 0
    %2862 = vmatprep.subr.bf16.mxu0 0
    %2863 = vmatpush1.bf16.msra.mxu0 0
    %2864 = vmatprep.subr.bf16.mxu0 0
    %2865 = vmatpush1.bf16.msra.mxu0 0
    %2866 = vmatprep.subr.bf16.mxu0 0
    %2867 = vmatpush1.bf16.msra.mxu0 0
    %2868 = vmatprep.subr.bf16.mxu0 0
    %2869 = vmatpush1.bf16.msra.mxu0 0
    %2870 = vmatprep.subr.bf16.mxu0 0
    %2871 = vmatpush1.bf16.msra.mxu0 0
    %2872 = vmatprep.subr.bf16.mxu0 0
    %2873 = vmatpush1.bf16.msra.mxu0 0
    %2874 = vmatprep.subr.bf16.mxu0 0
    %2875 = vmatpush1.bf16.msra.mxu0 0
    %2876 = vmatprep.subr.bf16.mxu0 0
    %2877 = vmatpush1.bf16.msra.mxu0 0
    %2878 = vmatprep.mubr.bf16.mxu0 0
    %2879 = vmatmul.mubr.bf16.gmra.mrb[0].mxu0 %v2841
    %v2880 = vpop.f32.mrb[0].mxu0
    %v2881 = vadd.f32 0.0, %v2880
    %v2882 = vpop.f32.mrb[0].mxu0
    %v2883 = vpop.f32.mrb[0].mxu0
    %v2884 = vadd.f32 0.0, %v2883
    %v2885 = vpop.f32.mrb[0].mxu0
    %2886 = vmatprep.mubr.bf16.mxu0 0
    %2887 = vmatmul.mubr.bf16.gmra.mrb[0].mxu0 %v2844
    %v2888 = vpop.f32.mrb[0].mxu0
    %v2889 = vadd.f32 0.0, %v2888
    %v2890 = vpop.f32.mrb[0].mxu0
    %v2891 = vpop.f32.mrb[0].mxu0
    %v2892 = vpop.f32.mrb[0].mxu0
    %2893 = vdwg.mxu0
    %v2894 = vadd.f32 %v2793, %v2881
    %v2895 = vadd.f32 %v2794, %v2884
    %v2896 = vadd.f32 %v2795, %v2889
    %v2898 = vunpack.c.l.s4 1966171168
    %v2899 = vunpack.c.0.s8 %v2898
    %v2900 = vlaneseq
    %v2901 = vshrl.u32 %v2900, 7
    %v2902 = vsub.s32 %v2899, %v2901
    %v2903 = vrot.slane %v1436, %v2902
    %v2905 = vunpack.c.l.s4 1966171168
    %v2906 = vunpack.c.0.s8 %v2905
    %v2907 = vlaneseq
    %v2908 = vshrl.u32 %v2907, 7
    %v2909 = vsub.s32 %v2906, %v2908
    %v2910 = vrot.slane %v2903, %v2909
    %v2912 = vunpack.c.l.s4 1966171168
    %v2913 = vunpack.c.0.s8 %v2912
    %v2914 = vlaneseq
    %v2915 = vshrl.u32 %v2914, 7
    %v2916 = vsub.s32 %v2913, %v2915
    %v2917 = vrot.slane %v1460, %v2916
    %v2919 = vunpack.c.l.s4 1966171168
    %v2920 = vunpack.c.0.s8 %v2919
    %v2921 = vlaneseq
    %v2922 = vshrl.u32 %v2921, 7
    %v2923 = vsub.s32 %v2920, %v2922
    %v2924 = vrot.slane %v2917, %v2923
    %v2926 = vunpack.c.l.s4 1966171168
    %v2927 = vunpack.c.0.s8 %v2926
    %v2928 = vlaneseq
    %v2929 = vshrl.u32 %v2928, 7
    %v2930 = vsub.s32 %v2927, %v2929
    %v2931 = vrot.slane %v1484, %v2930
    %v2933 = vunpack.c.l.s4 1966171168
    %v2934 = vunpack.c.0.s8 %v2933
    %v2935 = vlaneseq
    %v2936 = vshrl.u32 %v2935, 7
    %v2937 = vsub.s32 %v2934, %v2936
    %v2938 = vrot.slane %v2931, %v2937
    %v2940 = vunpack.c.l.s4 1966171168
    %v2941 = vunpack.c.0.s8 %v2940
    %v2942 = vlaneseq
    %v2943 = vshrl.u32 %v2942, 7
    %v2944 = vsub.s32 %v2941, %v2943
    %v2945 = vrot.slane %v1532, %v2944
    %v2947 = vunpack.c.l.s4 1966171168
    %v2948 = vunpack.c.0.s8 %v2947
    %v2949 = vlaneseq
    %v2950 = vshrl.u32 %v2949, 7
    %v2951 = vsub.s32 %v2948, %v2950
    %v2952 = vrot.slane %v2945, %v2951
    %v2954 = vunpack.c.l.s4 1966171168
    %v2955 = vunpack.c.0.s8 %v2954
    %v2956 = vlaneseq
    %v2957 = vshrl.u32 %v2956, 7
    %v2958 = vsub.s32 %v2955, %v2957
    %v2959 = vrot.slane %v1556, %v2958
    %v2961 = vunpack.c.l.s4 1966171168
    %v2962 = vunpack.c.0.s8 %v2961
    %v2963 = vlaneseq
    %v2964 = vshrl.u32 %v2963, 7
    %v2965 = vsub.s32 %v2962, %v2964
    %v2966 = vrot.slane %v2959, %v2965
    %v2968 = vunpack.c.l.s4 1966171168
    %v2969 = vunpack.c.0.s8 %v2968
    %v2970 = vlaneseq
    %v2971 = vshrl.u32 %v2970, 7
    %v2972 = vsub.s32 %v2969, %v2971
    %v2973 = vrot.slane %v1580, %v2972
    %v2975 = vunpack.c.l.s4 1966171168
    %v2976 = vunpack.c.0.s8 %v2975
    %v2977 = vlaneseq
    %v2978 = vshrl.u32 %v2977, 7
    %v2979 = vsub.s32 %v2976, %v2978
    %v2980 = vrot.slane %v2973, %v2979
    %v2981 = vunpack.c.l.b16 %v2910
    %v2982 = vunpack.c.l.b16 %v2924
    %v2983 = vunpack.c.l.b16 %v2938
    %v2984 = vunpack.c.l.b16 %v2952
    %v2985 = vunpack.c.l.b16 %v2966
    %v2986 = vunpack.c.l.b16 %v2980
    %v2987 = vsel %vm1940, %v2798, %v2678
    %v2988 = vrot.slane %v2981, 6
    %v2989 = vsel %vm1943, %v2988, %v2987
    %v2990 = vsel %vm1946, %v2802, %v2989
    %v2991 = vsel %vm1949, %v2804, %v2990
    %v2992 = vrot.slane %v2982, 3
    %v2993 = vsel %vm1952, %v2992, %v2991
    %v2994 = vsel %vm1955, %v2808, %v2993
    %v2995 = vsel %vm1958, %v2810, %v2994
    %v2996 = vsel %vm1940, %v2812, %v2983
    %v2997 = vsel %vm1943, %v2814, %v2996
    %v2998 = vrot.slane %v2984, 5
    %v2999 = vsel %vm1946, %v2998, %v2997
    %v3000 = vsel %vm1949, %v2818, %v2999
    %v3001 = vsel %vm1952, %v2820, %v3000
    %v3002 = vrot.slane %v2985, 2
    %v3003 = vsel %vm1955, %v3002, %v3001
    %v3004 = vsel %vm1958, %v2824, %v3003
    %v3005 = vrot.slane %v2986, 7
    %v3006 = vsel %vm1940, %v3005, %v2694
    %v3007 = vpack.c.b16 %v3004, %v2995
    %v3008 = vpack.c.b16 %v3006, %v3006
    %v3013 = vunpack.c.l.b16 %v1629
    %v3014 = vunpack.c.l.b16 %v1630
    %v3015 = vunpack.c.l.b16 %v1631
    %v3016 = vunpack.c.l.b16 %v1632
    %v3017 = vpack.c.b16 %v3014, %v3013
    %v3018 = vpack.c.b16 %v3016, %v3015
    %v3022 = vsel %vm1990, %v3007, 0
    %v3025 = vsel %vm1990, %v3008, 0
    %3027 = vmatprep.subr.bf16.mxu0 0
    %3028 = vmatpush1.bf16.msra.mxu0 %v3017
    %3029 = vmatprep.subr.bf16.mxu0 0
    %3030 = vmatpush1.bf16.msra.mxu0 %v3018
    %3031 = vmatprep.subr.bf16.mxu0 0
    %3032 = vmatpush1.bf16.msra.mxu0 0
    %3033 = vmatprep.subr.bf16.mxu0 0
    %3034 = vmatpush1.bf16.msra.mxu0 0
    %3035 = vmatprep.subr.bf16.mxu0 0
    %3036 = vmatpush1.bf16.msra.mxu0 0
    %3037 = vmatprep.subr.bf16.mxu0 0
    %3038 = vmatpush1.bf16.msra.mxu0 0
    %3039 = vmatprep.subr.bf16.mxu0 0
    %3040 = vmatpush1.bf16.msra.mxu0 0
    %3041 = vmatprep.subr.bf16.mxu0 0
    %3042 = vmatpush1.bf16.msra.mxu0 0
    %3043 = vmatprep.subr.bf16.mxu0 0
    %3044 = vmatpush1.bf16.msra.mxu0 0
    %3045 = vmatprep.subr.bf16.mxu0 0
    %3046 = vmatpush1.bf16.msra.mxu0 0
    %3047 = vmatprep.subr.bf16.mxu0 0
    %3048 = vmatpush1.bf16.msra.mxu0 0
    %3049 = vmatprep.subr.bf16.mxu0 0
    %3050 = vmatpush1.bf16.msra.mxu0 0
    %3051 = vmatprep.subr.bf16.mxu0 0
    %3052 = vmatpush1.bf16.msra.mxu0 0
    %3053 = vmatprep.subr.bf16.mxu0 0
    %3054 = vmatpush1.bf16.msra.mxu0 0
    %3055 = vmatprep.subr.bf16.mxu0 0
    %3056 = vmatpush1.bf16.msra.mxu0 0
    %3057 = vmatprep.subr.bf16.mxu0 0
    %3058 = vmatpush1.bf16.msra.mxu0 0
    %3059 = vmatprep.mubr.bf16.mxu0 0
    %3060 = vmatmul.mubr.bf16.gmra.mrb[0].mxu0 %v3022
    %v3061 = vpop.f32.mrb[0].mxu0
    %v3062 = vadd.f32 0.0, %v3061
    %v3063 = vpop.f32.mrb[0].mxu0
    %v3064 = vpop.f32.mrb[0].mxu0
    %v3065 = vadd.f32 0.0, %v3064
    %v3066 = vpop.f32.mrb[0].mxu0
    %3067 = vmatprep.mubr.bf16.mxu0 0
    %3068 = vmatmul.mubr.bf16.gmra.mrb[0].mxu0 %v3025
    %v3069 = vpop.f32.mrb[0].mxu0
    %v3070 = vadd.f32 0.0, %v3069
    %v3071 = vpop.f32.mrb[0].mxu0
    %v3072 = vpop.f32.mrb[0].mxu0
    %v3073 = vpop.f32.mrb[0].mxu0
    %3074 = vdwg.mxu0
    %v3075 = vadd.f32 %v2894, %v3062
    %v3076 = vadd.f32 %v2895, %v3065
    %v3077 = vadd.f32 %v2896, %v3070
    %v3078 = vrot.slane %v2678, 1
    %v3079 = vsel %vm1940, %v2679, %v3078
    %v3080 = vrot.slane %v2981, 7
    %v3081 = vsel %vm1943, %v3080, %v3079
    %v3082 = vrot.slane %v2681, 6
    %v3083 = vsel %vm1946, %v3082, %v3081
    %v3084 = vrot.slane %v2682, 5
    %v3085 = vsel %vm1949, %v3084, %v3083
    %v3086 = vrot.slane %v2982, 4
    %v3087 = vsel %vm1952, %v3086, %v3085
    %v3088 = vrot.slane %v2684, 3
    %v3089 = vsel %vm1955, %v3088, %v3087
    %v3090 = vrot.slane %v2685, 2
    %v3091 = vsel %vm1958, %v3090, %v3089
    %v3092 = vrot.slane %v2983, 1
    %v3093 = vsel %vm1940, %v2687, %v3092
    %v3094 = vrot.slane %v2688, 7
    %v3095 = vsel %vm1943, %v3094, %v3093
    %v3096 = vrot.slane %v2984, 6
    %v3097 = vsel %vm1946, %v3096, %v3095
    %v3098 = vrot.slane %v2690, 5
    %v3099 = vsel %vm1949, %v3098, %v3097
    %v3100 = vrot.slane %v2691, 4
    %v3101 = vsel %vm1952, %v3100, %v3099
    %v3102 = vrot.slane %v2985, 3
    %v3103 = vsel %vm1955, %v3102, %v3101
    %v3104 = vrot.slane %v2693, 2
    %v3105 = vsel %vm1958, %v3104, %v3103
    %v3106 = vrot.slane %v2694, 1
    %v3107 = vsel %vm1940, %v2986, %v3106
    %v3108 = vpack.c.b16 %v3105, %v3091
    %v3109 = vpack.c.b16 %v3107, %v3107
    %v3114 = vunpack.c.l.b16 %v1633
    %v3115 = vunpack.c.l.b16 %v1634
    %v3116 = vunpack.c.l.b16 %v1635
    %v3117 = vunpack.c.l.b16 %v1636
    %v3118 = vpack.c.b16 %v3115, %v3114
    %v3119 = vpack.c.b16 %v3117, %v3116
    %v3123 = vsel %vm1990, %v3108, 0
    %v3126 = vsel %vm1990, %v3109, 0
    %3128 = vmatprep.subr.bf16.mxu0 0
    %3129 = vmatpush1.bf16.msra.mxu0 %v3118
    %3130 = vmatprep.subr.bf16.mxu0 0
    %3131 = vmatpush1.bf16.msra.mxu0 %v3119
    %3132 = vmatprep.subr.bf16.mxu0 0
    %3133 = vmatpush1.bf16.msra.mxu0 0
    %3134 = vmatprep.subr.bf16.mxu0 0
    %3135 = vmatpush1.bf16.msra.mxu0 0
    %3136 = vmatprep.subr.bf16.mxu0 0
    %3137 = vmatpush1.bf16.msra.mxu0 0
    %3138 = vmatprep.subr.bf16.mxu0 0
    %3139 = vmatpush1.bf16.msra.mxu0 0
    %3140 = vmatprep.subr.bf16.mxu0 0
    %3141 = vmatpush1.bf16.msra.mxu0 0
    %3142 = vmatprep.subr.bf16.mxu0 0
    %3143 = vmatpush1.bf16.msra.mxu0 0
    %3144 = vmatprep.subr.bf16.mxu0 0
    %3145 = vmatpush1.bf16.msra.mxu0 0
    %3146 = vmatprep.subr.bf16.mxu0 0
    %3147 = vmatpush1.bf16.msra.mxu0 0
    %3148 = vmatprep.subr.bf16.mxu0 0
    %3149 = vmatpush1.bf16.msra.mxu0 0
    %3150 = vmatprep.subr.bf16.mxu0 0
    %3151 = vmatpush1.bf16.msra.mxu0 0
    %3152 = vmatprep.subr.bf16.mxu0 0
    %3153 = vmatpush1.bf16.msra.mxu0 0
    %3154 = vmatprep.subr.bf16.mxu0 0
    %3155 = vmatpush1.bf16.msra.mxu0 0
    %3156 = vmatprep.subr.bf16.mxu0 0
    %3157 = vmatpush1.bf16.msra.mxu0 0
    %3158 = vmatprep.subr.bf16.mxu0 0
    %3159 = vmatpush1.bf16.msra.mxu0 0
    %3160 = vmatprep.mubr.bf16.mxu0 0
    %3161 = vmatmul.mubr.bf16.gmra.mrb[0].mxu0 %v3123
    %v3162 = vpop.f32.mrb[0].mxu0
    %v3163 = vadd.f32 0.0, %v3162
    %v3164 = vpop.f32.mrb[0].mxu0
    %v3165 = vpop.f32.mrb[0].mxu0
    %v3166 = vadd.f32 0.0, %v3165
    %v3167 = vpop.f32.mrb[0].mxu0
    %3168 = vmatprep.mubr.bf16.mxu0 0
    %3169 = vmatmul.mubr.bf16.gmra.mrb[0].mxu0 %v3126
    %v3170 = vpop.f32.mrb[0].mxu0
    %v3171 = vadd.f32 0.0, %v3170
    %v3172 = vpop.f32.mrb[0].mxu0
    %v3173 = vpop.f32.mrb[0].mxu0
    %v3174 = vpop.f32.mrb[0].mxu0
    %3175 = vdwg.mxu0
    %v3176 = vadd.f32 %v3075, %v3163
    %v3177 = vadd.f32 %v3076, %v3166
    %v3178 = vadd.f32 %v3077, %v3171
    %v3180 = vunpack.c.l.s4 1966171168
    %v3181 = vunpack.c.0.s8 %v3180
    %v3182 = vlaneseq
    %v3183 = vshrl.u32 %v3182, 7
    %v3184 = vsub.s32 %v3181, %v3183
    %v3185 = vrot.slane %v1307, %v3184
    %v3187 = vunpack.c.l.s4 1966171168
    %v3188 = vunpack.c.0.s8 %v3187
    %v3189 = vlaneseq
    %v3190 = vshrl.u32 %v3189, 7
    %v3191 = vsub.s32 %v3188, %v3190
    %v3192 = vrot.slane %v3185, %v3191
    %v3194 = vunpack.c.l.s4 1966171168
    %v3195 = vunpack.c.0.s8 %v3194
    %v3196 = vlaneseq
    %v3197 = vshrl.u32 %v3196, 7
    %v3198 = vsub.s32 %v3195, %v3197
    %v3199 = vrot.slane %v1314, %v3198
    %v3201 = vunpack.c.l.s4 1966171168
    %v3202 = vunpack.c.0.s8 %v3201
    %v3203 = vlaneseq
    %v3204 = vshrl.u32 %v3203, 7
    %v3205 = vsub.s32 %v3202, %v3204
    %v3206 = vrot.slane %v3199, %v3205
    %v3208 = vunpack.c.l.s4 1966171168
    %v3209 = vunpack.c.0.s8 %v3208
    %v3210 = vlaneseq
    %v3211 = vshrl.u32 %v3210, 7
    %v3212 = vsub.s32 %v3209, %v3211
    %v3213 = vrot.slane %v1315, %v3212
    %v3215 = vunpack.c.l.s4 1966171168
    %v3216 = vunpack.c.0.s8 %v3215
    %v3217 = vlaneseq
    %v3218 = vshrl.u32 %v3217, 7
    %v3219 = vsub.s32 %v3216, %v3218
    %v3220 = vrot.slane %v3213, %v3219
    %v3222 = vunpack.c.l.s4 1966171168
    %v3223 = vunpack.c.0.s8 %v3222
    %v3224 = vlaneseq
    %v3225 = vshrl.u32 %v3224, 7
    %v3226 = vsub.s32 %v3223, %v3225
    %v3227 = vrot.slane %v1403, %v3226
    %v3229 = vunpack.c.l.s4 1966171168
    %v3230 = vunpack.c.0.s8 %v3229
    %v3231 = vlaneseq
    %v3232 = vshrl.u32 %v3231, 7
    %v3233 = vsub.s32 %v3230, %v3232
    %v3234 = vrot.slane %v3227, %v3233
    %v3236 = vunpack.c.l.s4 1966171168
    %v3237 = vunpack.c.0.s8 %v3236
    %v3238 = vlaneseq
    %v3239 = vshrl.u32 %v3238, 7
    %v3240 = vsub.s32 %v3237, %v3239
    %v3241 = vrot.slane %v1410, %v3240
    %v3243 = vunpack.c.l.s4 1966171168
    %v3244 = vunpack.c.0.s8 %v3243
    %v3245 = vlaneseq
    %v3246 = vshrl.u32 %v3245, 7
    %v3247 = vsub.s32 %v3244, %v3246
    %v3248 = vrot.slane %v3241, %v3247
    %v3250 = vunpack.c.l.s4 1966171168
    %v3251 = vunpack.c.0.s8 %v3250
    %v3252 = vlaneseq
    %v3253 = vshrl.u32 %v3252, 7
    %v3254 = vsub.s32 %v3251, %v3253
    %v3255 = vrot.slane %v1411, %v3254
    %v3257 = vunpack.c.l.s4 1966171168
    %v3258 = vunpack.c.0.s8 %v3257
    %v3259 = vlaneseq
    %v3260 = vshrl.u32 %v3259, 7
    %v3261 = vsub.s32 %v3258, %v3260
    %v3262 = vrot.slane %v3255, %v3261
    %v3263 = vunpack.c.l.b16 %v3192
    %v3264 = vunpack.c.l.b16 %v3206
    %v3265 = vunpack.c.l.b16 %v3220
    %v3266 = vunpack.c.l.b16 %v3234
    %v3267 = vunpack.c.l.b16 %v3248
    %v3268 = vunpack.c.l.b16 %v3262
    %v3269 = vrot.slane %v1925, 7
    %v3270 = vsel %vm1940, %v3269, %v1924
    %v3271 = vrot.slane %v1926, 6
    %v3272 = vsel %vm1943, %v3271, %v3270
    %v3273 = vrot.slane %v1927, 5
    %v3274 = vsel %vm1946, %v3273, %v3272
    %v3275 = vrot.slane %v1928, 4
    %v3276 = vsel %vm1949, %v3275, %v3274
    %v3277 = vrot.slane %v1929, 3
    %v3278 = vsel %vm1952, %v3277, %v3276
    %v3279 = vrot.slane %v3263, 2
    %v3280 = vsel %vm1955, %v3279, %v3278
    %v3281 = vrot.slane %v3264, 1
    %v3282 = vsel %vm1958, %v3281, %v3280
    %v3283 = vrot.slane %v1933, 7
    %v3284 = vsel %vm1940, %v3283, %v3265
    %v3285 = vrot.slane %v1934, 6
    %v3286 = vsel %vm1943, %v3285, %v3284
    %v3287 = vrot.slane %v1935, 5
    %v3288 = vsel %vm1946, %v3287, %v3286
    %v3289 = vrot.slane %v1936, 4
    %v3290 = vsel %vm1949, %v3289, %v3288
    %v3291 = vrot.slane %v1937, 3
    %v3292 = vsel %vm1952, %v3291, %v3290
    %v3293 = vrot.slane %v1938, 2
    %v3294 = vsel %vm1955, %v3293, %v3292
    %v3295 = vrot.slane %v3266, 1
    %v3296 = vsel %vm1958, %v3295, %v3294
    %v3297 = vrot.slane %v3268, 7
    %v3298 = vsel %vm1940, %v3297, %v3267
    %v3299 = vpack.c.b16 %v3296, %v3282
    %v3300 = vpack.c.b16 %v3298, %v3298
    %v3305 = vunpack.c.l.b16 %v1637
    %v3306 = vunpack.c.l.b16 %v1638
    %v3307 = vunpack.c.l.b16 %v1639
    %v3308 = vunpack.c.l.b16 %v1640
    %v3309 = vpack.c.b16 %v3306, %v3305
    %v3310 = vpack.c.b16 %v3308, %v3307
    %v3314 = vsel %vm1990, %v3299, 0
    %v3317 = vsel %vm1990, %v3300, 0
    %3319 = vmatprep.subr.bf16.mxu0 0
    %3320 = vmatpush1.bf16.msra.mxu0 %v3309
    %3321 = vmatprep.subr.bf16.mxu0 0
    %3322 = vmatpush1.bf16.msra.mxu0 %v3310
    %3323 = vmatprep.subr.bf16.mxu0 0
    %3324 = vmatpush1.bf16.msra.mxu0 0
    %3325 = vmatprep.subr.bf16.mxu0 0
    %3326 = vmatpush1.bf16.msra.mxu0 0
    %3327 = vmatprep.subr.bf16.mxu0 0
    %3328 = vmatpush1.bf16.msra.mxu0 0
    %3329 = vmatprep.subr.bf16.mxu0 0
    %3330 = vmatpush1.bf16.msra.mxu0 0
    %3331 = vmatprep.subr.bf16.mxu0 0
    %3332 = vmatpush1.bf16.msra.mxu0 0
    %3333 = vmatprep.subr.bf16.mxu0 0
    %3334 = vmatpush1.bf16.msra.mxu0 0
    %3335 = vmatprep.subr.bf16.mxu0 0
    %3336 = vmatpush1.bf16.msra.mxu0 0
    %3337 = vmatprep.subr.bf16.mxu0 0
    %3338 = vmatpush1.bf16.msra.mxu0 0
    %3339 = vmatprep.subr.bf16.mxu0 0
    %3340 = vmatpush1.bf16.msra.mxu0 0
    %3341 = vmatprep.subr.bf16.mxu0 0
    %3342 = vmatpush1.bf16.msra.mxu0 0
    %3343 = vmatprep.subr.bf16.mxu0 0
    %3344 = vmatpush1.bf16.msra.mxu0 0
    %3345 = vmatprep.subr.bf16.mxu0 0
    %3346 = vmatpush1.bf16.msra.mxu0 0
    %3347 = vmatprep.subr.bf16.mxu0 0
    %3348 = vmatpush1.bf16.msra.mxu0 0
    %3349 = vmatprep.subr.bf16.mxu0 0
    %3350 = vmatpush1.bf16.msra.mxu0 0
    %3351 = vmatprep.mubr.bf16.mxu0 0
    %3352 = vmatmul.mubr.bf16.gmra.mrb[0].mxu0 %v3314
    %v3353 = vpop.f32.mrb[0].mxu0
    %v3354 = vadd.f32 0.0, %v3353
    %v3355 = vpop.f32.mrb[0].mxu0
    %v3356 = vpop.f32.mrb[0].mxu0
    %v3357 = vadd.f32 0.0, %v3356
    %v3358 = vpop.f32.mrb[0].mxu0
    %3359 = vmatprep.mubr.bf16.mxu0 0
    %3360 = vmatmul.mubr.bf16.gmra.mrb[0].mxu0 %v3317
    %v3361 = vpop.f32.mrb[0].mxu0
    %v3362 = vadd.f32 0.0, %v3361
    %v3363 = vpop.f32.mrb[0].mxu0
    %v3364 = vpop.f32.mrb[0].mxu0
    %v3365 = vpop.f32.mrb[0].mxu0
    %3366 = vdwg.mxu0
    %v3367 = vadd.f32 %v3176, %v3354
    %v3368 = vadd.f32 %v3177, %v3357
    %v3369 = vadd.f32 %v3178, %v3362
    %v3370 = vrot.slane %v1924, 1
    %v3371 = vsel %vm1940, %v1925, %v3370
    %v3372 = vrot.slane %v1926, 7
    %v3373 = vsel %vm1943, %v3372, %v3371
    %v3374 = vrot.slane %v1927, 6
    %v3375 = vsel %vm1946, %v3374, %v3373
    %v3376 = vrot.slane %v1928, 5
    %v3377 = vsel %vm1949, %v3376, %v3375
    %v3378 = vrot.slane %v1929, 4
    %v3379 = vsel %vm1952, %v3378, %v3377
    %v3380 = vrot.slane %v3263, 3
    %v3381 = vsel %vm1955, %v3380, %v3379
    %v3382 = vrot.slane %v3264, 2
    %v3383 = vsel %vm1958, %v3382, %v3381
    %v3384 = vrot.slane %v3265, 1
    %v3385 = vsel %vm1940, %v1933, %v3384
    %v3386 = vrot.slane %v1934, 7
    %v3387 = vsel %vm1943, %v3386, %v3385
    %v3388 = vrot.slane %v1935, 6
    %v3389 = vsel %vm1946, %v3388, %v3387
    %v3390 = vrot.slane %v1936, 5
    %v3391 = vsel %vm1949, %v3390, %v3389
    %v3392 = vrot.slane %v1937, 4
    %v3393 = vsel %vm1952, %v3392, %v3391
    %v3394 = vrot.slane %v1938, 3
    %v3395 = vsel %vm1955, %v3394, %v3393
    %v3396 = vrot.slane %v3266, 2
    %v3397 = vsel %vm1958, %v3396, %v3395
    %v3398 = vrot.slane %v3267, 1
    %v3399 = vsel %vm1940, %v3268, %v3398
    %v3400 = vpack.c.b16 %v3397, %v3383
    %v3401 = vpack.c.b16 %v3399, %v3399
    %v3406 = vunpack.c.l.b16 %v1641
    %v3407 = vunpack.c.l.b16 %v1642
    %v3408 = vunpack.c.l.b16 %v1643
    %v3409 = vunpack.c.l.b16 %v1644
    %v3410 = vpack.c.b16 %v3407, %v3406
    %v3411 = vpack.c.b16 %v3409, %v3408
    %v3415 = vsel %vm1990, %v3400, 0
    %v3418 = vsel %vm1990, %v3401, 0
    %3420 = vmatprep.subr.bf16.mxu0 0
    %3421 = vmatpush1.bf16.msra.mxu0 %v3410
    %3422 = vmatprep.subr.bf16.mxu0 0
    %3423 = vmatpush1.bf16.msra.mxu0 %v3411
    %3424 = vmatprep.subr.bf16.mxu0 0
    %3425 = vmatpush1.bf16.msra.mxu0 0
    %3426 = vmatprep.subr.bf16.mxu0 0
    %3427 = vmatpush1.bf16.msra.mxu0 0
    %3428 = vmatprep.subr.bf16.mxu0 0
    %3429 = vmatpush1.bf16.msra.mxu0 0
    %3430 = vmatprep.subr.bf16.mxu0 0
    %3431 = vmatpush1.bf16.msra.mxu0 0
    %3432 = vmatprep.subr.bf16.mxu0 0
    %3433 = vmatpush1.bf16.msra.mxu0 0
    %3434 = vmatprep.subr.bf16.mxu0 0
    %3435 = vmatpush1.bf16.msra.mxu0 0
    %3436 = vmatprep.subr.bf16.mxu0 0
    %3437 = vmatpush1.bf16.msra.mxu0 0
    %3438 = vmatprep.subr.bf16.mxu0 0
    %3439 = vmatpush1.bf16.msra.mxu0 0
    %3440 = vmatprep.subr.bf16.mxu0 0
    %3441 = vmatpush1.bf16.msra.mxu0 0
    %3442 = vmatprep.subr.bf16.mxu0 0
    %3443 = vmatpush1.bf16.msra.mxu0 0
    %3444 = vmatprep.subr.bf16.mxu0 0
    %3445 = vmatpush1.bf16.msra.mxu0 0
    %3446 = vmatprep.subr.bf16.mxu0 0
    %3447 = vmatpush1.bf16.msra.mxu0 0
    %3448 = vmatprep.subr.bf16.mxu0 0
    %3449 = vmatpush1.bf16.msra.mxu0 0
    %3450 = vmatprep.subr.bf16.mxu0 0
    %3451 = vmatpush1.bf16.msra.mxu0 0
    %3452 = vmatprep.mubr.bf16.mxu0 0
    %3453 = vmatmul.mubr.bf16.gmra.mrb[0].mxu0 %v3415
    %v3454 = vpop.f32.mrb[0].mxu0
    %v3455 = vadd.f32 0.0, %v3454
    %v3456 = vpop.f32.mrb[0].mxu0
    %v3457 = vpop.f32.mrb[0].mxu0
    %v3458 = vadd.f32 0.0, %v3457
    %v3459 = vpop.f32.mrb[0].mxu0
    %3460 = vmatprep.mubr.bf16.mxu0 0
    %3461 = vmatmul.mubr.bf16.gmra.mrb[0].mxu0 %v3418
    %v3462 = vpop.f32.mrb[0].mxu0
    %v3463 = vadd.f32 0.0, %v3462
    %v3464 = vpop.f32.mrb[0].mxu0
    %v3465 = vpop.f32.mrb[0].mxu0
    %v3466 = vpop.f32.mrb[0].mxu0
    %3467 = vdwg.mxu0
    %v3468 = vadd.f32 %v3367, %v3455
    %v3469 = vadd.f32 %v3368, %v3458
    %v3470 = vadd.f32 %v3369, %v3463
    %v3472 = vunpack.c.l.s4 1966171168
    %v3473 = vunpack.c.0.s8 %v3472
    %v3474 = vlaneseq
    %v3475 = vshrl.u32 %v3474, 7
    %v3476 = vsub.s32 %v3473, %v3475
    %v3477 = vrot.slane %v1316, %v3476
    %v3479 = vunpack.c.l.s4 1966171168
    %v3480 = vunpack.c.0.s8 %v3479
    %v3481 = vlaneseq
    %v3482 = vshrl.u32 %v3481, 7
    %v3483 = vsub.s32 %v3480, %v3482
    %v3484 = vrot.slane %v3477, %v3483
    %v3486 = vunpack.c.l.s4 1966171168
    %v3487 = vunpack.c.0.s8 %v3486
    %v3488 = vlaneseq
    %v3489 = vshrl.u32 %v3488, 7
    %v3490 = vsub.s32 %v3487, %v3489
    %v3491 = vrot.slane %v1412, %v3490
    %v3493 = vunpack.c.l.s4 1966171168
    %v3494 = vunpack.c.0.s8 %v3493
    %v3495 = vlaneseq
    %v3496 = vshrl.u32 %v3495, 7
    %v3497 = vsub.s32 %v3494, %v3496
    %v3498 = vrot.slane %v3491, %v3497
    %v3499 = vunpack.c.l.b16 %v3484
    %v3500 = vunpack.c.l.b16 %v3498
    %v3501 = vsel %vm1940, %v3372, %v1925
    %v3502 = vrot.slane %v2228, 6
    %v3503 = vsel %vm1943, %v3502, %v3501
    %v3504 = vsel %vm1946, %v3376, %v3503
    %v3505 = vsel %vm1949, %v3378, %v3504
    %v3506 = vrot.slane %v2229, 3
    %v3507 = vsel %vm1952, %v3506, %v3505
    %v3508 = vsel %vm1955, %v3382, %v3507
    %v3509 = vsel %vm1958, %v3384, %v3508
    %v3510 = vsel %vm1940, %v3386, %v3499
    %v3511 = vsel %vm1943, %v3388, %v3510
    %v3512 = vrot.slane %v2231, 5
    %v3513 = vsel %vm1946, %v3512, %v3511
    %v3514 = vsel %vm1949, %v3392, %v3513
    %v3515 = vsel %vm1952, %v3394, %v3514
    %v3516 = vrot.slane %v2232, 2
    %v3517 = vsel %vm1955, %v3516, %v3515
    %v3518 = vsel %vm1958, %v3398, %v3517
    %v3519 = vrot.slane %v3500, 7
    %v3520 = vsel %vm1940, %v3519, %v3268
    %v3521 = vpack.c.b16 %v3518, %v3509
    %v3522 = vpack.c.b16 %v3520, %v3520
    %v3527 = vunpack.c.l.b16 %v1645
    %v3528 = vunpack.c.l.b16 %v1646
    %v3529 = vunpack.c.l.b16 %v1647
    %v3530 = vunpack.c.l.b16 %v1648
    %v3531 = vpack.c.b16 %v3528, %v3527
    %v3532 = vpack.c.b16 %v3530, %v3529
    %v3536 = vsel %vm1990, %v3521, 0
    %v3539 = vsel %vm1990, %v3522, 0
    %3541 = vmatprep.subr.bf16.mxu0 0
    %3542 = vmatpush1.bf16.msra.mxu0 %v3531
    %3543 = vmatprep.subr.bf16.mxu0 0
    %3544 = vmatpush1.bf16.msra.mxu0 %v3532
    %3545 = vmatprep.subr.bf16.mxu0 0
    %3546 = vmatpush1.bf16.msra.mxu0 0
    %3547 = vmatprep.subr.bf16.mxu0 0
    %3548 = vmatpush1.bf16.msra.mxu0 0
    %3549 = vmatprep.subr.bf16.mxu0 0
    %3550 = vmatpush1.bf16.msra.mxu0 0
    %3551 = vmatprep.subr.bf16.mxu0 0
    %3552 = vmatpush1.bf16.msra.mxu0 0
    %3553 = vmatprep.subr.bf16.mxu0 0
    %3554 = vmatpush1.bf16.msra.mxu0 0
    %3555 = vmatprep.subr.bf16.mxu0 0
    %3556 = vmatpush1.bf16.msra.mxu0 0
    %3557 = vmatprep.subr.bf16.mxu0 0
    %3558 = vmatpush1.bf16.msra.mxu0 0
    %3559 = vmatprep.subr.bf16.mxu0 0
    %3560 = vmatpush1.bf16.msra.mxu0 0
    %3561 = vmatprep.subr.bf16.mxu0 0
    %3562 = vmatpush1.bf16.msra.mxu0 0
    %3563 = vmatprep.subr.bf16.mxu0 0
    %3564 = vmatpush1.bf16.msra.mxu0 0
    %3565 = vmatprep.subr.bf16.mxu0 0
    %3566 = vmatpush1.bf16.msra.mxu0 0
    %3567 = vmatprep.subr.bf16.mxu0 0
    %3568 = vmatpush1.bf16.msra.mxu0 0
    %3569 = vmatprep.subr.bf16.mxu0 0
    %3570 = vmatpush1.bf16.msra.mxu0 0
    %3571 = vmatprep.subr.bf16.mxu0 0
    %3572 = vmatpush1.bf16.msra.mxu0 0
    %3573 = vmatprep.mubr.bf16.mxu0 0
    %3574 = vmatmul.mubr.bf16.gmra.mrb[0].mxu0 %v3536
    %v3575 = vpop.f32.mrb[0].mxu0
    %v3576 = vadd.f32 0.0, %v3575
    %v3577 = vpop.f32.mrb[0].mxu0
    %v3578 = vpop.f32.mrb[0].mxu0
    %v3579 = vadd.f32 0.0, %v3578
    %v3580 = vpop.f32.mrb[0].mxu0
    %3581 = vmatprep.mubr.bf16.mxu0 0
    %3582 = vmatmul.mubr.bf16.gmra.mrb[0].mxu0 %v3539
    %v3583 = vpop.f32.mrb[0].mxu0
    %v3584 = vadd.f32 0.0, %v3583
    %v3585 = vpop.f32.mrb[0].mxu0
    %v3586 = vpop.f32.mrb[0].mxu0
    %v3587 = vpop.f32.mrb[0].mxu0
    %3588 = vdwg.mxu0
    %v3589 = vadd.f32 %v3468, %v3576
    %v3590 = vadd.f32 %v3469, %v3579
    %v3591 = vadd.f32 %v3470, %v3584
    %v3592 = vrot.slane %v1925, 1
    %v3593 = vsel %vm1940, %v1926, %v3592
    %v3594 = vrot.slane %v2228, 7
    %v3595 = vsel %vm1943, %v3594, %v3593
    %v3596 = vrot.slane %v1928, 6
    %v3597 = vsel %vm1946, %v3596, %v3595
    %v3598 = vrot.slane %v1929, 5
    %v3599 = vsel %vm1949, %v3598, %v3597
    %v3600 = vrot.slane %v2229, 4
    %v3601 = vsel %vm1952, %v3600, %v3599
    %v3602 = vrot.slane %v3264, 3
    %v3603 = vsel %vm1955, %v3602, %v3601
    %v3604 = vrot.slane %v3265, 2
    %v3605 = vsel %vm1958, %v3604, %v3603
    %v3606 = vrot.slane %v3499, 1
    %v3607 = vsel %vm1940, %v1934, %v3606
    %v3608 = vrot.slane %v1935, 7
    %v3609 = vsel %vm1943, %v3608, %v3607
    %v3610 = vrot.slane %v2231, 6
    %v3611 = vsel %vm1946, %v3610, %v3609
    %v3612 = vrot.slane %v1937, 5
    %v3613 = vsel %vm1949, %v3612, %v3611
    %v3614 = vrot.slane %v1938, 4
    %v3615 = vsel %vm1952, %v3614, %v3613
    %v3616 = vrot.slane %v2232, 3
    %v3617 = vsel %vm1955, %v3616, %v3615
    %v3618 = vrot.slane %v3267, 2
    %v3619 = vsel %vm1958, %v3618, %v3617
    %v3620 = vrot.slane %v3268, 1
    %v3621 = vsel %vm1940, %v3500, %v3620
    %v3622 = vpack.c.b16 %v3619, %v3605
    %v3623 = vpack.c.b16 %v3621, %v3621
    %v3628 = vunpack.c.l.b16 %v1649
    %v3629 = vunpack.c.l.b16 %v1650
    %v3630 = vunpack.c.l.b16 %v1651
    %v3631 = vunpack.c.l.b16 %v1652
    %v3632 = vpack.c.b16 %v3629, %v3628
    %v3633 = vpack.c.b16 %v3631, %v3630
    %v3637 = vsel %vm1990, %v3622, 0
    %v3640 = vsel %vm1990, %v3623, 0
    %3642 = vmatprep.subr.bf16.mxu0 0
    %3643 = vmatpush1.bf16.msra.mxu0 %v3632
    %3644 = vmatprep.subr.bf16.mxu0 0
    %3645 = vmatpush1.bf16.msra.mxu0 %v3633
    %3646 = vmatprep.subr.bf16.mxu0 0
    %3647 = vmatpush1.bf16.msra.mxu0 0
    %3648 = vmatprep.subr.bf16.mxu0 0
    %3649 = vmatpush1.bf16.msra.mxu0 0
    %3650 = vmatprep.subr.bf16.mxu0 0
    %3651 = vmatpush1.bf16.msra.mxu0 0
    %3652 = vmatprep.subr.bf16.mxu0 0
    %3653 = vmatpush1.bf16.msra.mxu0 0
    %3654 = vmatprep.subr.bf16.mxu0 0
    %3655 = vmatpush1.bf16.msra.mxu0 0
    %3656 = vmatprep.subr.bf16.mxu0 0
    %3657 = vmatpush1.bf16.msra.mxu0 0
    %3658 = vmatprep.subr.bf16.mxu0 0
    %3659 = vmatpush1.bf16.msra.mxu0 0
    %3660 = vmatprep.subr.bf16.mxu0 0
    %3661 = vmatpush1.bf16.msra.mxu0 0
    %3662 = vmatprep.subr.bf16.mxu0 0
    %3663 = vmatpush1.bf16.msra.mxu0 0
    %3664 = vmatprep.subr.bf16.mxu0 0
    %3665 = vmatpush1.bf16.msra.mxu0 0
    %3666 = vmatprep.subr.bf16.mxu0 0
    %3667 = vmatpush1.bf16.msra.mxu0 0
    %3668 = vmatprep.subr.bf16.mxu0 0
    %3669 = vmatpush1.bf16.msra.mxu0 0
    %3670 = vmatprep.subr.bf16.mxu0 0
    %3671 = vmatpush1.bf16.msra.mxu0 0
    %3672 = vmatprep.subr.bf16.mxu0 0
    %3673 = vmatpush1.bf16.msra.mxu0 0
    %3674 = vmatprep.mubr.bf16.mxu0 0
    %3675 = vmatmul.mubr.bf16.gmra.mrb[0].mxu0 %v3637
    %v3676 = vpop.f32.mrb[0].mxu0
    %v3677 = vadd.f32 0.0, %v3676
    %v3678 = vpop.f32.mrb[0].mxu0
    %v3679 = vpop.f32.mrb[0].mxu0
    %v3680 = vadd.f32 0.0, %v3679
    %v3681 = vpop.f32.mrb[0].mxu0
    %3682 = vmatprep.mubr.bf16.mxu0 0
    %3683 = vmatmul.mubr.bf16.gmra.mrb[0].mxu0 %v3640
    %v3684 = vpop.f32.mrb[0].mxu0
    %v3685 = vadd.f32 0.0, %v3684
    %v3686 = vpop.f32.mrb[0].mxu0
    %v3687 = vpop.f32.mrb[0].mxu0
    %v3688 = vpop.f32.mrb[0].mxu0
    %3689 = vdwg.mxu0
    %v3690 = vadd.f32 %v3589, %v3677
    %v3691 = vadd.f32 %v3590, %v3680
    %v3692 = vadd.f32 %v3591, %v3685
    %v3694 = vunpack.c.l.s4 1966171168
    %v3695 = vunpack.c.0.s8 %v3694
    %v3696 = vlaneseq
    %v3697 = vshrl.u32 %v3696, 7
    %v3698 = vsub.s32 %v3695, %v3697
    %v3699 = vrot.slane %v1499, %v3698
    %v3701 = vunpack.c.l.s4 1966171168
    %v3702 = vunpack.c.0.s8 %v3701
    %v3703 = vlaneseq
    %v3704 = vshrl.u32 %v3703, 7
    %v3705 = vsub.s32 %v3702, %v3704
    %v3706 = vrot.slane %v3699, %v3705
    %v3708 = vunpack.c.l.s4 1966171168
    %v3709 = vunpack.c.0.s8 %v3708
    %v3710 = vlaneseq
    %v3711 = vshrl.u32 %v3710, 7
    %v3712 = vsub.s32 %v3709, %v3711
    %v3713 = vrot.slane %v1506, %v3712
    %v3715 = vunpack.c.l.s4 1966171168
    %v3716 = vunpack.c.0.s8 %v3715
    %v3717 = vlaneseq
    %v3718 = vshrl.u32 %v3717, 7
    %v3719 = vsub.s32 %v3716, %v3718
    %v3720 = vrot.slane %v3713, %v3719
    %v3722 = vunpack.c.l.s4 1966171168
    %v3723 = vunpack.c.0.s8 %v3722
    %v3724 = vlaneseq
    %v3725 = vshrl.u32 %v3724, 7
    %v3726 = vsub.s32 %v3723, %v3725
    %v3727 = vrot.slane %v1507, %v3726
    %v3729 = vunpack.c.l.s4 1966171168
    %v3730 = vunpack.c.0.s8 %v3729
    %v3731 = vlaneseq
    %v3732 = vshrl.u32 %v3731, 7
    %v3733 = vsub.s32 %v3730, %v3732
    %v3734 = vrot.slane %v3727, %v3733
    %v3736 = vunpack.c.l.s4 1966171168
    %v3737 = vunpack.c.0.s8 %v3736
    %v3738 = vlaneseq
    %v3739 = vshrl.u32 %v3738, 7
    %v3740 = vsub.s32 %v3737, %v3739
    %v3741 = vrot.slane %v1595, %v3740
    %v3743 = vunpack.c.l.s4 1966171168
    %v3744 = vunpack.c.0.s8 %v3743
    %v3745 = vlaneseq
    %v3746 = vshrl.u32 %v3745, 7
    %v3747 = vsub.s32 %v3744, %v3746
    %v3748 = vrot.slane %v3741, %v3747
    %v3750 = vunpack.c.l.s4 1966171168
    %v3751 = vunpack.c.0.s8 %v3750
    %v3752 = vlaneseq
    %v3753 = vshrl.u32 %v3752, 7
    %v3754 = vsub.s32 %v3751, %v3753
    %v3755 = vrot.slane %v1602, %v3754
    %v3757 = vunpack.c.l.s4 1966171168
    %v3758 = vunpack.c.0.s8 %v3757
    %v3759 = vlaneseq
    %v3760 = vshrl.u32 %v3759, 7
    %v3761 = vsub.s32 %v3758, %v3760
    %v3762 = vrot.slane %v3755, %v3761
    %v3764 = vunpack.c.l.s4 1966171168
    %v3765 = vunpack.c.0.s8 %v3764
    %v3766 = vlaneseq
    %v3767 = vshrl.u32 %v3766, 7
    %v3768 = vsub.s32 %v3765, %v3767
    %v3769 = vrot.slane %v1603, %v3768
    %v3771 = vunpack.c.l.s4 1966171168
    %v3772 = vunpack.c.0.s8 %v3771
    %v3773 = vlaneseq
    %v3774 = vshrl.u32 %v3773, 7
    %v3775 = vsub.s32 %v3772, %v3774
    %v3776 = vrot.slane %v3769, %v3775
    %v3777 = vunpack.c.l.b16 %v3706
    %v3778 = vunpack.c.l.b16 %v3720
    %v3779 = vunpack.c.l.b16 %v3734
    %v3780 = vunpack.c.l.b16 %v3748
    %v3781 = vunpack.c.l.b16 %v3762
    %v3782 = vunpack.c.l.b16 %v3776
    %v3783 = vrot.slane %v2681, 7
    %v3784 = vsel %vm1940, %v3783, %v2680
    %v3785 = vrot.slane %v2682, 6
    %v3786 = vsel %vm1943, %v3785, %v3784
    %v3787 = vrot.slane %v2683, 5
    %v3788 = vsel %vm1946, %v3787, %v3786
    %v3789 = vrot.slane %v2684, 4
    %v3790 = vsel %vm1949, %v3789, %v3788
    %v3791 = vrot.slane %v2685, 3
    %v3792 = vsel %vm1952, %v3791, %v3790
    %v3793 = vrot.slane %v3777, 2
    %v3794 = vsel %vm1955, %v3793, %v3792
    %v3795 = vrot.slane %v3778, 1
    %v3796 = vsel %vm1958, %v3795, %v3794
    %v3797 = vrot.slane %v2689, 7
    %v3798 = vsel %vm1940, %v3797, %v3779
    %v3799 = vrot.slane %v2690, 6
    %v3800 = vsel %vm1943, %v3799, %v3798
    %v3801 = vrot.slane %v2691, 5
    %v3802 = vsel %vm1946, %v3801, %v3800
    %v3803 = vrot.slane %v2692, 4
    %v3804 = vsel %vm1949, %v3803, %v3802
    %v3805 = vrot.slane %v2693, 3
    %v3806 = vsel %vm1952, %v3805, %v3804
    %v3807 = vrot.slane %v2694, 2
    %v3808 = vsel %vm1955, %v3807, %v3806
    %v3809 = vrot.slane %v3780, 1
    %v3810 = vsel %vm1958, %v3809, %v3808
    %v3811 = vrot.slane %v3782, 7
    %v3812 = vsel %vm1940, %v3811, %v3781
    %v3813 = vpack.c.b16 %v3810, %v3796
    %v3814 = vpack.c.b16 %v3812, %v3812
    %v3819 = vunpack.c.l.b16 %v1653
    %v3820 = vunpack.c.l.b16 %v1654
    %v3821 = vunpack.c.l.b16 %v1655
    %v3822 = vunpack.c.l.b16 %v1656
    %v3823 = vpack.c.b16 %v3820, %v3819
    %v3824 = vpack.c.b16 %v3822, %v3821
    %v3828 = vsel %vm1990, %v3813, 0
    %v3831 = vsel %vm1990, %v3814, 0
    %3833 = vmatprep.subr.bf16.mxu0 0
    %3834 = vmatpush1.bf16.msra.mxu0 %v3823
    %3835 = vmatprep.subr.bf16.mxu0 0
    %3836 = vmatpush1.bf16.msra.mxu0 %v3824
    %3837 = vmatprep.subr.bf16.mxu0 0
    %3838 = vmatpush1.bf16.msra.mxu0 0
    %3839 = vmatprep.subr.bf16.mxu0 0
    %3840 = vmatpush1.bf16.msra.mxu0 0
    %3841 = vmatprep.subr.bf16.mxu0 0
    %3842 = vmatpush1.bf16.msra.mxu0 0
    %3843 = vmatprep.subr.bf16.mxu0 0
    %3844 = vmatpush1.bf16.msra.mxu0 0
    %3845 = vmatprep.subr.bf16.mxu0 0
    %3846 = vmatpush1.bf16.msra.mxu0 0
    %3847 = vmatprep.subr.bf16.mxu0 0
    %3848 = vmatpush1.bf16.msra.mxu0 0
    %3849 = vmatprep.subr.bf16.mxu0 0
    %3850 = vmatpush1.bf16.msra.mxu0 0
    %3851 = vmatprep.subr.bf16.mxu0 0
    %3852 = vmatpush1.bf16.msra.mxu0 0
    %3853 = vmatprep.subr.bf16.mxu0 0
    %3854 = vmatpush1.bf16.msra.mxu0 0
    %3855 = vmatprep.subr.bf16.mxu0 0
    %3856 = vmatpush1.bf16.msra.mxu0 0
    %3857 = vmatprep.subr.bf16.mxu0 0
    %3858 = vmatpush1.bf16.msra.mxu0 0
    %3859 = vmatprep.subr.bf16.mxu0 0
    %3860 = vmatpush1.bf16.msra.mxu0 0
    %3861 = vmatprep.subr.bf16.mxu0 0
    %3862 = vmatpush1.bf16.msra.mxu0 0
    %3863 = vmatprep.subr.bf16.mxu0 0
    %3864 = vmatpush1.bf16.msra.mxu0 0
    %3865 = vmatprep.mubr.bf16.mxu0 0
    %3866 = vmatmul.mubr.bf16.gmra.mrb[0].mxu0 %v3828
    %v3867 = vpop.f32.mrb[0].mxu0
    %v3868 = vadd.f32 0.0, %v3867
    %v3869 = vpop.f32.mrb[0].mxu0
    %v3870 = vpop.f32.mrb[0].mxu0
    %v3871 = vadd.f32 0.0, %v3870
    %v3872 = vpop.f32.mrb[0].mxu0
    %3873 = vmatprep.mubr.bf16.mxu0 0
    %3874 = vmatmul.mubr.bf16.gmra.mrb[0].mxu0 %v3831
    %v3875 = vpop.f32.mrb[0].mxu0
    %v3876 = vadd.f32 0.0, %v3875
    %v3877 = vpop.f32.mrb[0].mxu0
    %v3878 = vpop.f32.mrb[0].mxu0
    %v3879 = vpop.f32.mrb[0].mxu0
    %3880 = vdwg.mxu0
    %v3881 = vadd.f32 %v3690, %v3868
    %v3882 = vadd.f32 %v3691, %v3871
    %v3883 = vadd.f32 %v3692, %v3876
    %v3884 = vrot.slane %v2680, 1
    %v3885 = vsel %vm1940, %v2681, %v3884
    %v3886 = vrot.slane %v2682, 7
    %v3887 = vsel %vm1943, %v3886, %v3885
    %v3888 = vrot.slane %v2683, 6
    %v3889 = vsel %vm1946, %v3888, %v3887
    %v3890 = vrot.slane %v2684, 5
    %v3891 = vsel %vm1949, %v3890, %v3889
    %v3892 = vrot.slane %v2685, 4
    %v3893 = vsel %vm1952, %v3892, %v3891
    %v3894 = vrot.slane %v3777, 3
    %v3895 = vsel %vm1955, %v3894, %v3893
    %v3896 = vrot.slane %v3778, 2
    %v3897 = vsel %vm1958, %v3896, %v3895
    %v3898 = vrot.slane %v3779, 1
    %v3899 = vsel %vm1940, %v2689, %v3898
    %v3900 = vrot.slane %v2690, 7
    %v3901 = vsel %vm1943, %v3900, %v3899
    %v3902 = vrot.slane %v2691, 6
    %v3903 = vsel %vm1946, %v3902, %v3901
    %v3904 = vrot.slane %v2692, 5
    %v3905 = vsel %vm1949, %v3904, %v3903
    %v3906 = vrot.slane %v2693, 4
    %v3907 = vsel %vm1952, %v3906, %v3905
    %v3908 = vrot.slane %v2694, 3
    %v3909 = vsel %vm1955, %v3908, %v3907
    %v3910 = vrot.slane %v3780, 2
    %v3911 = vsel %vm1958, %v3910, %v3909
    %v3912 = vrot.slane %v3781, 1
    %v3913 = vsel %vm1940, %v3782, %v3912
    %v3914 = vpack.c.b16 %v3911, %v3897
    %v3915 = vpack.c.b16 %v3913, %v3913
    %v3920 = vunpack.c.l.b16 %v1657
    %v3921 = vunpack.c.l.b16 %v1658
    %v3922 = vunpack.c.l.b16 %v1659
    %v3923 = vunpack.c.l.b16 %v1660
    %v3924 = vpack.c.b16 %v3921, %v3920
    %v3925 = vpack.c.b16 %v3923, %v3922
    %v3929 = vsel %vm1990, %v3914, 0
    %v3932 = vsel %vm1990, %v3915, 0
    %3934 = vmatprep.subr.bf16.mxu0 0
    %3935 = vmatpush1.bf16.msra.mxu0 %v3924
    %3936 = vmatprep.subr.bf16.mxu0 0
    %3937 = vmatpush1.bf16.msra.mxu0 %v3925
    %3938 = vmatprep.subr.bf16.mxu0 0
    %3939 = vmatpush1.bf16.msra.mxu0 0
    %3940 = vmatprep.subr.bf16.mxu0 0
    %3941 = vmatpush1.bf16.msra.mxu0 0
    %3942 = vmatprep.subr.bf16.mxu0 0
    %3943 = vmatpush1.bf16.msra.mxu0 0
    %3944 = vmatprep.subr.bf16.mxu0 0
    %3945 = vmatpush1.bf16.msra.mxu0 0
    %3946 = vmatprep.subr.bf16.mxu0 0
    %3947 = vmatpush1.bf16.msra.mxu0 0
    %3948 = vmatprep.subr.bf16.mxu0 0
    %3949 = vmatpush1.bf16.msra.mxu0 0
    %3950 = vmatprep.subr.bf16.mxu0 0
    %3951 = vmatpush1.bf16.msra.mxu0 0
    %3952 = vmatprep.subr.bf16.mxu0 0
    %3953 = vmatpush1.bf16.msra.mxu0 0
    %3954 = vmatprep.subr.bf16.mxu0 0
    %3955 = vmatpush1.bf16.msra.mxu0 0
    %3956 = vmatprep.subr.bf16.mxu0 0
    %3957 = vmatpush1.bf16.msra.mxu0 0
    %3958 = vmatprep.subr.bf16.mxu0 0
    %3959 = vmatpush1.bf16.msra.mxu0 0
    %3960 = vmatprep.subr.bf16.mxu0 0
    %3961 = vmatpush1.bf16.msra.mxu0 0
    %3962 = vmatprep.subr.bf16.mxu0 0
    %3963 = vmatpush1.bf16.msra.mxu0 0
    %3964 = vmatprep.subr.bf16.mxu0 0
    %3965 = vmatpush1.bf16.msra.mxu0 0
    %3966 = vmatprep.mubr.bf16.mxu0 0
    %3967 = vmatmul.mubr.bf16.gmra.mrb[0].mxu0 %v3929
    %v3968 = vpop.f32.mrb[0].mxu0
    %v3969 = vadd.f32 0.0, %v3968
    %v3970 = vpop.f32.mrb[0].mxu0
    %v3971 = vpop.f32.mrb[0].mxu0
    %v3972 = vadd.f32 0.0, %v3971
    %v3973 = vpop.f32.mrb[0].mxu0
    %3974 = vmatprep.mubr.bf16.mxu0 0
    %3975 = vmatmul.mubr.bf16.gmra.mrb[0].mxu0 %v3932
    %v3976 = vpop.f32.mrb[0].mxu0
    %v3977 = vadd.f32 0.0, %v3976
    %v3978 = vpop.f32.mrb[0].mxu0
    %v3979 = vpop.f32.mrb[0].mxu0
    %v3980 = vpop.f32.mrb[0].mxu0
    %3981 = vdwg.mxu0
    %v3982 = vadd.f32 %v3881, %v3969
    %v3983 = vadd.f32 %v3882, %v3972
    %v3984 = vadd.f32 %v3883, %v3977
    %v3986 = vunpack.c.l.s4 1966171168
    %v3987 = vunpack.c.0.s8 %v3986
    %v3988 = vlaneseq
    %v3989 = vshrl.u32 %v3988, 7
    %v3990 = vsub.s32 %v3987, %v3989
    %v3991 = vrot.slane %v1508, %v3990
    %v3993 = vunpack.c.l.s4 1966171168
    %v3994 = vunpack.c.0.s8 %v3993
    %v3995 = vlaneseq
    %v3996 = vshrl.u32 %v3995, 7
    %v3997 = vsub.s32 %v3994, %v3996
    %v3998 = vrot.slane %v3991, %v3997
    %v4000 = vunpack.c.l.s4 1966171168
    %v4001 = vunpack.c.0.s8 %v4000
    %v4002 = vlaneseq
    %v4003 = vshrl.u32 %v4002, 7
    %v4004 = vsub.s32 %v4001, %v4003
    %v4005 = vrot.slane %v1604, %v4004
    %v4007 = vunpack.c.l.s4 1966171168
    %v4008 = vunpack.c.0.s8 %v4007
    %v4009 = vlaneseq
    %v4010 = vshrl.u32 %v4009, 7
    %v4011 = vsub.s32 %v4008, %v4010
    %v4012 = vrot.slane %v4005, %v4011
    %v4013 = vunpack.c.l.b16 %v3998
    %v4014 = vunpack.c.l.b16 %v4012
    %v4015 = vsel %vm1940, %v3886, %v2681
    %v4016 = vrot.slane %v2982, 6
    %v4017 = vsel %vm1943, %v4016, %v4015
    %v4018 = vsel %vm1946, %v3890, %v4017
    %v4019 = vsel %vm1949, %v3892, %v4018
    %v4020 = vrot.slane %v2983, 3
    %v4021 = vsel %vm1952, %v4020, %v4019
    %v4022 = vsel %vm1955, %v3896, %v4021
    %v4023 = vsel %vm1958, %v3898, %v4022
    %v4024 = vsel %vm1940, %v3900, %v4013
    %v4025 = vsel %vm1943, %v3902, %v4024
    %v4026 = vrot.slane %v2985, 5
    %v4027 = vsel %vm1946, %v4026, %v4025
    %v4028 = vsel %vm1949, %v3906, %v4027
    %v4029 = vsel %vm1952, %v3908, %v4028
    %v4030 = vrot.slane %v2986, 2
    %v4031 = vsel %vm1955, %v4030, %v4029
    %v4032 = vsel %vm1958, %v3912, %v4031
    %v4033 = vrot.slane %v4014, 7
    %v4034 = vsel %vm1940, %v4033, %v3782
    %v4035 = vpack.c.b16 %v4032, %v4023
    %v4036 = vpack.c.b16 %v4034, %v4034
    %v4041 = vunpack.c.l.b16 %v1661
    %v4042 = vunpack.c.l.b16 %v1662
    %v4043 = vunpack.c.l.b16 %v1663
    %v4044 = vunpack.c.l.b16 %v1664
    %v4045 = vpack.c.b16 %v4042, %v4041
    %v4046 = vpack.c.b16 %v4044, %v4043
    %v4050 = vsel %vm1990, %v4035, 0
    %v4053 = vsel %vm1990, %v4036, 0
    %4055 = vmatprep.subr.bf16.mxu0 0
    %4056 = vmatpush1.bf16.msra.mxu0 %v4045
    %4057 = vmatprep.subr.bf16.mxu0 0
    %4058 = vmatpush1.bf16.msra.mxu0 %v4046
    %4059 = vmatprep.subr.bf16.mxu0 0
    %4060 = vmatpush1.bf16.msra.mxu0 0
    %4061 = vmatprep.subr.bf16.mxu0 0
    %4062 = vmatpush1.bf16.msra.mxu0 0
    %4063 = vmatprep.subr.bf16.mxu0 0
    %4064 = vmatpush1.bf16.msra.mxu0 0
    %4065 = vmatprep.subr.bf16.mxu0 0
    %4066 = vmatpush1.bf16.msra.mxu0 0
    %4067 = vmatprep.subr.bf16.mxu0 0
    %4068 = vmatpush1.bf16.msra.mxu0 0
    %4069 = vmatprep.subr.bf16.mxu0 0
    %4070 = vmatpush1.bf16.msra.mxu0 0
    %4071 = vmatprep.subr.bf16.mxu0 0
    %4072 = vmatpush1.bf16.msra.mxu0 0
    %4073 = vmatprep.subr.bf16.mxu0 0
    %4074 = vmatpush1.bf16.msra.mxu0 0
    %4075 = vmatprep.subr.bf16.mxu0 0
    %4076 = vmatpush1.bf16.msra.mxu0 0
    %4077 = vmatprep.subr.bf16.mxu0 0
    %4078 = vmatpush1.bf16.msra.mxu0 0
    %4079 = vmatprep.subr.bf16.mxu0 0
    %4080 = vmatpush1.bf16.msra.mxu0 0
    %4081 = vmatprep.subr.bf16.mxu0 0
    %4082 = vmatpush1.bf16.msra.mxu0 0
    %4083 = vmatprep.subr.bf16.mxu0 0
    %4084 = vmatpush1.bf16.msra.mxu0 0
    %4085 = vmatprep.subr.bf16.mxu0 0
    %4086 = vmatpush1.bf16.msra.mxu0 0
    %4087 = vmatprep.mubr.bf16.mxu0 0
    %4088 = vmatmul.mubr.bf16.gmra.mrb[0].mxu0 %v4050
    %v4089 = vpop.f32.mrb[0].mxu0
    %v4090 = vadd.f32 0.0, %v4089
    %v4091 = vpop.f32.mrb[0].mxu0
    %v4092 = vpop.f32.mrb[0].mxu0
    %v4093 = vadd.f32 0.0, %v4092
    %v4094 = vpop.f32.mrb[0].mxu0
    %4095 = vmatprep.mubr.bf16.mxu0 0
    %4096 = vmatmul.mubr.bf16.gmra.mrb[0].mxu0 %v4053
    %v4097 = vpop.f32.mrb[0].mxu0
    %v4098 = vadd.f32 0.0, %v4097
    %v4099 = vpop.f32.mrb[0].mxu0
    %v4100 = vpop.f32.mrb[0].mxu0
    %v4101 = vpop.f32.mrb[0].mxu0
    %4102 = vdwg.mxu0
    %v4103 = vadd.f32 %v3982, %v4090
    %v4104 = vadd.f32 %v3983, %v4093
    %v4105 = vadd.f32 %v3984, %v4098
    %v4106 = vrot.slane %v2681, 1
    %v4107 = vsel %vm1940, %v2682, %v4106
    %v4108 = vrot.slane %v2982, 7
    %v4109 = vsel %vm1943, %v4108, %v4107
    %v4110 = vrot.slane %v2684, 6
    %v4111 = vsel %vm1946, %v4110, %v4109
    %v4112 = vrot.slane %v2685, 5
    %v4113 = vsel %vm1949, %v4112, %v4111
    %v4114 = vrot.slane %v2983, 4
    %v4115 = vsel %vm1952, %v4114, %v4113
    %v4116 = vrot.slane %v3778, 3
    %v4117 = vsel %vm1955, %v4116, %v4115
    %v4118 = vrot.slane %v3779, 2
    %v4119 = vsel %vm1958, %v4118, %v4117
    %v4120 = vrot.slane %v4013, 1
    %v4121 = vsel %vm1940, %v2690, %v4120
    %v4122 = vrot.slane %v2691, 7
    %v4123 = vsel %vm1943, %v4122, %v4121
    %v4124 = vrot.slane %v2985, 6
    %v4125 = vsel %vm1946, %v4124, %v4123
    %v4126 = vrot.slane %v2693, 5
    %v4127 = vsel %vm1949, %v4126, %v4125
    %v4128 = vrot.slane %v2694, 4
    %v4129 = vsel %vm1952, %v4128, %v4127
    %v4130 = vrot.slane %v2986, 3
    %v4131 = vsel %vm1955, %v4130, %v4129
    %v4132 = vrot.slane %v3781, 2
    %v4133 = vsel %vm1958, %v4132, %v4131
    %v4134 = vrot.slane %v3782, 1
    %v4135 = vsel %vm1940, %v4014, %v4134
    %v4136 = vpack.c.b16 %v4133, %v4119
    %v4137 = vpack.c.b16 %v4135, %v4135
    %v4142 = vunpack.c.l.b16 %v1665
    %v4143 = vunpack.c.l.b16 %v1666
    %v4144 = vunpack.c.l.b16 %v1667
    %v4145 = vunpack.c.l.b16 %v1668
    %v4146 = vpack.c.b16 %v4143, %v4142
    %v4147 = vpack.c.b16 %v4145, %v4144
    %v4151 = vsel %vm1990, %v4136, 0
    %v4154 = vsel %vm1990, %v4137, 0
    %4156 = vmatprep.subr.bf16.mxu0 0
    %4157 = vmatpush1.bf16.msra.mxu0 %v4146
    %4158 = vmatprep.subr.bf16.mxu0 0
    %4159 = vmatpush1.bf16.msra.mxu0 %v4147
    %4160 = vmatprep.subr.bf16.mxu0 0
    %4161 = vmatpush1.bf16.msra.mxu0 0
    %4162 = vmatprep.subr.bf16.mxu0 0
    %4163 = vmatpush1.bf16.msra.mxu0 0
    %4164 = vmatprep.subr.bf16.mxu0 0
    %4165 = vmatpush1.bf16.msra.mxu0 0
    %4166 = vmatprep.subr.bf16.mxu0 0
    %4167 = vmatpush1.bf16.msra.mxu0 0
    %4168 = vmatprep.subr.bf16.mxu0 0
    %4169 = vmatpush1.bf16.msra.mxu0 0
    %4170 = vmatprep.subr.bf16.mxu0 0
    %4171 = vmatpush1.bf16.msra.mxu0 0
    %4172 = vmatprep.subr.bf16.mxu0 0
    %4173 = vmatpush1.bf16.msra.mxu0 0
    %4174 = vmatprep.subr.bf16.mxu0 0
    %4175 = vmatpush1.bf16.msra.mxu0 0
    %4176 = vmatprep.subr.bf16.mxu0 0
    %4177 = vmatpush1.bf16.msra.mxu0 0
    %4178 = vmatprep.subr.bf16.mxu0 0
    %4179 = vmatpush1.bf16.msra.mxu0 0
    %4180 = vmatprep.subr.bf16.mxu0 0
    %4181 = vmatpush1.bf16.msra.mxu0 0
    %4182 = vmatprep.subr.bf16.mxu0 0
    %4183 = vmatpush1.bf16.msra.mxu0 0
    %4184 = vmatprep.subr.bf16.mxu0 0
    %4185 = vmatpush1.bf16.msra.mxu0 0
    %4186 = vmatprep.subr.bf16.mxu0 0
    %4187 = vmatpush1.bf16.msra.mxu0 0
    %4188 = vmatprep.mubr.bf16.mxu0 0
    %4189 = vmatmul.mubr.bf16.gmra.mrb[0].mxu0 %v4151
    %v4190 = vpop.f32.mrb[0].mxu0
    %v4191 = vadd.f32 0.0, %v4190
    %v4192 = vpop.f32.mrb[0].mxu0
    %v4193 = vpop.f32.mrb[0].mxu0
    %v4194 = vadd.f32 0.0, %v4193
    %v4195 = vpop.f32.mrb[0].mxu0
    %4196 = vmatprep.mubr.bf16.mxu0 0
    %4197 = vmatmul.mubr.bf16.gmra.mrb[0].mxu0 %v4154
    %v4198 = vpop.f32.mrb[0].mxu0
    %v4199 = vadd.f32 0.0, %v4198
    %v4200 = vpop.f32.mrb[0].mxu0
    %v4201 = vpop.f32.mrb[0].mxu0
    %v4202 = vpop.f32.mrb[0].mxu0
    %4203 = vdwg.mxu0
    %v4204 = vadd.f32 %v4103, %v4191
    %v4205 = vadd.f32 %v4104, %v4194
    %v4206 = vadd.f32 %v4105, %v4199
    %v4207 = vld [vmem:[%s4] sm:$0x1]
    %v4209 = vlaneseq
    %v4210 = vshrl.u32 %v4209, 7
    %v4211 = vsub.s32 0, %v4210
    %v4212 = vrot.slane %v4207, %v4211
    %v4214 = vadd.f32 %v4204, %v4212
    %v4215 = vadd.f32 %v4205, %v4212
    %v4216 = vadd.f32 %v4206, %v4212
    %v4217 = vmax.f32 %v4214, 0.0
    %v4218 = vmax.f32 %v4215, 0.0
    %v4219 = vmax.f32 %v4216, 0.0
    %v4220 = vpack.c.bf16 %v4218, %v4217
    %v4221 = vpack.c.bf16 %v4219, %v4219
    %v4222 = vld [vmem:[%s5] sm:$0xf]
    %v4223 = vld [vmem:[%s5 + $0x4] sm:$0xf]
    %v4224 = vld [vmem:[%s5 + $0x8] sm:$0xf]
    %v4225 = vld [vmem:[%s5 + $0xc] sm:$0xf]
    %v4226 = vld [vmem:[%s5 + $0x10] sm:$0xf]
    %v4227 = vld [vmem:[%s5 + $0x14] sm:$0xf]
    %v4228 = vld [vmem:[%s5 + $0x18] sm:$0xf]
    %v4229 = vld [vmem:[%s5 + $0x1c] sm:$0xf]
    %v4230 = vld [vmem:[%s5 + $0x20] sm:$0xf]
    %v4231 = vld [vmem:[%s5 + $0x24] sm:$0xf]
    %v4232 = vld [vmem:[%s5 + $0x28] sm:$0xf]
    %v4233 = vld [vmem:[%s5 + $0x2c] sm:$0xf]
    %v4234 = vld [vmem:[%s5 + $0x30] sm:$0xf]
    %v4235 = vld [vmem:[%s5 + $0x34] sm:$0xf]
    %v4236 = vld [vmem:[%s5 + $0x38] sm:$0xf]
    %v4237 = vld [vmem:[%s5 + $0x3c] sm:$0xf]
    %v4238 = vld [vmem:[%s5 + $0x40] sm:$0xf]
    %v4239 = vld [vmem:[%s5 + $0x44] sm:$0xf]
    %v4240 = vld [vmem:[%s5 + $0x48] sm:$0xf]
    %v4241 = vld [vmem:[%s5 + $0x4c] sm:$0xf]
    %v4242 = vld [vmem:[%s5 + $0x50] sm:$0xf]
    %v4243 = vld [vmem:[%s5 + $0x54] sm:$0xf]
    %v4244 = vld [vmem:[%s5 + $0x58] sm:$0xf]
    %v4245 = vld [vmem:[%s5 + $0x5c] sm:$0xf]
    %v4246 = vld [vmem:[%s5 + $0x60] sm:$0xf]
    %v4247 = vld [vmem:[%s5 + $0x64] sm:$0xf]
    %v4248 = vld [vmem:[%s5 + $0x68] sm:$0xf]
    %v4249 = vld [vmem:[%s5 + $0x6c] sm:$0xf]
    %v4250 = vld [vmem:[%s5 + $0x70] sm:$0xf]
    %v4251 = vld [vmem:[%s5 + $0x74] sm:$0xf]
    %v4252 = vld [vmem:[%s5 + $0x78] sm:$0xf]
    %v4253 = vld [vmem:[%s5 + $0x7c] sm:$0xf]
    %v4256 = vcombine.high %v4220, %v4220
    %v4258 = vunpack.c.l.s4 1966171168
    %v4259 = vunpack.c.0.s8 %v4258
    %v4260 = vlaneseq
    %v4261 = vshrl.u32 %v4260, 7
    %v4262 = vsub.s32 %v4259, %v4261
    %v4263 = vrot.slane %v4220, %v4262
    %v4265 = vunpack.c.l.s4 1966171168
    %v4266 = vunpack.c.0.s8 %v4265
    %v4267 = vlaneseq
    %v4268 = vshrl.u32 %v4267, 7
    %v4269 = vsub.s32 %v4266, %v4268
    %v4270 = vrot.slane %v4256, %v4269
    %v4271 = vcombine.high %v4263, %v4263
    %v4272 = vcombine.high %v4270, %v4270
    %v4274 = vunpack.c.l.s4 1966171168
    %v4275 = vunpack.c.0.s8 %v4274
    %v4276 = vlaneseq
    %v4277 = vshrl.u32 %v4276, 7
    %v4278 = vsub.s32 %v4275, %v4277
    %v4279 = vrot.slane %v4263, %v4278
    %v4281 = vunpack.c.l.s4 1966171168
    %v4282 = vunpack.c.0.s8 %v4281
    %v4283 = vlaneseq
    %v4284 = vshrl.u32 %v4283, 7
    %v4285 = vsub.s32 %v4282, %v4284
    %v4286 = vrot.slane %v4270, %v4285
    %v4288 = vunpack.c.l.s4 1966171168
    %v4289 = vunpack.c.0.s8 %v4288
    %v4290 = vlaneseq
    %v4291 = vshrl.u32 %v4290, 7
    %v4292 = vsub.s32 %v4289, %v4291
    %v4293 = vrot.slane %v4271, %v4292
    %v4295 = vunpack.c.l.s4 1966171168
    %v4296 = vunpack.c.0.s8 %v4295
    %v4297 = vlaneseq
    %v4298 = vshrl.u32 %v4297, 7
    %v4299 = vsub.s32 %v4296, %v4298
    %v4300 = vrot.slane %v4272, %v4299
    %v4301 = vcombine.high %v4279, %v4279
    %v4302 = vcombine.high %v4286, %v4286
    %v4303 = vcombine.high %v4293, %v4293
    %v4304 = vcombine.high %v4300, %v4300
    %v4306 = vunpack.c.l.s4 1966171168
    %v4307 = vunpack.c.0.s8 %v4306
    %v4308 = vlaneseq
    %v4309 = vshrl.u32 %v4308, 7
    %v4310 = vsub.s32 %v4307, %v4309
    %v4311 = vrot.slane %v4221, %v4310
    %v4313 = vunpack.c.l.s4 1966171168
    %v4314 = vunpack.c.0.s8 %v4313
    %v4315 = vlaneseq
    %v4316 = vshrl.u32 %v4315, 7
    %v4317 = vsub.s32 %v4314, %v4316
    %v4318 = vrot.slane %v4311, %v4317
    %v4319 = vunpack.i.l.s16 %v4279
    %v4320 = vunpack.i.h.s16 %v4279
    %v4321 = vunpack.i.l.s16 %v4293
    %v4322 = vunpack.i.h.s16 %v4293
    %v4323 = vunpack.i.l.s16 %v4301
    %v4324 = vunpack.i.h.s16 %v4301
    %v4325 = vunpack.i.l.s16 %v4303
    %v4326 = vunpack.i.h.s16 %v4303
    %v4327 = vunpack.i.l.s16 %v4286
    %v4328 = vunpack.i.h.s16 %v4286
    %v4329 = vunpack.i.l.s16 %v4300
    %v4330 = vunpack.i.h.s16 %v4300
    %v4331 = vunpack.i.l.s16 %v4302
    %v4332 = vunpack.i.h.s16 %v4302
    %v4333 = vunpack.i.l.s16 %v4304
    %v4334 = vunpack.i.h.s16 %v4304
    %v4335 = vunpack.i.l.s16 %v4318
    %v4336 = vunpack.i.h.s16 %v4318
    %v4337 = vpack.i.b16 %v4321, %v4320
    %v4338 = vpack.i.b16 %v4324, %v4323
    %v4339 = vpack.i.b16 %v4330, %v4329
    %v4340 = vpack.i.b16 %v4333, %v4332
    %v4341 = vcombine.low %v4337, %v4338
    %v4342 = vcombine.low %v4339, %v4340
    %v4344 = vunpack.c.l.s4 1966171168
    %v4345 = vunpack.c.0.s8 %v4344
    %v4346 = vlaneseq
    %v4347 = vshrl.u32 %v4346, 7
    %v4348 = vsub.s32 %v4345, %v4347
    %v4349 = vrot.slane %v4341, %v4348
    %v4351 = vunpack.c.l.s4 1966171168
    %v4352 = vunpack.c.0.s8 %v4351
    %v4353 = vlaneseq
    %v4354 = vshrl.u32 %v4353, 7
    %v4355 = vsub.s32 %v4352, %v4354
    %v4356 = vrot.slane %v4342, %v4355
    %v4357 = vcombine.low %v4349, %v4356
    %v4359 = vunpack.c.l.s4 1966171168
    %v4360 = vunpack.c.0.s8 %v4359
    %v4361 = vlaneseq
    %v4362 = vshrl.u32 %v4361, 7
    %v4363 = vsub.s32 %v4360, %v4362
    %v4364 = vrot.slane %v4357, %v4363
    %v4373 = vunpack.c.l.b16 %v4230
    %v4374 = vunpack.c.l.b16 %v4231
    %v4375 = vunpack.c.l.b16 %v4232
    %v4376 = vunpack.c.l.b16 %v4233
    %v4377 = vunpack.c.l.b16 %v4234
    %v4378 = vunpack.c.l.b16 %v4235
    %v4379 = vunpack.c.l.b16 %v4236
    %v4380 = vunpack.c.l.b16 %v4237
    %v4381 = vpack.c.b16 %v4374, %v4373
    %v4382 = vpack.c.b16 %v4376, %v4375
    %v4383 = vpack.c.b16 %v4378, %v4377
    %v4384 = vpack.c.b16 %v4380, %v4379
    %v4390 = vsel %vm481, %v4364, 0
    %4392 = vmatprep.subr.bf16.mxu0 0
    %4393 = vmatpush1.bf16.msra.mxu0 %v4381
    %4394 = vmatprep.subr.bf16.mxu0 0
    %4395 = vmatpush1.bf16.msra.mxu0 %v4382
    %4396 = vmatprep.subr.bf16.mxu0 0
    %4397 = vmatpush1.bf16.msra.mxu0 %v4383
    %4398 = vmatprep.subr.bf16.mxu0 0
    %4399 = vmatpush1.bf16.msra.mxu0 %v4384
    %4400 = vmatprep.subr.bf16.mxu0 0
    %4401 = vmatpush1.bf16.msra.mxu0 0
    %4402 = vmatprep.subr.bf16.mxu0 0
    %4403 = vmatpush1.bf16.msra.mxu0 0
    %4404 = vmatprep.subr.bf16.mxu0 0
    %4405 = vmatpush1.bf16.msra.mxu0 0
    %4406 = vmatprep.subr.bf16.mxu0 0
    %4407 = vmatpush1.bf16.msra.mxu0 0
    %4408 = vmatprep.subr.bf16.mxu0 0
    %4409 = vmatpush1.bf16.msra.mxu0 0
    %4410 = vmatprep.subr.bf16.mxu0 0
    %4411 = vmatpush1.bf16.msra.mxu0 0
    %4412 = vmatprep.subr.bf16.mxu0 0
    %4413 = vmatpush1.bf16.msra.mxu0 0
    %4414 = vmatprep.subr.bf16.mxu0 0
    %4415 = vmatpush1.bf16.msra.mxu0 0
    %4416 = vmatprep.subr.bf16.mxu0 0
    %4417 = vmatpush1.bf16.msra.mxu0 0
    %4418 = vmatprep.subr.bf16.mxu0 0
    %4419 = vmatpush1.bf16.msra.mxu0 0
    %4420 = vmatprep.subr.bf16.mxu0 0
    %4421 = vmatpush1.bf16.msra.mxu0 0
    %4422 = vmatprep.subr.bf16.mxu0 0
    %4423 = vmatpush1.bf16.msra.mxu0 0
    %4424 = vmatprep.mubr.bf16.mxu0 0
    %4425 = vmatmul.mubr.bf16.gmra.mrb[0].mxu0 %v4390
    %v4426 = vpop.f32.mrb[0].mxu0
    %v4427 = vadd.f32 0.0, %v4426
    %v4428 = vpop.f32.mrb[0].mxu0
    %v4429 = vpop.f32.mrb[0].mxu0
    %v4430 = vpop.f32.mrb[0].mxu0
    %4431 = vdwg.mxu0
    %v4432 = vpack.i.b16 %v4320, %v4319
    %v4433 = vpack.i.b16 %v4323, %v4322
    %v4434 = vpack.i.b16 %v4329, %v4328
    %v4435 = vpack.i.b16 %v4332, %v4331
    %v4436 = vcombine.low %v4432, %v4433
    %v4437 = vcombine.low %v4434, %v4435
    %v4439 = vunpack.c.l.s4 1966171168
    %v4440 = vunpack.c.0.s8 %v4439
    %v4441 = vlaneseq
    %v4442 = vshrl.u32 %v4441, 7
    %v4443 = vsub.s32 %v4440, %v4442
    %v4444 = vrot.slane %v4436, %v4443
    %v4446 = vunpack.c.l.s4 1966171168
    %v4447 = vunpack.c.0.s8 %v4446
    %v4448 = vlaneseq
    %v4449 = vshrl.u32 %v4448, 7
    %v4450 = vsub.s32 %v4447, %v4449
    %v4451 = vrot.slane %v4437, %v4450
    %v4452 = vcombine.low %v4444, %v4451
    %v4454 = vunpack.c.l.s4 1966171168
    %v4455 = vunpack.c.0.s8 %v4454
    %v4456 = vlaneseq
    %v4457 = vshrl.u32 %v4456, 7
    %v4458 = vsub.s32 %v4455, %v4457
    %v4459 = vrot.slane %v4452, %v4458
    %v4468 = vunpack.c.l.b16 %v4222
    %v4469 = vunpack.c.l.b16 %v4223
    %v4470 = vunpack.c.l.b16 %v4224
    %v4471 = vunpack.c.l.b16 %v4225
    %v4472 = vunpack.c.l.b16 %v4226
    %v4473 = vunpack.c.l.b16 %v4227
    %v4474 = vunpack.c.l.b16 %v4228
    %v4475 = vunpack.c.l.b16 %v4229
    %v4476 = vpack.c.b16 %v4469, %v4468
    %v4477 = vpack.c.b16 %v4471, %v4470
    %v4478 = vpack.c.b16 %v4473, %v4472
    %v4479 = vpack.c.b16 %v4475, %v4474
    %v4485 = vsel %vm481, %v4459, 0
    %4487 = vmatprep.subr.bf16.mxu0 0
    %4488 = vmatpush1.bf16.msra.mxu0 %v4476
    %4489 = vmatprep.subr.bf16.mxu0 0
    %4490 = vmatpush1.bf16.msra.mxu0 %v4477
    %4491 = vmatprep.subr.bf16.mxu0 0
    %4492 = vmatpush1.bf16.msra.mxu0 %v4478
    %4493 = vmatprep.subr.bf16.mxu0 0
    %4494 = vmatpush1.bf16.msra.mxu0 %v4479
    %4495 = vmatprep.subr.bf16.mxu0 0
    %4496 = vmatpush1.bf16.msra.mxu0 0
    %4497 = vmatprep.subr.bf16.mxu0 0
    %4498 = vmatpush1.bf16.msra.mxu0 0
    %4499 = vmatprep.subr.bf16.mxu0 0
    %4500 = vmatpush1.bf16.msra.mxu0 0
    %4501 = vmatprep.subr.bf16.mxu0 0
    %4502 = vmatpush1.bf16.msra.mxu0 0
    %4503 = vmatprep.subr.bf16.mxu0 0
    %4504 = vmatpush1.bf16.msra.mxu0 0
    %4505 = vmatprep.subr.bf16.mxu0 0
    %4506 = vmatpush1.bf16.msra.mxu0 0
    %4507 = vmatprep.subr.bf16.mxu0 0
    %4508 = vmatpush1.bf16.msra.mxu0 0
    %4509 = vmatprep.subr.bf16.mxu0 0
    %4510 = vmatpush1.bf16.msra.mxu0 0
    %4511 = vmatprep.subr.bf16.mxu0 0
    %4512 = vmatpush1.bf16.msra.mxu0 0
    %4513 = vmatprep.subr.bf16.mxu0 0
    %4514 = vmatpush1.bf16.msra.mxu0 0
    %4515 = vmatprep.subr.bf16.mxu0 0
    %4516 = vmatpush1.bf16.msra.mxu0 0
    %4517 = vmatprep.subr.bf16.mxu0 0
    %4518 = vmatpush1.bf16.msra.mxu0 0
    %4519 = vmatprep.mubr.bf16.mxu0 0
    %4520 = vmatmul.mubr.bf16.gmra.mrb[0].mxu0 %v4485
    %v4521 = vpop.f32.mrb[0].mxu0
    %v4522 = vadd.f32 %v4427, %v4521
    %v4523 = vpop.f32.mrb[0].mxu0
    %v4524 = vpop.f32.mrb[0].mxu0
    %v4525 = vpop.f32.mrb[0].mxu0
    %4526 = vdwg.mxu0
    %v4527 = vpack.i.b16 %v4326, %v4325
    %v4528 = vpack.i.b16 %v4335, %v4334
    %v4529 = vcombine.low %v4433, %v4527
    %v4530 = vcombine.low %v4435, %v4528
    %v4532 = vunpack.c.l.s4 1966171168
    %v4533 = vunpack.c.0.s8 %v4532
    %v4534 = vlaneseq
    %v4535 = vshrl.u32 %v4534, 7
    %v4536 = vsub.s32 %v4533, %v4535
    %v4537 = vrot.slane %v4529, %v4536
    %v4539 = vunpack.c.l.s4 1966171168
    %v4540 = vunpack.c.0.s8 %v4539
    %v4541 = vlaneseq
    %v4542 = vshrl.u32 %v4541, 7
    %v4543 = vsub.s32 %v4540, %v4542
    %v4544 = vrot.slane %v4530, %v4543
    %v4545 = vcombine.low %v4537, %v4544
    %v4547 = vunpack.c.l.s4 1966171168
    %v4548 = vunpack.c.0.s8 %v4547
    %v4549 = vlaneseq
    %v4550 = vshrl.u32 %v4549, 7
    %v4551 = vsub.s32 %v4548, %v4550
    %v4552 = vrot.slane %v4545, %v4551
    %v4561 = vunpack.c.l.b16 %v4238
    %v4562 = vunpack.c.l.b16 %v4239
    %v4563 = vunpack.c.l.b16 %v4240
    %v4564 = vunpack.c.l.b16 %v4241
    %v4565 = vunpack.c.l.b16 %v4242
    %v4566 = vunpack.c.l.b16 %v4243
    %v4567 = vunpack.c.l.b16 %v4244
    %v4568 = vunpack.c.l.b16 %v4245
    %v4569 = vpack.c.b16 %v4562, %v4561
    %v4570 = vpack.c.b16 %v4564, %v4563
    %v4571 = vpack.c.b16 %v4566, %v4565
    %v4572 = vpack.c.b16 %v4568, %v4567
    %v4578 = vsel %vm481, %v4552, 0
    %4580 = vmatprep.subr.bf16.mxu0 0
    %4581 = vmatpush1.bf16.msra.mxu0 %v4569
    %4582 = vmatprep.subr.bf16.mxu0 0
    %4583 = vmatpush1.bf16.msra.mxu0 %v4570
    %4584 = vmatprep.subr.bf16.mxu0 0
    %4585 = vmatpush1.bf16.msra.mxu0 %v4571
    %4586 = vmatprep.subr.bf16.mxu0 0
    %4587 = vmatpush1.bf16.msra.mxu0 %v4572
    %4588 = vmatprep.subr.bf16.mxu0 0
    %4589 = vmatpush1.bf16.msra.mxu0 0
    %4590 = vmatprep.subr.bf16.mxu0 0
    %4591 = vmatpush1.bf16.msra.mxu0 0
    %4592 = vmatprep.subr.bf16.mxu0 0
    %4593 = vmatpush1.bf16.msra.mxu0 0
    %4594 = vmatprep.subr.bf16.mxu0 0
    %4595 = vmatpush1.bf16.msra.mxu0 0
    %4596 = vmatprep.subr.bf16.mxu0 0
    %4597 = vmatpush1.bf16.msra.mxu0 0
    %4598 = vmatprep.subr.bf16.mxu0 0
    %4599 = vmatpush1.bf16.msra.mxu0 0
    %4600 = vmatprep.subr.bf16.mxu0 0
    %4601 = vmatpush1.bf16.msra.mxu0 0
    %4602 = vmatprep.subr.bf16.mxu0 0
    %4603 = vmatpush1.bf16.msra.mxu0 0
    %4604 = vmatprep.subr.bf16.mxu0 0
    %4605 = vmatpush1.bf16.msra.mxu0 0
    %4606 = vmatprep.subr.bf16.mxu0 0
    %4607 = vmatpush1.bf16.msra.mxu0 0
    %4608 = vmatprep.subr.bf16.mxu0 0
    %4609 = vmatpush1.bf16.msra.mxu0 0
    %4610 = vmatprep.subr.bf16.mxu0 0
    %4611 = vmatpush1.bf16.msra.mxu0 0
    %4612 = vmatprep.mubr.bf16.mxu0 0
    %4613 = vmatmul.mubr.bf16.gmra.mrb[0].mxu0 %v4578
    %v4614 = vpop.f32.mrb[0].mxu0
    %v4615 = vadd.f32 0.0, %v4614
    %v4616 = vpop.f32.mrb[0].mxu0
    %v4617 = vpop.f32.mrb[0].mxu0
    %v4618 = vpop.f32.mrb[0].mxu0
    %4619 = vdwg.mxu0
    %v4620 = vadd.f32 %v4522, %v4615
    %v4621 = vpack.i.b16 %v4327, %v4326
    %v4622 = vpack.i.b16 %v4336, %v4335
    %v4623 = vcombine.low %v4338, %v4621
    %v4624 = vcombine.low %v4340, %v4622
    %v4626 = vunpack.c.l.s4 1966171168
    %v4627 = vunpack.c.0.s8 %v4626
    %v4628 = vlaneseq
    %v4629 = vshrl.u32 %v4628, 7
    %v4630 = vsub.s32 %v4627, %v4629
    %v4631 = vrot.slane %v4623, %v4630
    %v4633 = vunpack.c.l.s4 1966171168
    %v4634 = vunpack.c.0.s8 %v4633
    %v4635 = vlaneseq
    %v4636 = vshrl.u32 %v4635, 7
    %v4637 = vsub.s32 %v4634, %v4636
    %v4638 = vrot.slane %v4624, %v4637
    %v4639 = vcombine.low %v4631, %v4638
    %v4641 = vunpack.c.l.s4 1966171168
    %v4642 = vunpack.c.0.s8 %v4641
    %v4643 = vlaneseq
    %v4644 = vshrl.u32 %v4643, 7
    %v4645 = vsub.s32 %v4642, %v4644
    %v4646 = vrot.slane %v4639, %v4645
    %v4655 = vunpack.c.l.b16 %v4246
    %v4656 = vunpack.c.l.b16 %v4247
    %v4657 = vunpack.c.l.b16 %v4248
    %v4658 = vunpack.c.l.b16 %v4249
    %v4659 = vunpack.c.l.b16 %v4250
    %v4660 = vunpack.c.l.b16 %v4251
    %v4661 = vunpack.c.l.b16 %v4252
    %v4662 = vunpack.c.l.b16 %v4253
    %v4663 = vpack.c.b16 %v4656, %v4655
    %v4664 = vpack.c.b16 %v4658, %v4657
    %v4665 = vpack.c.b16 %v4660, %v4659
    %v4666 = vpack.c.b16 %v4662, %v4661
    %v4672 = vsel %vm481, %v4646, 0
    %4674 = vmatprep.subr.bf16.mxu0 0
    %4675 = vmatpush1.bf16.msra.mxu0 %v4663
    %4676 = vmatprep.subr.bf16.mxu0 0
    %4677 = vmatpush1.bf16.msra.mxu0 %v4664
    %4678 = vmatprep.subr.bf16.mxu0 0
    %4679 = vmatpush1.bf16.msra.mxu0 %v4665
    %4680 = vmatprep.subr.bf16.mxu0 0
    %4681 = vmatpush1.bf16.msra.mxu0 %v4666
    %4682 = vmatprep.subr.bf16.mxu0 0
    %4683 = vmatpush1.bf16.msra.mxu0 0
    %4684 = vmatprep.subr.bf16.mxu0 0
    %4685 = vmatpush1.bf16.msra.mxu0 0
    %4686 = vmatprep.subr.bf16.mxu0 0
    %4687 = vmatpush1.bf16.msra.mxu0 0
    %4688 = vmatprep.subr.bf16.mxu0 0
    %4689 = vmatpush1.bf16.msra.mxu0 0
    %4690 = vmatprep.subr.bf16.mxu0 0
    %4691 = vmatpush1.bf16.msra.mxu0 0
    %4692 = vmatprep.subr.bf16.mxu0 0
    %4693 = vmatpush1.bf16.msra.mxu0 0
    %4694 = vmatprep.subr.bf16.mxu0 0
    %4695 = vmatpush1.bf16.msra.mxu0 0
    %4696 = vmatprep.subr.bf16.mxu0 0
    %4697 = vmatpush1.bf16.msra.mxu0 0
    %4698 = vmatprep.subr.bf16.mxu0 0
    %4699 = vmatpush1.bf16.msra.mxu0 0
    %4700 = vmatprep.subr.bf16.mxu0 0
    %4701 = vmatpush1.bf16.msra.mxu0 0
    %4702 = vmatprep.subr.bf16.mxu0 0
    %4703 = vmatpush1.bf16.msra.mxu0 0
    %4704 = vmatprep.subr.bf16.mxu0 0
    %4705 = vmatpush1.bf16.msra.mxu0 0
    %4706 = vmatprep.mubr.bf16.mxu0 0
    %4707 = vmatmul.mubr.bf16.gmra.mrb[0].mxu0 %v4672
    %v4708 = vpop.f32.mrb[0].mxu0
    %v4709 = vadd.f32 0.0, %v4708
    %v4710 = vpop.f32.mrb[0].mxu0
    %v4711 = vpop.f32.mrb[0].mxu0
    %v4712 = vpop.f32.mrb[0].mxu0
    %4713 = vdwg.mxu0
    %v4714 = vadd.f32 %v4620, %v4709
    %v4715 = vld [vmem:[%s6] sm:$0x1]
    %v4717 = vlaneseq
    %v4718 = vshrl.u32 %v4717, 7
    %v4719 = vsub.s32 0, %v4718
    %v4720 = vrot.slane %v4715, %v4719
    %v4722 = vadd.f32 %v4714, %v4720
    %v4723 = vmax.f32 %v4722, 0.0
    %v4724 = vpack.c.bf16 %v4723, %v4723
    %v4725 = vld [vmem:[%s7] sm:$0xff]
    %v4726 = vld [vmem:[%s7 + $0x8] sm:$0xff]
    %v4727 = vld [vmem:[%s7 + $0x10] sm:$0xff]
    %v4728 = vld [vmem:[%s7 + $0x18] sm:$0xff]
    %v4729 = vld [vmem:[%s7 + $0x20] sm:$0xff]
    %v4730 = vld [vmem:[%s7 + $0x28] sm:$0xff]
    %v4731 = vld [vmem:[%s7 + $0x30] sm:$0xff]
    %v4732 = vld [vmem:[%s7 + $0x38] sm:$0xff]
    %v4733 = vld [vmem:[%s7 + $0x40] sm:$0xff]
    %v4734 = vld [vmem:[%s7 + $0x48] sm:$0xff]
    %v4735 = vld [vmem:[%s7 + $0x50] sm:$0xff]
    %v4736 = vld [vmem:[%s7 + $0x58] sm:$0xff]
    %v4737 = vld [vmem:[%s7 + $0x60] sm:$0xff]
    %v4738 = vld [vmem:[%s7 + $0x68] sm:$0xff]
    %v4739 = vld [vmem:[%s7 + $0x70] sm:$0xff]
    %v4740 = vld [vmem:[%s7 + $0x78] sm:$0xff]
    %v4741 = vld [vmem:[%s7 + $0x80] sm:$0xff]
    %v4742 = vld [vmem:[%s7 + $0x88] sm:$0xff]
    %v4743 = vld [vmem:[%s7 + $0x90] sm:$0xff]
    %v4744 = vld [vmem:[%s7 + $0x98] sm:$0xff]
    %v4745 = vld [vmem:[%s7 + $0xa0] sm:$0xff]
    %v4746 = vld [vmem:[%s7 + $0xa8] sm:$0xff]
    %v4747 = vld [vmem:[%s7 + $0xb0] sm:$0xff]
    %v4748 = vld [vmem:[%s7 + $0xb8] sm:$0xff]
    %v4749 = vld [vmem:[%s7 + $0xc0] sm:$0xff]
    %v4750 = vld [vmem:[%s7 + $0xc8] sm:$0xff]
    %v4751 = vld [vmem:[%s7 + $0xd0] sm:$0xff]
    %v4752 = vld [vmem:[%s7 + $0xd8] sm:$0xff]
    %v4753 = vld [vmem:[%s7 + $0xe0] sm:$0xff]
    %v4754 = vld [vmem:[%s7 + $0xe8] sm:$0xff]
    %v4755 = vld [vmem:[%s7 + $0xf0] sm:$0xff]
    %v4756 = vld [vmem:[%s7 + $0xf8] sm:$0xff]
    %v4757 = vld [vmem:[%s7 + $0x100] sm:$0xff]
    %v4758 = vld [vmem:[%s7 + $0x108] sm:$0xff]
    %v4759 = vld [vmem:[%s7 + $0x110] sm:$0xff]
    %v4760 = vld [vmem:[%s7 + $0x118] sm:$0xff]
    %v4761 = vld [vmem:[%s7 + $0x120] sm:$0xff]
    %v4762 = vld [vmem:[%s7 + $0x128] sm:$0xff]
    %v4763 = vld [vmem:[%s7 + $0x130] sm:$0xff]
    %v4764 = vld [vmem:[%s7 + $0x138] sm:$0xff]
    %v4765 = vld [vmem:[%s7 + $0x140] sm:$0xff]
    %v4766 = vld [vmem:[%s7 + $0x148] sm:$0xff]
    %v4767 = vld [vmem:[%s7 + $0x150] sm:$0xff]
    %v4768 = vld [vmem:[%s7 + $0x158] sm:$0xff]
    %v4769 = vld [vmem:[%s7 + $0x160] sm:$0xff]
    %v4770 = vld [vmem:[%s7 + $0x168] sm:$0xff]
    %v4771 = vld [vmem:[%s7 + $0x170] sm:$0xff]
    %v4772 = vld [vmem:[%s7 + $0x178] sm:$0xff]
    %v4773 = vld [vmem:[%s7 + $0x180] sm:$0xff]
    %v4774 = vld [vmem:[%s7 + $0x188] sm:$0xff]
    %v4775 = vld [vmem:[%s7 + $0x190] sm:$0xff]
    %v4776 = vld [vmem:[%s7 + $0x198] sm:$0xff]
    %v4777 = vld [vmem:[%s7 + $0x1a0] sm:$0xff]
    %v4778 = vld [vmem:[%s7 + $0x1a8] sm:$0xff]
    %v4779 = vld [vmem:[%s7 + $0x1b0] sm:$0xff]
    %v4780 = vld [vmem:[%s7 + $0x1b8] sm:$0xff]
    %v4781 = vld [vmem:[%s7 + $0x1c0] sm:$0xff]
    %v4782 = vld [vmem:[%s7 + $0x1c8] sm:$0xff]
    %v4783 = vld [vmem:[%s7 + $0x1d0] sm:$0xff]
    %v4784 = vld [vmem:[%s7 + $0x1d8] sm:$0xff]
    %v4785 = vld [vmem:[%s7 + $0x1e0] sm:$0xff]
    %v4786 = vld [vmem:[%s7 + $0x1e8] sm:$0xff]
    %v4787 = vld [vmem:[%s7 + $0x1f0] sm:$0xff]
    %v4788 = vld [vmem:[%s7 + $0x1f8] sm:$0xff]
    %v4791 = vunpack.c.l.s4 1983009808
    %v4792 = vunpack.c.0.s8 %v4791
    %v4793 = vlaneseq
    %v4794 = vshrl.u32 %v4793, 7
    %v4795 = vsub.s32 %v4792, %v4794
    %v4796 = vrot.slane %v4724, %v4795
    %v4797 = vcombine.high %v4796, %v4796
    %v4799 = vunpack.c.l.s4 1983009808
    %v4800 = vunpack.c.0.s8 %v4799
    %v4801 = vlaneseq
    %v4802 = vshrl.u32 %v4801, 7
    %v4803 = vsub.s32 %v4800, %v4802
    %v4804 = vrot.slane %v4796, %v4803
    %v4806 = vunpack.c.l.s4 1983009808
    %v4807 = vunpack.c.0.s8 %v4806
    %v4808 = vlaneseq
    %v4809 = vshrl.u32 %v4808, 7
    %v4810 = vsub.s32 %v4807, %v4809
    %v4811 = vrot.slane %v4797, %v4810
    %v4812 = vunpack.c.l.b16 %v4804
    %v4813 = vunpack.c.l.b16 %v4811
    %v4814 = vrot.slane %v4812, 1
    %v4815 = vsel %vm1940, %v4813, %v4814
    %v4816 = vpack.c.b16 %v4815, %v4815
    %v4833 = vunpack.c.l.b16 %v4741
    %v4834 = vunpack.c.h.b16 %v4741
    %v4835 = vunpack.c.l.b16 %v4742
    %v4836 = vunpack.c.h.b16 %v4742
    %v4837 = vunpack.c.l.b16 %v4743
    %v4838 = vunpack.c.h.b16 %v4743
    %v4839 = vunpack.c.l.b16 %v4744
    %v4840 = vunpack.c.h.b16 %v4744
    %v4841 = vunpack.c.l.b16 %v4745
    %v4842 = vunpack.c.h.b16 %v4745
    %v4843 = vunpack.c.l.b16 %v4746
    %v4844 = vunpack.c.h.b16 %v4746
    %v4845 = vunpack.c.l.b16 %v4747
    %v4846 = vunpack.c.h.b16 %v4747
    %v4847 = vunpack.c.l.b16 %v4748
    %v4848 = vunpack.c.h.b16 %v4748
    %v4849 = vunpack.c.l.b16 %v4749
    %v4850 = vunpack.c.h.b16 %v4749
    %v4851 = vunpack.c.l.b16 %v4750
    %v4852 = vunpack.c.h.b16 %v4750
    %v4853 = vunpack.c.l.b16 %v4751
    %v4854 = vunpack.c.h.b16 %v4751
    %v4855 = vunpack.c.l.b16 %v4752
    %v4856 = vunpack.c.h.b16 %v4752
    %v4857 = vunpack.c.l.b16 %v4753
    %v4858 = vunpack.c.h.b16 %v4753
    %v4859 = vunpack.c.l.b16 %v4754
    %v4860 = vunpack.c.h.b16 %v4754
    %v4861 = vunpack.c.l.b16 %v4755
    %v4862 = vunpack.c.h.b16 %v4755
    %v4863 = vunpack.c.l.b16 %v4756
    %v4864 = vunpack.c.h.b16 %v4756
    %v4865 = vpack.c.b16 %v4837, %v4833
    %v4866 = vpack.c.b16 %v4838, %v4834
    %v4867 = vpack.c.b16 %v4839, %v4835
    %v4868 = vpack.c.b16 %v4840, %v4836
    %v4869 = vpack.c.b16 %v4845, %v4841
    %v4870 = vpack.c.b16 %v4846, %v4842
    %v4871 = vpack.c.b16 %v4847, %v4843
    %v4872 = vpack.c.b16 %v4848, %v4844
    %v4873 = vpack.c.b16 %v4853, %v4849
    %v4874 = vpack.c.b16 %v4854, %v4850
    %v4875 = vpack.c.b16 %v4855, %v4851
    %v4876 = vpack.c.b16 %v4856, %v4852
    %v4877 = vpack.c.b16 %v4861, %v4857
    %v4878 = vpack.c.b16 %v4862, %v4858
    %v4879 = vpack.c.b16 %v4863, %v4859
    %v4880 = vpack.c.b16 %v4864, %v4860
    %v4898 = vsel %vm481, %v4816, 0
    %4900 = vmatprep.subr.bf16.mxu0 %v4866
    %4901 = vmatpush1.bf16.msra.mxu0 %v4865
    %4902 = vmatprep.subr.bf16.mxu0 %v4870
    %4903 = vmatpush1.bf16.msra.mxu0 %v4869
    %4904 = vmatprep.subr.bf16.mxu0 %v4874
    %4905 = vmatpush1.bf16.msra.mxu0 %v4873
    %4906 = vmatprep.subr.bf16.mxu0 %v4878
    %4907 = vmatpush1.bf16.msra.mxu0 %v4877
    %4908 = vmatprep.subr.bf16.mxu0 0
    %4909 = vmatpush1.bf16.msra.mxu0 0
    %4910 = vmatprep.subr.bf16.mxu0 0
    %4911 = vmatpush1.bf16.msra.mxu0 0
    %4912 = vmatprep.subr.bf16.mxu0 0
    %4913 = vmatpush1.bf16.msra.mxu0 0
    %4914 = vmatprep.subr.bf16.mxu0 0
    %4915 = vmatpush1.bf16.msra.mxu0 0
    %4916 = vmatprep.subr.bf16.mxu0 0
    %4917 = vmatpush1.bf16.msra.mxu0 0
    %4918 = vmatprep.subr.bf16.mxu0 0
    %4919 = vmatpush1.bf16.msra.mxu0 0
    %4920 = vmatprep.subr.bf16.mxu0 0
    %4921 = vmatpush1.bf16.msra.mxu0 0
    %4922 = vmatprep.subr.bf16.mxu0 0
    %4923 = vmatpush1.bf16.msra.mxu0 0
    %4924 = vmatprep.subr.bf16.mxu0 0
    %4925 = vmatpush1.bf16.msra.mxu0 0
    %4926 = vmatprep.subr.bf16.mxu0 0
    %4927 = vmatpush1.bf16.msra.mxu0 0
    %4928 = vmatprep.subr.bf16.mxu0 0
    %4929 = vmatpush1.bf16.msra.mxu0 0
    %4930 = vmatprep.subr.bf16.mxu0 0
    %4931 = vmatpush1.bf16.msra.mxu0 0
    %4932 = vmatprep.mubr.bf16.mxu0 0
    %4933 = vmatmul.mubr.bf16.gmra.mrb[0].mxu0 %v4898
    %v4934 = vpop.f32.mrb[0].mxu0
    %v4935 = vadd.f32 0.0, %v4934
    %v4936 = vpop.f32.mrb[0].mxu0
    %v4937 = vadd.f32 0.0, %v4936
    %v4938 = vpop.f32.mrb[0].mxu0
    %v4939 = vpop.f32.mrb[0].mxu0
    %4940 = vdwg.mxu0
    %4941 = vmatprep.subr.bf16.mxu0 %v4868
    %4942 = vmatpush1.bf16.msra.mxu0 %v4867
    %4943 = vmatprep.subr.bf16.mxu0 %v4872
    %4944 = vmatpush1.bf16.msra.mxu0 %v4871
    %4945 = vmatprep.subr.bf16.mxu0 %v4876
    %4946 = vmatpush1.bf16.msra.mxu0 %v4875
    %4947 = vmatprep.subr.bf16.mxu0 %v4880
    %4948 = vmatpush1.bf16.msra.mxu0 %v4879
    %4949 = vmatprep.subr.bf16.mxu0 0
    %4950 = vmatpush1.bf16.msra.mxu0 0
    %4951 = vmatprep.subr.bf16.mxu0 0
    %4952 = vmatpush1.bf16.msra.mxu0 0
    %4953 = vmatprep.subr.bf16.mxu0 0
    %4954 = vmatpush1.bf16.msra.mxu0 0
    %4955 = vmatprep.subr.bf16.mxu0 0
    %4956 = vmatpush1.bf16.msra.mxu0 0
    %4957 = vmatprep.subr.bf16.mxu0 0
    %4958 = vmatpush1.bf16.msra.mxu0 0
    %4959 = vmatprep.subr.bf16.mxu0 0
    %4960 = vmatpush1.bf16.msra.mxu0 0
    %4961 = vmatprep.subr.bf16.mxu0 0
    %4962 = vmatpush1.bf16.msra.mxu0 0
    %4963 = vmatprep.subr.bf16.mxu0 0
    %4964 = vmatpush1.bf16.msra.mxu0 0
    %4965 = vmatprep.subr.bf16.mxu0 0
    %4966 = vmatpush1.bf16.msra.mxu0 0
    %4967 = vmatprep.subr.bf16.mxu0 0
    %4968 = vmatpush1.bf16.msra.mxu0 0
    %4969 = vmatprep.subr.bf16.mxu0 0
    %4970 = vmatpush1.bf16.msra.mxu0 0
    %4971 = vmatprep.subr.bf16.mxu0 0
    %4972 = vmatpush1.bf16.msra.mxu0 0
    %4973 = vmatprep.mubr.bf16.mxu0 0
    %4974 = vmatmul.mubr.bf16.gmra.mrb[0].mxu0 %v4898
    %v4975 = vpop.f32.mrb[0].mxu0
    %v4976 = vadd.f32 0.0, %v4975
    %v4977 = vpop.f32.mrb[0].mxu0
    %v4978 = vadd.f32 0.0, %v4977
    %v4979 = vpop.f32.mrb[0].mxu0
    %v4980 = vpop.f32.mrb[0].mxu0
    %4981 = vdwg.mxu0
    %v4982 = vrot.slane %v4813, 7
    %v4983 = vsel %vm1940, %v4982, %v4812
    %v4984 = vpack.c.b16 %v4983, %v4983
    %v5001 = vunpack.c.l.b16 %v4725
    %v5002 = vunpack.c.h.b16 %v4725
    %v5003 = vunpack.c.l.b16 %v4726
    %v5004 = vunpack.c.h.b16 %v4726
    %v5005 = vunpack.c.l.b16 %v4727
    %v5006 = vunpack.c.h.b16 %v4727
    %v5007 = vunpack.c.l.b16 %v4728
    %v5008 = vunpack.c.h.b16 %v4728
    %v5009 = vunpack.c.l.b16 %v4729
    %v5010 = vunpack.c.h.b16 %v4729
    %v5011 = vunpack.c.l.b16 %v4730
    %v5012 = vunpack.c.h.b16 %v4730
    %v5013 = vunpack.c.l.b16 %v4731
    %v5014 = vunpack.c.h.b16 %v4731
    %v5015 = vunpack.c.l.b16 %v4732
    %v5016 = vunpack.c.h.b16 %v4732
    %v5017 = vunpack.c.l.b16 %v4733
    %v5018 = vunpack.c.h.b16 %v4733
    %v5019 = vunpack.c.l.b16 %v4734
    %v5020 = vunpack.c.h.b16 %v4734
    %v5021 = vunpack.c.l.b16 %v4735
    %v5022 = vunpack.c.h.b16 %v4735
    %v5023 = vunpack.c.l.b16 %v4736
    %v5024 = vunpack.c.h.b16 %v4736
    %v5025 = vunpack.c.l.b16 %v4737
    %v5026 = vunpack.c.h.b16 %v4737
    %v5027 = vunpack.c.l.b16 %v4738
    %v5028 = vunpack.c.h.b16 %v4738
    %v5029 = vunpack.c.l.b16 %v4739
    %v5030 = vunpack.c.h.b16 %v4739
    %v5031 = vunpack.c.l.b16 %v4740
    %v5032 = vunpack.c.h.b16 %v4740
    %v5033 = vpack.c.b16 %v5005, %v5001
    %v5034 = vpack.c.b16 %v5006, %v5002
    %v5035 = vpack.c.b16 %v5007, %v5003
    %v5036 = vpack.c.b16 %v5008, %v5004
    %v5037 = vpack.c.b16 %v5013, %v5009
    %v5038 = vpack.c.b16 %v5014, %v5010
    %v5039 = vpack.c.b16 %v5015, %v5011
    %v5040 = vpack.c.b16 %v5016, %v5012
    %v5041 = vpack.c.b16 %v5021, %v5017
    %v5042 = vpack.c.b16 %v5022, %v5018
    %v5043 = vpack.c.b16 %v5023, %v5019
    %v5044 = vpack.c.b16 %v5024, %v5020
    %v5045 = vpack.c.b16 %v5029, %v5025
    %v5046 = vpack.c.b16 %v5030, %v5026
    %v5047 = vpack.c.b16 %v5031, %v5027
    %v5048 = vpack.c.b16 %v5032, %v5028
    %v5066 = vsel %vm481, %v4984, 0
    %5068 = vmatprep.subr.bf16.mxu0 %v5034
    %5069 = vmatpush1.bf16.msra.mxu0 %v5033
    %5070 = vmatprep.subr.bf16.mxu0 %v5038
    %5071 = vmatpush1.bf16.msra.mxu0 %v5037
    %5072 = vmatprep.subr.bf16.mxu0 %v5042
    %5073 = vmatpush1.bf16.msra.mxu0 %v5041
    %5074 = vmatprep.subr.bf16.mxu0 %v5046
    %5075 = vmatpush1.bf16.msra.mxu0 %v5045
    %5076 = vmatprep.subr.bf16.mxu0 0
    %5077 = vmatpush1.bf16.msra.mxu0 0
    %5078 = vmatprep.subr.bf16.mxu0 0
    %5079 = vmatpush1.bf16.msra.mxu0 0
    %5080 = vmatprep.subr.bf16.mxu0 0
    %5081 = vmatpush1.bf16.msra.mxu0 0
    %5082 = vmatprep.subr.bf16.mxu0 0
    %5083 = vmatpush1.bf16.msra.mxu0 0
    %5084 = vmatprep.subr.bf16.mxu0 0
    %5085 = vmatpush1.bf16.msra.mxu0 0
    %5086 = vmatprep.subr.bf16.mxu0 0
    %5087 = vmatpush1.bf16.msra.mxu0 0
    %5088 = vmatprep.subr.bf16.mxu0 0
    %5089 = vmatpush1.bf16.msra.mxu0 0
    %5090 = vmatprep.subr.bf16.mxu0 0
    %5091 = vmatpush1.bf16.msra.mxu0 0
    %5092 = vmatprep.subr.bf16.mxu0 0
    %5093 = vmatpush1.bf16.msra.mxu0 0
    %5094 = vmatprep.subr.bf16.mxu0 0
    %5095 = vmatpush1.bf16.msra.mxu0 0
    %5096 = vmatprep.subr.bf16.mxu0 0
    %5097 = vmatpush1.bf16.msra.mxu0 0
    %5098 = vmatprep.subr.bf16.mxu0 0
    %5099 = vmatpush1.bf16.msra.mxu0 0
    %5100 = vmatprep.mubr.bf16.mxu0 0
    %5101 = vmatmul.mubr.bf16.gmra.mrb[0].mxu0 %v5066
    %v5102 = vpop.f32.mrb[0].mxu0
    %v5103 = vadd.f32 %v4935, %v5102
    %v5104 = vpop.f32.mrb[0].mxu0
    %v5105 = vadd.f32 %v4937, %v5104
    %v5106 = vpop.f32.mrb[0].mxu0
    %v5107 = vpop.f32.mrb[0].mxu0
    %5108 = vdwg.mxu0
    %5109 = vmatprep.subr.bf16.mxu0 %v5036
    %5110 = vmatpush1.bf16.msra.mxu0 %v5035
    %5111 = vmatprep.subr.bf16.mxu0 %v5040
    %5112 = vmatpush1.bf16.msra.mxu0 %v5039
    %5113 = vmatprep.subr.bf16.mxu0 %v5044
    %5114 = vmatpush1.bf16.msra.mxu0 %v5043
    %5115 = vmatprep.subr.bf16.mxu0 %v5048
    %5116 = vmatpush1.bf16.msra.mxu0 %v5047
    %5117 = vmatprep.subr.bf16.mxu0 0
    %5118 = vmatpush1.bf16.msra.mxu0 0
    %5119 = vmatprep.subr.bf16.mxu0 0
    %5120 = vmatpush1.bf16.msra.mxu0 0
    %5121 = vmatprep.subr.bf16.mxu0 0
    %5122 = vmatpush1.bf16.msra.mxu0 0
    %5123 = vmatprep.subr.bf16.mxu0 0
    %5124 = vmatpush1.bf16.msra.mxu0 0
    %5125 = vmatprep.subr.bf16.mxu0 0
    %5126 = vmatpush1.bf16.msra.mxu0 0
    %5127 = vmatprep.subr.bf16.mxu0 0
    %5128 = vmatpush1.bf16.msra.mxu0 0
    %5129 = vmatprep.subr.bf16.mxu0 0
    %5130 = vmatpush1.bf16.msra.mxu0 0
    %5131 = vmatprep.subr.bf16.mxu0 0
    %5132 = vmatpush1.bf16.msra.mxu0 0
    %5133 = vmatprep.subr.bf16.mxu0 0
    %5134 = vmatpush1.bf16.msra.mxu0 0
    %5135 = vmatprep.subr.bf16.mxu0 0
    %5136 = vmatpush1.bf16.msra.mxu0 0
    %5137 = vmatprep.subr.bf16.mxu0 0
    %5138 = vmatpush1.bf16.msra.mxu0 0
    %5139 = vmatprep.subr.bf16.mxu0 0
    %5140 = vmatpush1.bf16.msra.mxu0 0
    %5141 = vmatprep.mubr.bf16.mxu0 0
    %5142 = vmatmul.mubr.bf16.gmra.mrb[0].mxu0 %v5066
    %v5143 = vpop.f32.mrb[0].mxu0
    %v5144 = vadd.f32 %v4976, %v5143
    %v5145 = vpop.f32.mrb[0].mxu0
    %v5146 = vadd.f32 %v4978, %v5145
    %v5147 = vpop.f32.mrb[0].mxu0
    %v5148 = vpop.f32.mrb[0].mxu0
    %5149 = vdwg.mxu0
    %v5150 = vrot.slane %v4812, 2
    %v5151 = vrot.slane %v4813, 1
    %v5152 = vsel %vm1940, %v5151, %v5150
    %v5153 = vpack.c.b16 %v5152, %v5152
    %v5170 = vunpack.c.l.b16 %v4757
    %v5171 = vunpack.c.h.b16 %v4757
    %v5172 = vunpack.c.l.b16 %v4758
    %v5173 = vunpack.c.h.b16 %v4758
    %v5174 = vunpack.c.l.b16 %v4759
    %v5175 = vunpack.c.h.b16 %v4759
    %v5176 = vunpack.c.l.b16 %v4760
    %v5177 = vunpack.c.h.b16 %v4760
    %v5178 = vunpack.c.l.b16 %v4761
    %v5179 = vunpack.c.h.b16 %v4761
    %v5180 = vunpack.c.l.b16 %v4762
    %v5181 = vunpack.c.h.b16 %v4762
    %v5182 = vunpack.c.l.b16 %v4763
    %v5183 = vunpack.c.h.b16 %v4763
    %v5184 = vunpack.c.l.b16 %v4764
    %v5185 = vunpack.c.h.b16 %v4764
    %v5186 = vunpack.c.l.b16 %v4765
    %v5187 = vunpack.c.h.b16 %v4765
    %v5188 = vunpack.c.l.b16 %v4766
    %v5189 = vunpack.c.h.b16 %v4766
    %v5190 = vunpack.c.l.b16 %v4767
    %v5191 = vunpack.c.h.b16 %v4767
    %v5192 = vunpack.c.l.b16 %v4768
    %v5193 = vunpack.c.h.b16 %v4768
    %v5194 = vunpack.c.l.b16 %v4769
    %v5195 = vunpack.c.h.b16 %v4769
    %v5196 = vunpack.c.l.b16 %v4770
    %v5197 = vunpack.c.h.b16 %v4770
    %v5198 = vunpack.c.l.b16 %v4771
    %v5199 = vunpack.c.h.b16 %v4771
    %v5200 = vunpack.c.l.b16 %v4772
    %v5201 = vunpack.c.h.b16 %v4772
    %v5202 = vpack.c.b16 %v5174, %v5170
    %v5203 = vpack.c.b16 %v5175, %v5171
    %v5204 = vpack.c.b16 %v5176, %v5172
    %v5205 = vpack.c.b16 %v5177, %v5173
    %v5206 = vpack.c.b16 %v5182, %v5178
    %v5207 = vpack.c.b16 %v5183, %v5179
    %v5208 = vpack.c.b16 %v5184, %v5180
    %v5209 = vpack.c.b16 %v5185, %v5181
    %v5210 = vpack.c.b16 %v5190, %v5186
    %v5211 = vpack.c.b16 %v5191, %v5187
    %v5212 = vpack.c.b16 %v5192, %v5188
    %v5213 = vpack.c.b16 %v5193, %v5189
    %v5214 = vpack.c.b16 %v5198, %v5194
    %v5215 = vpack.c.b16 %v5199, %v5195
    %v5216 = vpack.c.b16 %v5200, %v5196
    %v5217 = vpack.c.b16 %v5201, %v5197
    %v5235 = vsel %vm481, %v5153, 0
    %5237 = vmatprep.subr.bf16.mxu0 %v5203
    %5238 = vmatpush1.bf16.msra.mxu0 %v5202
    %5239 = vmatprep.subr.bf16.mxu0 %v5207
    %5240 = vmatpush1.bf16.msra.mxu0 %v5206
    %5241 = vmatprep.subr.bf16.mxu0 %v5211
    %5242 = vmatpush1.bf16.msra.mxu0 %v5210
    %5243 = vmatprep.subr.bf16.mxu0 %v5215
    %5244 = vmatpush1.bf16.msra.mxu0 %v5214
    %5245 = vmatprep.subr.bf16.mxu0 0
    %5246 = vmatpush1.bf16.msra.mxu0 0
    %5247 = vmatprep.subr.bf16.mxu0 0
    %5248 = vmatpush1.bf16.msra.mxu0 0
    %5249 = vmatprep.subr.bf16.mxu0 0
    %5250 = vmatpush1.bf16.msra.mxu0 0
    %5251 = vmatprep.subr.bf16.mxu0 0
    %5252 = vmatpush1.bf16.msra.mxu0 0
    %5253 = vmatprep.subr.bf16.mxu0 0
    %5254 = vmatpush1.bf16.msra.mxu0 0
    %5255 = vmatprep.subr.bf16.mxu0 0
    %5256 = vmatpush1.bf16.msra.mxu0 0
    %5257 = vmatprep.subr.bf16.mxu0 0
    %5258 = vmatpush1.bf16.msra.mxu0 0
    %5259 = vmatprep.subr.bf16.mxu0 0
    %5260 = vmatpush1.bf16.msra.mxu0 0
    %5261 = vmatprep.subr.bf16.mxu0 0
    %5262 = vmatpush1.bf16.msra.mxu0 0
    %5263 = vmatprep.subr.bf16.mxu0 0
    %5264 = vmatpush1.bf16.msra.mxu0 0
    %5265 = vmatprep.subr.bf16.mxu0 0
    %5266 = vmatpush1.bf16.msra.mxu0 0
    %5267 = vmatprep.subr.bf16.mxu0 0
    %5268 = vmatpush1.bf16.msra.mxu0 0
    %5269 = vmatprep.mubr.bf16.mxu0 0
    %5270 = vmatmul.mubr.bf16.gmra.mrb[0].mxu0 %v5235
    %v5271 = vpop.f32.mrb[0].mxu0
    %v5272 = vadd.f32 0.0, %v5271
    %v5273 = vpop.f32.mrb[0].mxu0
    %v5274 = vadd.f32 0.0, %v5273
    %v5275 = vpop.f32.mrb[0].mxu0
    %v5276 = vpop.f32.mrb[0].mxu0
    %5277 = vdwg.mxu0
    %5278 = vmatprep.subr.bf16.mxu0 %v5205
    %5279 = vmatpush1.bf16.msra.mxu0 %v5204
    %5280 = vmatprep.subr.bf16.mxu0 %v5209
    %5281 = vmatpush1.bf16.msra.mxu0 %v5208
    %5282 = vmatprep.subr.bf16.mxu0 %v5213
    %5283 = vmatpush1.bf16.msra.mxu0 %v5212
    %5284 = vmatprep.subr.bf16.mxu0 %v5217
    %5285 = vmatpush1.bf16.msra.mxu0 %v5216
    %5286 = vmatprep.subr.bf16.mxu0 0
    %5287 = vmatpush1.bf16.msra.mxu0 0
    %5288 = vmatprep.subr.bf16.mxu0 0
    %5289 = vmatpush1.bf16.msra.mxu0 0
    %5290 = vmatprep.subr.bf16.mxu0 0
    %5291 = vmatpush1.bf16.msra.mxu0 0
    %5292 = vmatprep.subr.bf16.mxu0 0
    %5293 = vmatpush1.bf16.msra.mxu0 0
    %5294 = vmatprep.subr.bf16.mxu0 0
    %5295 = vmatpush1.bf16.msra.mxu0 0
    %5296 = vmatprep.subr.bf16.mxu0 0
    %5297 = vmatpush1.bf16.msra.mxu0 0
    %5298 = vmatprep.subr.bf16.mxu0 0
    %5299 = vmatpush1.bf16.msra.mxu0 0
    %5300 = vmatprep.subr.bf16.mxu0 0
    %5301 = vmatpush1.bf16.msra.mxu0 0
    %5302 = vmatprep.subr.bf16.mxu0 0
    %5303 = vmatpush1.bf16.msra.mxu0 0
    %5304 = vmatprep.subr.bf16.mxu0 0
    %5305 = vmatpush1.bf16.msra.mxu0 0
    %5306 = vmatprep.subr.bf16.mxu0 0
    %5307 = vmatpush1.bf16.msra.mxu0 0
    %5308 = vmatprep.subr.bf16.mxu0 0
    %5309 = vmatpush1.bf16.msra.mxu0 0
    %5310 = vmatprep.mubr.bf16.mxu0 0
    %5311 = vmatmul.mubr.bf16.gmra.mrb[0].mxu0 %v5235
    %v5312 = vpop.f32.mrb[0].mxu0
    %v5313 = vadd.f32 0.0, %v5312
    %v5314 = vpop.f32.mrb[0].mxu0
    %v5315 = vadd.f32 0.0, %v5314
    %v5316 = vpop.f32.mrb[0].mxu0
    %v5317 = vpop.f32.mrb[0].mxu0
    %5318 = vdwg.mxu0
    %v5319 = vadd.f32 %v5103, %v5272
    %v5320 = vadd.f32 %v5105, %v5274
    %v5321 = vadd.f32 %v5144, %v5313
    %v5322 = vadd.f32 %v5146, %v5315
    %v5323 = vrot.slane %v4812, 3
    %v5324 = vrot.slane %v4813, 2
    %v5325 = vsel %vm1940, %v5324, %v5323
    %v5326 = vpack.c.b16 %v5325, %v5325
    %v5343 = vunpack.c.l.b16 %v4773
    %v5344 = vunpack.c.h.b16 %v4773
    %v5345 = vunpack.c.l.b16 %v4774
    %v5346 = vunpack.c.h.b16 %v4774
    %v5347 = vunpack.c.l.b16 %v4775
    %v5348 = vunpack.c.h.b16 %v4775
    %v5349 = vunpack.c.l.b16 %v4776
    %v5350 = vunpack.c.h.b16 %v4776
    %v5351 = vunpack.c.l.b16 %v4777
    %v5352 = vunpack.c.h.b16 %v4777
    %v5353 = vunpack.c.l.b16 %v4778
    %v5354 = vunpack.c.h.b16 %v4778
    %v5355 = vunpack.c.l.b16 %v4779
    %v5356 = vunpack.c.h.b16 %v4779
    %v5357 = vunpack.c.l.b16 %v4780
    %v5358 = vunpack.c.h.b16 %v4780
    %v5359 = vunpack.c.l.b16 %v4781
    %v5360 = vunpack.c.h.b16 %v4781
    %v5361 = vunpack.c.l.b16 %v4782
    %v5362 = vunpack.c.h.b16 %v4782
    %v5363 = vunpack.c.l.b16 %v4783
    %v5364 = vunpack.c.h.b16 %v4783
    %v5365 = vunpack.c.l.b16 %v4784
    %v5366 = vunpack.c.h.b16 %v4784
    %v5367 = vunpack.c.l.b16 %v4785
    %v5368 = vunpack.c.h.b16 %v4785
    %v5369 = vunpack.c.l.b16 %v4786
    %v5370 = vunpack.c.h.b16 %v4786
    %v5371 = vunpack.c.l.b16 %v4787
    %v5372 = vunpack.c.h.b16 %v4787
    %v5373 = vunpack.c.l.b16 %v4788
    %v5374 = vunpack.c.h.b16 %v4788
    %v5375 = vpack.c.b16 %v5347, %v5343
    %v5376 = vpack.c.b16 %v5348, %v5344
    %v5377 = vpack.c.b16 %v5349, %v5345
    %v5378 = vpack.c.b16 %v5350, %v5346
    %v5379 = vpack.c.b16 %v5355, %v5351
    %v5380 = vpack.c.b16 %v5356, %v5352
    %v5381 = vpack.c.b16 %v5357, %v5353
    %v5382 = vpack.c.b16 %v5358, %v5354
    %v5383 = vpack.c.b16 %v5363, %v5359
    %v5384 = vpack.c.b16 %v5364, %v5360
    %v5385 = vpack.c.b16 %v5365, %v5361
    %v5386 = vpack.c.b16 %v5366, %v5362
    %v5387 = vpack.c.b16 %v5371, %v5367
    %v5388 = vpack.c.b16 %v5372, %v5368
    %v5389 = vpack.c.b16 %v5373, %v5369
    %v5390 = vpack.c.b16 %v5374, %v5370
    %v5408 = vsel %vm481, %v5326, 0
    %5410 = vmatprep.subr.bf16.mxu0 %v5376
    %5411 = vmatpush1.bf16.msra.mxu0 %v5375
    %5412 = vmatprep.subr.bf16.mxu0 %v5380
    %5413 = vmatpush1.bf16.msra.mxu0 %v5379
    %5414 = vmatprep.subr.bf16.mxu0 %v5384
    %5415 = vmatpush1.bf16.msra.mxu0 %v5383
    %5416 = vmatprep.subr.bf16.mxu0 %v5388
    %5417 = vmatpush1.bf16.msra.mxu0 %v5387
    %5418 = vmatprep.subr.bf16.mxu0 0
    %5419 = vmatpush1.bf16.msra.mxu0 0
    %5420 = vmatprep.subr.bf16.mxu0 0
    %5421 = vmatpush1.bf16.msra.mxu0 0
    %5422 = vmatprep.subr.bf16.mxu0 0
    %5423 = vmatpush1.bf16.msra.mxu0 0
    %5424 = vmatprep.subr.bf16.mxu0 0
    %5425 = vmatpush1.bf16.msra.mxu0 0
    %5426 = vmatprep.subr.bf16.mxu0 0
    %5427 = vmatpush1.bf16.msra.mxu0 0
    %5428 = vmatprep.subr.bf16.mxu0 0
    %5429 = vmatpush1.bf16.msra.mxu0 0
    %5430 = vmatprep.subr.bf16.mxu0 0
    %5431 = vmatpush1.bf16.msra.mxu0 0
    %5432 = vmatprep.subr.bf16.mxu0 0
    %5433 = vmatpush1.bf16.msra.mxu0 0
    %5434 = vmatprep.subr.bf16.mxu0 0
    %5435 = vmatpush1.bf16.msra.mxu0 0
    %5436 = vmatprep.subr.bf16.mxu0 0
    %5437 = vmatpush1.bf16.msra.mxu0 0
    %5438 = vmatprep.subr.bf16.mxu0 0
    %5439 = vmatpush1.bf16.msra.mxu0 0
    %5440 = vmatprep.subr.bf16.mxu0 0
    %5441 = vmatpush1.bf16.msra.mxu0 0
    %5442 = vmatprep.mubr.bf16.mxu0 0
    %5443 = vmatmul.mubr.bf16.gmra.mrb[0].mxu0 %v5408
    %v5444 = vpop.f32.mrb[0].mxu0
    %v5445 = vadd.f32 0.0, %v5444
    %v5446 = vpop.f32.mrb[0].mxu0
    %v5447 = vadd.f32 0.0, %v5446
    %v5448 = vpop.f32.mrb[0].mxu0
    %v5449 = vpop.f32.mrb[0].mxu0
    %5450 = vdwg.mxu0
    %5451 = vmatprep.subr.bf16.mxu0 %v5378
    %5452 = vmatpush1.bf16.msra.mxu0 %v5377
    %5453 = vmatprep.subr.bf16.mxu0 %v5382
    %5454 = vmatpush1.bf16.msra.mxu0 %v5381
    %5455 = vmatprep.subr.bf16.mxu0 %v5386
    %5456 = vmatpush1.bf16.msra.mxu0 %v5385
    %5457 = vmatprep.subr.bf16.mxu0 %v5390
    %5458 = vmatpush1.bf16.msra.mxu0 %v5389
    %5459 = vmatprep.subr.bf16.mxu0 0
    %5460 = vmatpush1.bf16.msra.mxu0 0
    %5461 = vmatprep.subr.bf16.mxu0 0
    %5462 = vmatpush1.bf16.msra.mxu0 0
    %5463 = vmatprep.subr.bf16.mxu0 0
    %5464 = vmatpush1.bf16.msra.mxu0 0
    %5465 = vmatprep.subr.bf16.mxu0 0
    %5466 = vmatpush1.bf16.msra.mxu0 0
    %5467 = vmatprep.subr.bf16.mxu0 0
    %5468 = vmatpush1.bf16.msra.mxu0 0
    %5469 = vmatprep.subr.bf16.mxu0 0
    %5470 = vmatpush1.bf16.msra.mxu0 0
    %5471 = vmatprep.subr.bf16.mxu0 0
    %5472 = vmatpush1.bf16.msra.mxu0 0
    %5473 = vmatprep.subr.bf16.mxu0 0
    %5474 = vmatpush1.bf16.msra.mxu0 0
    %5475 = vmatprep.subr.bf16.mxu0 0
    %5476 = vmatpush1.bf16.msra.mxu0 0
    %5477 = vmatprep.subr.bf16.mxu0 0
    %5478 = vmatpush1.bf16.msra.mxu0 0
    %5479 = vmatprep.subr.bf16.mxu0 0
    %5480 = vmatpush1.bf16.msra.mxu0 0
    %5481 = vmatprep.subr.bf16.mxu0 0
    %5482 = vmatpush1.bf16.msra.mxu0 0
    %5483 = vmatprep.mubr.bf16.mxu0 0
    %5484 = vmatmul.mubr.bf16.gmra.mrb[0].mxu0 %v5408
    %v5485 = vpop.f32.mrb[0].mxu0
    %v5486 = vadd.f32 0.0, %v5485
    %v5487 = vpop.f32.mrb[0].mxu0
    %v5488 = vadd.f32 0.0, %v5487
    %v5489 = vpop.f32.mrb[0].mxu0
    %v5490 = vpop.f32.mrb[0].mxu0
    %5491 = vdwg.mxu0
    %v5492 = vadd.f32 %v5319, %v5445
    %v5493 = vadd.f32 %v5320, %v5447
    %v5494 = vadd.f32 %v5321, %v5486
    %v5495 = vadd.f32 %v5322, %v5488
    %v5496 = vld [vmem:[%s8] sm:$0xf]
    %v5498 = vlaneseq
    %v5499 = vshrl.u32 %v5498, 7
    %v5500 = vsub.s32 0, %v5499
    %v5501 = vrot.slane %v5496, %v5500
    %v5502 = vlaneseq
    %v5503 = vshrl.u32 %v5502, 7
    %v5504 = vsub.s32 1, %v5503
    %v5505 = vrot.slane %v5496, %v5504
    %v5506 = vlaneseq
    %v5507 = vshrl.u32 %v5506, 7
    %v5508 = vsub.s32 2, %v5507
    %v5509 = vrot.slane %v5496, %v5508
    %v5510 = vlaneseq
    %v5511 = vshrl.u32 %v5510, 7
    %v5512 = vsub.s32 3, %v5511
    %v5513 = vrot.slane %v5496, %v5512
    %v5518 = vadd.f32 %v5492, %v5501
    %v5519 = vadd.f32 %v5493, %v5505
    %v5520 = vadd.f32 %v5494, %v5509
    %v5521 = vadd.f32 %v5495, %v5513
    %v5522 = vmax.f32 %v5518, 0.0
    %v5523 = vmax.f32 %v5519, 0.0
    %v5524 = vmax.f32 %v5520, 0.0
    %v5525 = vmax.f32 %v5521, 0.0
    %v5526 = vpack.c.bf16 %v5522, %v5522
    %v5527 = vpack.c.bf16 %v5523, %v5523
    %v5528 = vpack.c.bf16 %v5524, %v5524
    %v5529 = vpack.c.bf16 %v5525, %v5525
    %v5530 = vld [vmem:[%s9] sm:$0xf]
    %v5531 = vld [vmem:[%s9 + $0x4] sm:$0xf]
    %v5532 = vld [vmem:[%s9 + $0x8] sm:$0xf]
    %v5533 = vld [vmem:[%s9 + $0xc] sm:$0xf]
    %v5534 = vld [vmem:[%s9 + $0x10] sm:$0xf]
    %v5535 = vld [vmem:[%s9 + $0x14] sm:$0xf]
    %v5536 = vld [vmem:[%s9 + $0x18] sm:$0xf]
    %v5537 = vld [vmem:[%s9 + $0x1c] sm:$0xf]
    %v5538 = vld [vmem:[%s9 + $0x20] sm:$0xf]
    %v5539 = vld [vmem:[%s9 + $0x24] sm:$0xf]
    %v5540 = vld [vmem:[%s9 + $0x28] sm:$0xf]
    %v5541 = vld [vmem:[%s9 + $0x2c] sm:$0xf]
    %v5542 = vld [vmem:[%s9 + $0x30] sm:$0xf]
    %v5543 = vld [vmem:[%s9 + $0x34] sm:$0xf]
    %v5544 = vld [vmem:[%s9 + $0x38] sm:$0xf]
    %v5545 = vld [vmem:[%s9 + $0x3c] sm:$0xf]
    %v5546 = vld [vmem:[%s9 + $0x40] sm:$0xf]
    %v5547 = vld [vmem:[%s9 + $0x44] sm:$0xf]
    %v5548 = vld [vmem:[%s9 + $0x48] sm:$0xf]
    %v5549 = vld [vmem:[%s9 + $0x4c] sm:$0xf]
    %v5550 = vld [vmem:[%s9 + $0x50] sm:$0xf]
    %v5551 = vld [vmem:[%s9 + $0x54] sm:$0xf]
    %v5552 = vld [vmem:[%s9 + $0x58] sm:$0xf]
    %v5553 = vld [vmem:[%s9 + $0x5c] sm:$0xf]
    %v5554 = vld [vmem:[%s9 + $0x60] sm:$0xf]
    %v5555 = vld [vmem:[%s9 + $0x64] sm:$0xf]
    %v5556 = vld [vmem:[%s9 + $0x68] sm:$0xf]
    %v5557 = vld [vmem:[%s9 + $0x6c] sm:$0xf]
    %v5558 = vld [vmem:[%s9 + $0x70] sm:$0xf]
    %v5559 = vld [vmem:[%s9 + $0x74] sm:$0xf]
    %v5560 = vld [vmem:[%s9 + $0x78] sm:$0xf]
    %v5561 = vld [vmem:[%s9 + $0x7c] sm:$0xf]
    %v5562 = vld [vmem:[%s9 + $0x80] sm:$0xf]
    %v5563 = vld [vmem:[%s9 + $0x84] sm:$0xf]
    %v5564 = vld [vmem:[%s9 + $0x88] sm:$0xf]
    %v5565 = vld [vmem:[%s9 + $0x8c] sm:$0xf]
    %v5566 = vld [vmem:[%s9 + $0x90] sm:$0xf]
    %v5567 = vld [vmem:[%s9 + $0x94] sm:$0xf]
    %v5568 = vld [vmem:[%s9 + $0x98] sm:$0xf]
    %v5569 = vld [vmem:[%s9 + $0x9c] sm:$0xf]
    %v5570 = vld [vmem:[%s9 + $0xa0] sm:$0xf]
    %v5571 = vld [vmem:[%s9 + $0xa4] sm:$0xf]
    %v5572 = vld [vmem:[%s9 + $0xa8] sm:$0xf]
    %v5573 = vld [vmem:[%s9 + $0xac] sm:$0xf]
    %v5574 = vld [vmem:[%s9 + $0xb0] sm:$0xf]
    %v5575 = vld [vmem:[%s9 + $0xb4] sm:$0xf]
    %v5576 = vld [vmem:[%s9 + $0xb8] sm:$0xf]
    %v5577 = vld [vmem:[%s9 + $0xbc] sm:$0xf]
    %v5578 = vld [vmem:[%s9 + $0xc0] sm:$0xf]
    %v5579 = vld [vmem:[%s9 + $0xc4] sm:$0xf]
    %v5580 = vld [vmem:[%s9 + $0xc8] sm:$0xf]
    %v5581 = vld [vmem:[%s9 + $0xcc] sm:$0xf]
    %v5582 = vld [vmem:[%s9 + $0xd0] sm:$0xf]
    %v5583 = vld [vmem:[%s9 + $0xd4] sm:$0xf]
    %v5584 = vld [vmem:[%s9 + $0xd8] sm:$0xf]
    %v5585 = vld [vmem:[%s9 + $0xdc] sm:$0xf]
    %v5586 = vld [vmem:[%s9 + $0xe0] sm:$0xf]
    %v5587 = vld [vmem:[%s9 + $0xe4] sm:$0xf]
    %v5588 = vld [vmem:[%s9 + $0xe8] sm:$0xf]
    %v5589 = vld [vmem:[%s9 + $0xec] sm:$0xf]
    %v5590 = vld [vmem:[%s9 + $0xf0] sm:$0xf]
    %v5591 = vld [vmem:[%s9 + $0xf4] sm:$0xf]
    %v5592 = vld [vmem:[%s9 + $0xf8] sm:$0xf]
    %v5593 = vld [vmem:[%s9 + $0xfc] sm:$0xf]
    %v5594 = vld [vmem:[%s10] sm:$0x1]
    %v5596 = vlaneseq
    %v5597 = vshrl.u32 %v5596, 7
    %v5598 = vsub.s32 0, %v5597
    %v5599 = vrot.slane %v5594, %v5598
    %v5665 = vunpack.c.l.b16 %v5530
    %v5666 = vunpack.c.l.b16 %v5531
    %v5667 = vunpack.c.l.b16 %v5532
    %v5668 = vunpack.c.l.b16 %v5533
    %v5669 = vunpack.c.l.b16 %v5534
    %v5670 = vunpack.c.l.b16 %v5535
    %v5671 = vunpack.c.l.b16 %v5536
    %v5672 = vunpack.c.l.b16 %v5537
    %v5673 = vunpack.c.l.b16 %v5538
    %v5674 = vunpack.c.l.b16 %v5539
    %v5675 = vunpack.c.l.b16 %v5540
    %v5676 = vunpack.c.l.b16 %v5541
    %v5677 = vunpack.c.l.b16 %v5542
    %v5678 = vunpack.c.l.b16 %v5543
    %v5679 = vunpack.c.l.b16 %v5544
    %v5680 = vunpack.c.l.b16 %v5545
    %v5681 = vunpack.c.l.b16 %v5546
    %v5682 = vunpack.c.l.b16 %v5547
    %v5683 = vunpack.c.l.b16 %v5548
    %v5684 = vunpack.c.l.b16 %v5549
    %v5685 = vunpack.c.l.b16 %v5550
    %v5686 = vunpack.c.l.b16 %v5551
    %v5687 = vunpack.c.l.b16 %v5552
    %v5688 = vunpack.c.l.b16 %v5553
    %v5689 = vunpack.c.l.b16 %v5554
    %v5690 = vunpack.c.l.b16 %v5555
    %v5691 = vunpack.c.l.b16 %v5556
    %v5692 = vunpack.c.l.b16 %v5557
    %v5693 = vunpack.c.l.b16 %v5558
    %v5694 = vunpack.c.l.b16 %v5559
    %v5695 = vunpack.c.l.b16 %v5560
    %v5696 = vunpack.c.l.b16 %v5561
    %v5697 = vunpack.c.l.b16 %v5562
    %v5698 = vunpack.c.l.b16 %v5563
    %v5699 = vunpack.c.l.b16 %v5564
    %v5700 = vunpack.c.l.b16 %v5565
    %v5701 = vunpack.c.l.b16 %v5566
    %v5702 = vunpack.c.l.b16 %v5567
    %v5703 = vunpack.c.l.b16 %v5568
    %v5704 = vunpack.c.l.b16 %v5569
    %v5705 = vunpack.c.l.b16 %v5570
    %v5706 = vunpack.c.l.b16 %v5571
    %v5707 = vunpack.c.l.b16 %v5572
    %v5708 = vunpack.c.l.b16 %v5573
    %v5709 = vunpack.c.l.b16 %v5574
    %v5710 = vunpack.c.l.b16 %v5575
    %v5711 = vunpack.c.l.b16 %v5576
    %v5712 = vunpack.c.l.b16 %v5577
    %v5713 = vunpack.c.l.b16 %v5578
    %v5714 = vunpack.c.l.b16 %v5579
    %v5715 = vunpack.c.l.b16 %v5580
    %v5716 = vunpack.c.l.b16 %v5581
    %v5717 = vunpack.c.l.b16 %v5582
    %v5718 = vunpack.c.l.b16 %v5583
    %v5719 = vunpack.c.l.b16 %v5584
    %v5720 = vunpack.c.l.b16 %v5585
    %v5721 = vunpack.c.l.b16 %v5586
    %v5722 = vunpack.c.l.b16 %v5587
    %v5723 = vunpack.c.l.b16 %v5588
    %v5724 = vunpack.c.l.b16 %v5589
    %v5725 = vunpack.c.l.b16 %v5590
    %v5726 = vunpack.c.l.b16 %v5591
    %v5727 = vunpack.c.l.b16 %v5592
    %v5728 = vunpack.c.l.b16 %v5593
    %v5729 = vpack.c.b16 %v5666, %v5665
    %v5730 = vpack.c.b16 %v5668, %v5667
    %v5731 = vpack.c.b16 %v5670, %v5669
    %v5732 = vpack.c.b16 %v5672, %v5671
    %v5733 = vpack.c.b16 %v5674, %v5673
    %v5734 = vpack.c.b16 %v5676, %v5675
    %v5735 = vpack.c.b16 %v5678, %v5677
    %v5736 = vpack.c.b16 %v5680, %v5679
    %v5737 = vpack.c.b16 %v5682, %v5681
    %v5738 = vpack.c.b16 %v5684, %v5683
    %v5739 = vpack.c.b16 %v5686, %v5685
    %v5740 = vpack.c.b16 %v5688, %v5687
    %v5741 = vpack.c.b16 %v5690, %v5689
    %v5742 = vpack.c.b16 %v5692, %v5691
    %v5743 = vpack.c.b16 %v5694, %v5693
    %v5744 = vpack.c.b16 %v5696, %v5695
    %v5745 = vpack.c.b16 %v5698, %v5697
    %v5746 = vpack.c.b16 %v5700, %v5699
    %v5747 = vpack.c.b16 %v5702, %v5701
    %v5748 = vpack.c.b16 %v5704, %v5703
    %v5749 = vpack.c.b16 %v5706, %v5705
    %v5750 = vpack.c.b16 %v5708, %v5707
    %v5751 = vpack.c.b16 %v5710, %v5709
    %v5752 = vpack.c.b16 %v5712, %v5711
    %v5753 = vpack.c.b16 %v5714, %v5713
    %v5754 = vpack.c.b16 %v5716, %v5715
    %v5755 = vpack.c.b16 %v5718, %v5717
    %v5756 = vpack.c.b16 %v5720, %v5719
    %v5757 = vpack.c.b16 %v5722, %v5721
    %v5758 = vpack.c.b16 %v5724, %v5723
    %v5759 = vpack.c.b16 %v5726, %v5725
    %v5760 = vpack.c.b16 %v5728, %v5727
    %5793 = vmatprep.subr.bf16.mxu0 0
    %5794 = vmatpush1.bf16.msra.mxu0 %v5729
    %5795 = vmatprep.subr.bf16.mxu0 0
    %5796 = vmatpush1.bf16.msra.mxu0 %v5730
    %5797 = vmatprep.subr.bf16.mxu0 0
    %5798 = vmatpush1.bf16.msra.mxu0 %v5731
    %5799 = vmatprep.subr.bf16.mxu0 0
    %5800 = vmatpush1.bf16.msra.mxu0 %v5732
    %5801 = vmatprep.subr.bf16.mxu0 0
    %5802 = vmatpush1.bf16.msra.mxu0 %v5733
    %5803 = vmatprep.subr.bf16.mxu0 0
    %5804 = vmatpush1.bf16.msra.mxu0 %v5734
    %5805 = vmatprep.subr.bf16.mxu0 0
    %5806 = vmatpush1.bf16.msra.mxu0 %v5735
    %5807 = vmatprep.subr.bf16.mxu0 0
    %5808 = vmatpush1.bf16.msra.mxu0 %v5736
    %5809 = vmatprep.subr.bf16.mxu0 0
    %5810 = vmatpush1.bf16.msra.mxu0 %v5737
    %5811 = vmatprep.subr.bf16.mxu0 0
    %5812 = vmatpush1.bf16.msra.mxu0 %v5738
    %5813 = vmatprep.subr.bf16.mxu0 0
    %5814 = vmatpush1.bf16.msra.mxu0 %v5739
    %5815 = vmatprep.subr.bf16.mxu0 0
    %5816 = vmatpush1.bf16.msra.mxu0 %v5740
    %5817 = vmatprep.subr.bf16.mxu0 0
    %5818 = vmatpush1.bf16.msra.mxu0 %v5741
    %5819 = vmatprep.subr.bf16.mxu0 0
    %5820 = vmatpush1.bf16.msra.mxu0 %v5742
    %5821 = vmatprep.subr.bf16.mxu0 0
    %5822 = vmatpush1.bf16.msra.mxu0 %v5743
    %5823 = vmatprep.subr.bf16.mxu0 0
    %5824 = vmatpush1.bf16.msra.mxu0 %v5744
    %5825 = vmatprep.mubr.bf16.mxu0 %v5527
    %5826 = vmatmul.mubr.bf16.gmra.mrb[0].mxu0 %v5526
    %v5827 = vpop.f32.mrb[0].mxu0
    %v5828 = vadd.f32 %v5599, %v5827
    %v5829 = vpop.f32.mrb[0].mxu0
    %v5830 = vpop.f32.mrb[0].mxu0
    %v5831 = vpop.f32.mrb[0].mxu0
    %5832 = vdwg.mxu0
    %5833 = vmatprep.subr.bf16.mxu0 0
    %5834 = vmatpush1.bf16.msra.mxu0 %v5745
    %5835 = vmatprep.subr.bf16.mxu0 0
    %5836 = vmatpush1.bf16.msra.mxu0 %v5746
    %5837 = vmatprep.subr.bf16.mxu0 0
    %5838 = vmatpush1.bf16.msra.mxu0 %v5747
    %5839 = vmatprep.subr.bf16.mxu0 0
    %5840 = vmatpush1.bf16.msra.mxu0 %v5748
    %5841 = vmatprep.subr.bf16.mxu0 0
    %5842 = vmatpush1.bf16.msra.mxu0 %v5749
    %5843 = vmatprep.subr.bf16.mxu0 0
    %5844 = vmatpush1.bf16.msra.mxu0 %v5750
    %5845 = vmatprep.subr.bf16.mxu0 0
    %5846 = vmatpush1.bf16.msra.mxu0 %v5751
    %5847 = vmatprep.subr.bf16.mxu0 0
    %5848 = vmatpush1.bf16.msra.mxu0 %v5752
    %5849 = vmatprep.subr.bf16.mxu0 0
    %5850 = vmatpush1.bf16.msra.mxu0 %v5753
    %5851 = vmatprep.subr.bf16.mxu0 0
    %5852 = vmatpush1.bf16.msra.mxu0 %v5754
    %5853 = vmatprep.subr.bf16.mxu0 0
    %5854 = vmatpush1.bf16.msra.mxu0 %v5755
    %5855 = vmatprep.subr.bf16.mxu0 0
    %5856 = vmatpush1.bf16.msra.mxu0 %v5756
    %5857 = vmatprep.subr.bf16.mxu0 0
    %5858 = vmatpush1.bf16.msra.mxu0 %v5757
    %5859 = vmatprep.subr.bf16.mxu0 0
    %5860 = vmatpush1.bf16.msra.mxu0 %v5758
    %5861 = vmatprep.subr.bf16.mxu0 0
    %5862 = vmatpush1.bf16.msra.mxu0 %v5759
    %5863 = vmatprep.subr.bf16.mxu0 0
    %5864 = vmatpush1.bf16.msra.mxu0 %v5760
    %5865 = vmatprep.mubr.bf16.mxu0 %v5529
    %5866 = vmatmul.mubr.bf16.gmra.mrb[0].mxu0 %v5528
    %v5867 = vpop.f32.mrb[0].mxu0
    %v5868 = vadd.f32 %v5828, %v5867
    %v5869 = vpop.f32.mrb[0].mxu0
    %v5870 = vpop.f32.mrb[0].mxu0
    %v5871 = vpop.f32.mrb[0].mxu0
    %5872 = vdwg.mxu0
    %5873 = vst [vmem:[#allocation2] sm:$0x3] %v5868
    // Predicated region
    $region46: #{network_forward.1} parent=1 // pred_check
      _
    $region47: #{network_forward.1} parent=1 // pred_check_branch
      %5875 = sbr.rel (0) target = $region49
    $region48: #{network_forward.1} parent=1 // pred_region
      %s5877 = ssub.s32 32, 32
      %5878 = vsyncadd [#allocation3], %s5877
      %s5880 = sshll.u32 [#allocation2], 4
      %s5881 = int_to_ptr.vmem [resolvable:$true] %s5880
      %5883 = dma.vmem_to_hbm [thread:$0]  %s5881, 32, %s11, [#allocation3]
    $region49: #{network_forward.1} parent=1 // pred_fallthru
      _
    // Predicated region
    $region50: #{network_forward.1} parent=1 // pred_check
      _
    $region51: #{network_forward.1} parent=1 // pred_check_branch
      %5885 = sbr.rel (0) target = $region53
    $region52: #{network_forward.1} parent=1 // pred_region
      %5886 = dma.done [#allocation3], 32
    $region53: #{network_forward.1} parent=1 // pred_fallthru
      _
    %5887 = vsyncpa [#allocation3], 1

</llo_original>
